<compile_context>
chip_gen: v7x
topology: tpu7x:2x2x1
jax: 0.10.0
libtpu: 0.0.40
codegen_flags: <defaults>
</compile_context>

<pallas_src>
import functools
import math

import jax
import jax.numpy as jnp
from jax import lax
from jax.experimental import pallas as pl
from jax.experimental.pallas import tpu as pltpu

EPS = 1e-6
NEG_INF = -1e9


# ----------------------------------------------------------------------------
# Helpers
# ----------------------------------------------------------------------------
@functools.lru_cache(maxsize=1)
def _vmem_limit_bytes():
    """Per-generation VMEM budget: ~3/4 of physical, clamped to [32, 96] MiB."""
    try:
        cap = int(pltpu.get_tpu_info().vmem_capacity_bytes)
    except Exception:
        cap = 64 * 1024 * 1024  # conservative (v7x-sized) fallback
    return max(32 * 1024 * 1024, min((cap * 3) // 4, 96 * 1024 * 1024))


def _compiler_params(semantics):
    return pltpu.CompilerParams(dimension_semantics=semantics,
                                vmem_limit_bytes=_vmem_limit_bytes())


def _pick_tile(m, candidates):
    """Largest candidate tile that divides m; fall back to the full extent."""
    for t in candidates:
        if m % t == 0:
            return t
    return m


def _layernorm(x, gamma, beta):
    """Torch-style LayerNorm: gamma * (x - mean) / (std + eps) + beta, std ddof=1."""
    d = x.shape[-1]
    mean = jnp.mean(x, axis=-1, keepdims=True)
    diff = x - mean
    var = jnp.sum(diff * diff, axis=-1, keepdims=True) / (d - 1)  # unbiased (torch.std)
    return gamma * diff / (jnp.sqrt(var) + EPS) + beta


# ----------------------------------------------------------------------------
# Kernel A: LN1 + fused QKV projection (row-tiled over B*S)
#   q/k/v emitted as bf16 (halves HBM traffic; consumed as bf16 by the MXU).
# ----------------------------------------------------------------------------
def qkv_proj_kernel(x_ref, g_ref, b_ref, wqkv_ref, bqkv_ref, q_ref, k_ref, v_ref):
    x = x_ref[...]                                            # [tm, D] f32
    d = q_ref.shape[-1]
    xn = _layernorm(x, g_ref[...], b_ref[...])
    qkv = jnp.dot(xn.astype(jnp.bfloat16), wqkv_ref[...],
                  preferred_element_type=jnp.float32) + bqkv_ref[...]   # [tm, 3D]
    q_ref[...] = qkv[:, :d].astype(jnp.bfloat16)              # Q already 1/sqrt(dk)-scaled
    k_ref[...] = qkv[:, d:2 * d].astype(jnp.bfloat16)
    v_ref[...] = qkv[:, 2 * d:3 * d].astype(jnp.bfloat16)


def qkv_projection(x2d, gamma, beta, wqkv, bqkv):
    M, D = x2d.shape
    tm = _pick_tile(M, (512, 256, 128))
    row = pl.BlockSpec((tm, D), lambda i: (i, 0))

    def full(shape):
        return pl.BlockSpec(shape, lambda i: (0, 0))

    out_sd = jax.ShapeDtypeStruct((M, D), jnp.bfloat16)
    return pl.pallas_call(
        qkv_proj_kernel,
        out_shape=(out_sd, out_sd, out_sd),
        grid=(M // tm,),
        in_specs=[row, full((1, D)), full((1, D)),
                  full((D, 3 * D)), full((1, 3 * D))],
        out_specs=(row, row, row),
        compiler_params=_compiler_params(("parallel",)),
    )(x2d, gamma, beta, wqkv, bqkv)


# ----------------------------------------------------------------------------
# Kernel B: attention core + out-projection + residual, grid = (B, S // tq)
#   acc[tq, D] starts as residual + bo; each head adds (softmax(q k^T) v) @ wo_h.
# ----------------------------------------------------------------------------
def attn_core_kernel(x_ref, madd_ref, q_ref, k_ref, v_ref, wo_ref, bo_ref, o_ref,
                     *, n_heads):
    d = x_ref.shape[-1]
    dh = d // n_heads
    madd = madd_ref[...]                                      # [1, S] additive mask
    acc = x_ref[...] + bo_ref[...]                            # residual + out-proj bias

    # TODO(synk): for production head dims (<128 lanes), pad dh to 128 or process
    # head pairs so the per-head lane slices below become tile-aligned views.
    for h in range(n_heads):
        lo = h * dh
        qh = q_ref[:, lo:lo + dh]                             # bf16 [tq, dh]
        kh = k_ref[:, lo:lo + dh]                             # bf16 [S, dh]
        vh = v_ref[:, lo:lo + dh]                             # bf16 [S, dh]
        # Q @ K^T without an explicit transpose (contract feature dim of both).
        s = lax.dot_general(qh, kh, (((1,), (1,)), ((), ())),
                            preferred_element_type=jnp.float32)          # [tq, S]
        s = s + madd
        s = s - jnp.max(s, axis=-1, keepdims=True)
        p = jnp.exp(s)
        p = p * pl.reciprocal(jnp.sum(p, axis=-1, keepdims=True), approx=True)
        ho = jnp.dot(p.astype(jnp.bfloat16), vh,
                     preferred_element_type=jnp.float32)                 # [tq, dh]
        acc = acc + jnp.dot(ho.astype(jnp.bfloat16), wo_ref[lo:lo + dh, :],
                            preferred_element_type=jnp.float32)          # [tq, D]

    o_ref[...] = acc


def attention_sublayer(x, mask_add, lp, n_heads):
    B, S, D = x.shape
    q, k, v = qkv_projection(x.reshape(B * S, D), lp["ln1_g"], lp["ln1_b"],
                             lp["wqkv"], lp["bqkv"])
    q = q.reshape(B, S, D)
    k = k.reshape(B, S, D)
    v = v.reshape(B, S, D)

    tq = _pick_tile(S, (256, 128))
    act_tile = pl.BlockSpec((pl.Squeezed(), tq, D), lambda b, i: (b, i, 0))
    seq_full = pl.BlockSpec((pl.Squeezed(), S, D), lambda b, i: (b, 0, 0))
    mask_spec = pl.BlockSpec((pl.Squeezed(), 1, S), lambda b, i: (b, 0, 0))

    def full(shape):
        return pl.BlockSpec(shape, lambda b, i: (0, 0))

    return pl.pallas_call(
        functools.partial(attn_core_kernel, n_heads=n_heads),
        out_shape=jax.ShapeDtypeStruct((B, S, D), x.dtype),
        grid=(B, S // tq),
        in_specs=[act_tile,              # residual x tile (f32)
                  mask_spec,             # additive mask [1, S]
                  act_tile,              # q tile (bf16)
                  seq_full, seq_full,    # k, v full sequence (bf16, resident per b)
                  full((D, D)),          # wo (bf16)
                  full((1, D))],         # bo (f32)
        out_specs=act_tile,
        compiler_params=_compiler_params(("parallel", "parallel")),
    )(x, mask_add, q, k, v, lp["wo"], lp["bo"])


# ----------------------------------------------------------------------------
# Kernel C: FFN sublayer (+ optional fused final LayerNorm)
#   grid = (rows, DFF chunks), accumulator in VMEM scratch, LN2 cached in bf16.
# ----------------------------------------------------------------------------
def ffn_kernel(x_ref, g_ref, b_ref, w1_ref, b1_ref, w2_ref, b2_ref, gf_ref, bf_ref,
               o_ref, acc_ref, xn_ref, *, final_ln):
    k = pl.program_id(1)

    @pl.when(k == 0)
    def _():
        x = x_ref[...]                                        # [tm, D] f32
        xn_ref[...] = _layernorm(x, g_ref[...], b_ref[...]).astype(jnp.bfloat16)
        acc_ref[...] = x + b2_ref[...]                        # residual + W2 bias

    h = jnp.dot(xn_ref[...], w1_ref[...],
                preferred_element_type=jnp.float32) + b1_ref[...]        # [tm, tdff]
    h = jnp.maximum(h, 0.0)
    acc_ref[...] += jnp.dot(h.astype(jnp.bfloat16), w2_ref[...],
                            preferred_element_type=jnp.float32)          # [tm, D]

    @pl.when(k == pl.num_programs(1) - 1)
    def _():
        out = acc_ref[...]
        if final_ln:                                          # encoder's final norm
            out = _layernorm(out, gf_ref[...], bf_ref[...])
        o_ref[...] = out


def ffn_sublayer(x2d, lp, final_g, final_b, final_ln):
    M, D = x2d.shape
    DFF = lp["w1"].shape[1]
    tm = _pick_tile(M, (1024, 512, 256, 128))
    tdff = _pick_tile(DFF, (1024, 512, 256))

    row = pl.BlockSpec((tm, D), lambda i, k: (i, 0))

    def full(shape):
        return pl.BlockSpec(shape, lambda i, k: (0, 0))

    return pl.pallas_call(
        functools.partial(ffn_kernel, final_ln=final_ln),
        out_shape=jax.ShapeDtypeStruct((M, D), x2d.dtype),
        grid=(M // tm, DFF // tdff),
        in_specs=[row,
                  full((1, D)), full((1, D)),                       # ln2 gamma/beta
                  pl.BlockSpec((D, tdff), lambda i, k: (0, k)),     # w1 chunk
                  pl.BlockSpec((1, tdff), lambda i, k: (0, k)),     # b1 chunk
                  pl.BlockSpec((tdff, D), lambda i, k: (k, 0)),     # w2 chunk
                  full((1, D)),                                     # b2
                  full((1, D)), full((1, D))],                      # final-LN gamma/beta
        out_specs=row,
        scratch_shapes=[pltpu.VMEM((tm, D), jnp.float32),           # accumulator
                        pltpu.VMEM((tm, D), jnp.bfloat16)],         # LN2(x) cache
        compiler_params=_compiler_params(("parallel", "arbitrary")),
    )(x2d, lp["ln2_g"], lp["ln2_b"], lp["w1"], lp["b1"], lp["w2"], lp["b2"],
      final_g, final_b)


# ----------------------------------------------------------------------------
# Encoder forward: Python-unrolled layer loop (no lax.scan weight slicing)
# ----------------------------------------------------------------------------
def encoder_forward(x, mask, params, n_heads):
    B, S, D = x.shape
    # Precompute the additive mask once (0 where attended, -1e9 where masked).
    mask_add = jnp.where(mask == 0, jnp.float32(NEG_INF), jnp.float32(0.0))

    n_layers = len(params["layers"])
    h = x
    for li, lp in enumerate(params["layers"]):
        h = attention_sublayer(h, mask_add, lp, n_heads)
        h = ffn_sublayer(h.reshape(B * S, D), lp,
                         params["ln_g"], params["ln_b"],
                         final_ln=(li == n_layers - 1)).reshape(B, S, D)
    return h


# ----------------------------------------------------------------------------
# Deterministic parameter construction (weights stored bf16 for MXU/HBM)
# ----------------------------------------------------------------------------
def make_params(key, n_layers, d_model, d_ff, n_heads):
    dh = d_model // n_heads
    q_scale = 1.0 / math.sqrt(dh)

    def one_layer(k):
        ks = jax.random.split(k, 6)
        wq = 0.05 * jax.random.normal(ks[0], (d_model, d_model), jnp.float32)
        wk = 0.05 * jax.random.normal(ks[1], (d_model, d_model), jnp.float32)
        wv = 0.05 * jax.random.normal(ks[2], (d_model, d_model), jnp.float32)
        wo = 0.05 * jax.random.normal(ks[3], (d_model, d_model), jnp.float32)
        w1 = 0.05 * jax.random.normal(ks[4], (d_model, d_ff), jnp.float32)
        w2 = 0.05 * jax.random.normal(ks[5], (d_ff, d_model), jnp.float32)
        # 1/sqrt(d_k) folded into the Q columns of the fused QKV weight (Q bias is
        # zero here; a nonzero Q bias would be scaled the same way).
        wqkv = jnp.concatenate([wq * q_scale, wk, wv], axis=1).astype(jnp.bfloat16)
        return {
            "wqkv": wqkv,
            "bqkv": jnp.zeros((1, 3 * d_model), jnp.float32),
            "wo": wo.astype(jnp.bfloat16),
            "bo": jnp.zeros((1, d_model), jnp.float32),
            "w1": w1.astype(jnp.bfloat16),
            "b1": jnp.zeros((1, d_ff), jnp.float32),
            "w2": w2.astype(jnp.bfloat16),
            "b2": jnp.zeros((1, d_model), jnp.float32),
            "ln1_g": jnp.ones((1, d_model), jnp.float32),
            "ln1_b": jnp.zeros((1, d_model), jnp.float32),
            "ln2_g": jnp.ones((1, d_model), jnp.float32),
            "ln2_b": jnp.zeros((1, d_model), jnp.float32),
        }

    layer_keys = jax.random.split(key, n_layers)
    return {"layers": [one_layer(k) for k in layer_keys],
            "ln_g": jnp.ones((1, d_model), jnp.float32),
            "ln_b": jnp.zeros((1, d_model), jnp.float32)}


# ----------------------------------------------------------------------------
if __name__ == "__main__":
    B, S, D, H, DFF, N_LAYERS = 2, 8, 32, 4, 64, 2

    root = jax.random.PRNGKey(0)
    k_x, k_p = jax.random.split(root)

    x = jax.random.normal(k_x, (B, S, D), jnp.float32)
    # src mask [B, 1, S]: mask out the last 2 positions of batch element 1.
    mask = jnp.ones((B, 1, S), jnp.float32)
    mask = mask.at[1, 0, S - 2:].set(0.0)

    params = make_params(k_p, N_LAYERS, D, DFF, H)

    fwd = jax.jit(functools.partial(encoder_forward, n_heads=H))
    out = jax.block_until_ready(fwd(x, mask, params))

    assert out.shape == (B, S, D) and out.dtype == jnp.float32
    assert bool(jnp.all(jnp.isfinite(out)))
    print("KERNEL_OK")
</pallas_src>

<mosaic_0001>
module attributes {stable_mosaic.version = 11 : i64} {
  func.func @qkv_proj_kernel(%arg0: i32, %arg1: memref<16x32xf32, #tpu.memory_space<vmem>>, %arg2: memref<1x32xf32, #tpu.memory_space<vmem>>, %arg3: memref<1x32xf32, #tpu.memory_space<vmem>>, %arg4: memref<32x96xbf16, #tpu.memory_space<vmem>>, %arg5: memref<1x96xf32, #tpu.memory_space<vmem>>, %arg6: memref<16x32xbf16, #tpu.memory_space<vmem>>, %arg7: memref<16x32xbf16, #tpu.memory_space<vmem>>, %arg8: memref<16x32xbf16, #tpu.memory_space<vmem>>) attributes {dimension_semantics = [#tpu.dimension_semantics<parallel>], iteration_bounds = array<i64: 1>, scalar_prefetch = 0 : i64, scratch_operands = 0 : i64, tpu.core_type = #tpu.core_type<tc>, window_params = [{transform_indices = @transform_0, window_bounds = array<i64: 16, 32>}, {pipeline_mode = #tpu.pipeline_mode<synchronous>, transform_indices = @transform_1, window_bounds = array<i64: 1, 32>}, {pipeline_mode = #tpu.pipeline_mode<synchronous>, transform_indices = @transform_2, window_bounds = array<i64: 1, 32>}, {pipeline_mode = #tpu.pipeline_mode<synchronous>, transform_indices = @transform_3, window_bounds = array<i64: 32, 96>}, {pipeline_mode = #tpu.pipeline_mode<synchronous>, transform_indices = @transform_4, window_bounds = array<i64: 1, 96>}, {transform_indices = @transform_5, window_bounds = array<i64: 16, 32>}, {transform_indices = @transform_6, window_bounds = array<i64: 16, 32>}, {transform_indices = @transform_7, window_bounds = array<i64: 16, 32>}]} {
    %c0 = arith.constant 0 : index
    %c0_0 = arith.constant 0 : index
    %0 = vector.load %arg1[%c0, %c0_0] : memref<16x32xf32, #tpu.memory_space<vmem>>, vector<16x32xf32>
    %c0_1 = arith.constant 0 : index
    %c0_2 = arith.constant 0 : index
    %1 = vector.load %arg2[%c0_1, %c0_2] : memref<1x32xf32, #tpu.memory_space<vmem>>, vector<1x32xf32>
    %c0_3 = arith.constant 0 : index
    %c0_4 = arith.constant 0 : index
    %2 = vector.load %arg3[%c0_3, %c0_4] : memref<1x32xf32, #tpu.memory_space<vmem>>, vector<1x32xf32>
    %cst = arith.constant dense<0.000000e+00> : vector<16xf32>
    %3 = vector.multi_reduction <add>, %0, %cst [1] : vector<16x32xf32> to vector<16xf32>
    %4 = vector.shape_cast %3 : vector<16xf32> to vector<16x1xf32>
    %cst_5 = arith.constant 3.200000e+01 : f32
    %5 = vector.broadcast %cst_5 : f32 to vector<16x1xf32>
    %6 = arith.divf %4, %5 : vector<16x1xf32>
    %7 = vector.broadcast %6 : vector<16x1xf32> to vector<16x32xf32>
    %8 = arith.subf %0, %7 : vector<16x32xf32>
    %9 = arith.mulf %8, %8 : vector<16x32xf32>
    %cst_6 = arith.constant dense<0.000000e+00> : vector<16xf32>
    %10 = vector.multi_reduction <add>, %9, %cst_6 [1] : vector<16x32xf32> to vector<16xf32>
    %11 = vector.shape_cast %10 : vector<16xf32> to vector<16x1xf32>
    %cst_7 = arith.constant 3.100000e+01 : f32
    %12 = vector.broadcast %cst_7 : f32 to vector<16x1xf32>
    %13 = arith.divf %11, %12 : vector<16x1xf32>
    %14 = vector.broadcast %1 : vector<1x32xf32> to vector<16x32xf32>
    %15 = arith.mulf %14, %8 : vector<16x32xf32>
    %16 = math.sqrt %13 : vector<16x1xf32>
    %cst_8 = arith.constant 9.99999997E-7 : f32
    %17 = vector.broadcast %cst_8 : f32 to vector<16x1xf32>
    %18 = arith.addf %16, %17 : vector<16x1xf32>
    %19 = vector.broadcast %18 : vector<16x1xf32> to vector<16x32xf32>
    %20 = arith.divf %15, %19 : vector<16x32xf32>
    %21 = vector.broadcast %2 : vector<1x32xf32> to vector<16x32xf32>
    %22 = arith.addf %20, %21 : vector<16x32xf32>
    %23 = arith.truncf %22 : vector<16x32xf32> to vector<16x32xbf16>
    %c0_9 = arith.constant 0 : index
    %c0_10 = arith.constant 0 : index
    %24 = vector.load %arg4[%c0_9, %c0_10] : memref<32x96xbf16, #tpu.memory_space<vmem>>, vector<32x96xbf16>
    %cst_11 = arith.constant dense<0.000000e+00> : vector<16x96xf32>
    %25 = tpu.matmul %23, %24, %cst_11 {dimension_numbers = #tpu.dot_dimension_numbers<[1], [0], [0], [1], [0, 0, 1, 1], [], []>} : vector<16x32xbf16>, vector<32x96xbf16>, vector<16x96xf32> -> vector<16x96xf32>
    %c0_12 = arith.constant 0 : index
    %c0_13 = arith.constant 0 : index
    %26 = vector.load %arg5[%c0_12, %c0_13] : memref<1x96xf32, #tpu.memory_space<vmem>>, vector<1x96xf32>
    %27 = vector.broadcast %26 : vector<1x96xf32> to vector<16x96xf32>
    %28 = arith.addf %25, %27 : vector<16x96xf32>
    %29 = vector.extract_strided_slice %28 {offsets = [0, 0], sizes = [16, 32], strides = [1, 1]} : vector<16x96xf32> to vector<16x32xf32>
    %30 = arith.truncf %29 : vector<16x32xf32> to vector<16x32xbf16>
    %c0_14 = arith.constant 0 : index
    %c0_15 = arith.constant 0 : index
    %31 = vector.load %arg6[%c0_14, %c0_15] : memref<16x32xbf16, #tpu.memory_space<vmem>>, vector<16x32xbf16>
    tpu.vector_store %arg6[%c0_14, %c0_15], %30 {strides = array<i32>} : memref<16x32xbf16, #tpu.memory_space<vmem>>, vector<16x32xbf16>,
    %32 = vector.extract_strided_slice %28 {offsets = [0, 32], sizes = [16, 32], strides = [1, 1]} : vector<16x96xf32> to vector<16x32xf32>
    %33 = arith.truncf %32 : vector<16x32xf32> to vector<16x32xbf16>
    %c0_16 = arith.constant 0 : index
    %c0_17 = arith.constant 0 : index
    %34 = vector.load %arg7[%c0_16, %c0_17] : memref<16x32xbf16, #tpu.memory_space<vmem>>, vector<16x32xbf16>
    tpu.vector_store %arg7[%c0_16, %c0_17], %33 {strides = array<i32>} : memref<16x32xbf16, #tpu.memory_space<vmem>>, vector<16x32xbf16>,
    %35 = vector.extract_strided_slice %28 {offsets = [0, 64], sizes = [16, 32], strides = [1, 1]} : vector<16x96xf32> to vector<16x32xf32>
    %36 = arith.truncf %35 : vector<16x32xf32> to vector<16x32xbf16>
    %c0_18 = arith.constant 0 : index
    %c0_19 = arith.constant 0 : index
    %37 = vector.load %arg8[%c0_18, %c0_19] : memref<16x32xbf16, #tpu.memory_space<vmem>>, vector<16x32xbf16>
    tpu.vector_store %arg8[%c0_18, %c0_19], %36 {strides = array<i32>} : memref<16x32xbf16, #tpu.memory_space<vmem>>, vector<16x32xbf16>,
    return
  }
  func.func @transform_0(%arg0: i32) -> (i32, i32) {
    %c0_i32 = arith.constant 0 : i32
    %c0_i32_0 = arith.constant 0 : i32
    return %arg0, %c0_i32 : i32, i32
  }
  func.func @transform_1(%arg0: i32) -> (i32, i32) {
    %c0_i32 = arith.constant 0 : i32
    %c0_i32_0 = arith.constant 0 : i32
    %c0_i32_1 = arith.constant 0 : i32
    return %c0_i32, %c0_i32_0 : i32, i32
  }
  func.func @transform_2(%arg0: i32) -> (i32, i32) {
    %c0_i32 = arith.constant 0 : i32
    %c0_i32_0 = arith.constant 0 : i32
    %c0_i32_1 = arith.constant 0 : i32
    return %c0_i32, %c0_i32_0 : i32, i32
  }
  func.func @transform_3(%arg0: i32) -> (i32, i32) {
    %c0_i32 = arith.constant 0 : i32
    %c0_i32_0 = arith.constant 0 : i32
    %c0_i32_1 = arith.constant 0 : i32
    return %c0_i32, %c0_i32_0 : i32, i32
  }
  func.func @transform_4(%arg0: i32) -> (i32, i32) {
    %c0_i32 = arith.constant 0 : i32
    %c0_i32_0 = arith.constant 0 : i32
    %c0_i32_1 = arith.constant 0 : i32
    return %c0_i32, %c0_i32_0 : i32, i32
  }
  func.func @transform_5(%arg0: i32) -> (i32, i32) {
    %c0_i32 = arith.constant 0 : i32
    %c0_i32_0 = arith.constant 0 : i32
    return %arg0, %c0_i32 : i32, i32
  }
  func.func @transform_6(%arg0: i32) -> (i32, i32) {
    %c0_i32 = arith.constant 0 : i32
    %c0_i32_0 = arith.constant 0 : i32
    return %arg0, %c0_i32 : i32, i32
  }
  func.func @transform_7(%arg0: i32) -> (i32, i32) {
    %c0_i32 = arith.constant 0 : i32
    %c0_i32_0 = arith.constant 0 : i32
    return %arg0, %c0_i32 : i32, i32
  }
}

module attributes {stable_mosaic.version = 11 : i64} {
  func.func @attn_core_kernel(%arg0: i32, %arg1: i32, %arg2: memref<1x8x32xf32, #tpu.memory_space<vmem>>, %arg3: memref<1x1x8xf32, #tpu.memory_space<vmem>>, %arg4: memref<1x8x32xbf16, #tpu.memory_space<vmem>>, %arg5: memref<1x8x32xbf16, #tpu.memory_space<vmem>>, %arg6: memref<1x8x32xbf16, #tpu.memory_space<vmem>>, %arg7: memref<32x32xbf16, #tpu.memory_space<vmem>>, %arg8: memref<1x32xf32, #tpu.memory_space<vmem>>, %arg9: memref<1x8x32xf32, #tpu.memory_space<vmem>>) attributes {dimension_semantics = [#tpu.dimension_semantics<parallel>, #tpu.dimension_semantics<parallel>], iteration_bounds = array<i64: 2, 1>, scalar_prefetch = 0 : i64, scratch_operands = 0 : i64, tpu.core_type = #tpu.core_type<tc>, window_params = [{transform_indices = @transform_0, window_bounds = array<i64: 1, 8, 32>}, {transform_indices = @transform_1, window_bounds = array<i64: 1, 1, 8>}, {transform_indices = @transform_2, window_bounds = array<i64: 1, 8, 32>}, {transform_indices = @transform_3, window_bounds = array<i64: 1, 8, 32>}, {transform_indices = @transform_4, window_bounds = array<i64: 1, 8, 32>}, {pipeline_mode = #tpu.pipeline_mode<synchronous>, transform_indices = @transform_5, window_bounds = array<i64: 32, 32>}, {pipeline_mode = #tpu.pipeline_mode<synchronous>, transform_indices = @transform_6, window_bounds = array<i64: 1, 32>}, {transform_indices = @transform_7, window_bounds = array<i64: 1, 8, 32>}]} {
    %c0 = arith.constant 0 : index
    %c0_0 = arith.constant 0 : index
    %c0_1 = arith.constant 0 : index
    %0 = vector.load %arg3[%c0, %c0_0, %c0_1] : memref<1x1x8xf32, #tpu.memory_space<vmem>>, vector<1x1x8xf32>
    %1 = vector.shape_cast %0 : vector<1x1x8xf32> to vector<1x8xf32>
    %c0_2 = arith.constant 0 : index
    %c0_3 = arith.constant 0 : index
    %c0_4 = arith.constant 0 : index
    %2 = vector.load %arg2[%c0_2, %c0_3, %c0_4] : memref<1x8x32xf32, #tpu.memory_space<vmem>>, vector<1x8x32xf32>
    %3 = vector.shape_cast %2 : vector<1x8x32xf32> to vector<8x32xf32>
    %c0_5 = arith.constant 0 : index
    %c0_6 = arith.constant 0 : index
    %4 = vector.load %arg8[%c0_5, %c0_6] : memref<1x32xf32, #tpu.memory_space<vmem>>, vector<1x32xf32>
    %5 = vector.broadcast %4 : vector<1x32xf32> to vector<8x32xf32>
    %6 = arith.addf %3, %5 : vector<8x32xf32>
    %c0_7 = arith.constant 0 : index
    %c0_8 = arith.constant 0 : index
    %c0_9 = arith.constant 0 : index
    %7 = vector.load %arg4[%c0_7, %c0_8, %c0_9] : memref<1x8x32xbf16, #tpu.memory_space<vmem>>, vector<1x8x8xbf16>
    %8 = vector.shape_cast %7 : vector<1x8x8xbf16> to vector<8x8xbf16>
    %c0_10 = arith.constant 0 : index
    %c0_11 = arith.constant 0 : index
    %c0_12 = arith.constant 0 : index
    %9 = vector.load %arg5[%c0_10, %c0_11, %c0_12] : memref<1x8x32xbf16, #tpu.memory_space<vmem>>, vector<1x8x8xbf16>
    %10 = vector.shape_cast %9 : vector<1x8x8xbf16> to vector<8x8xbf16>
    %c0_13 = arith.constant 0 : index
    %c0_14 = arith.constant 0 : index
    %c0_15 = arith.constant 0 : index
    %11 = vector.load %arg6[%c0_13, %c0_14, %c0_15] : memref<1x8x32xbf16, #tpu.memory_space<vmem>>, vector<1x8x8xbf16>
    %12 = vector.shape_cast %11 : vector<1x8x8xbf16> to vector<8x8xbf16>
    %cst = arith.constant dense<0.000000e+00> : vector<8x8xf32>
    %13 = tpu.matmul %8, %10, %cst {dimension_numbers = #tpu.dot_dimension_numbers<[1], [1], [0], [0], [0, 0, 1, 0], [], []>} : vector<8x8xbf16>, vector<8x8xbf16>, vector<8x8xf32> -> vector<8x8xf32>
    %14 = vector.broadcast %1 : vector<1x8xf32> to vector<8x8xf32>
    %15 = arith.addf %13, %14 : vector<8x8xf32>
    %cst_16 = arith.constant dense<0xFF800000> : vector<8xf32>
    %16 = vector.multi_reduction <maximumf>, %15, %cst_16 [1] : vector<8x8xf32> to vector<8xf32>
    %17 = vector.shape_cast %16 : vector<8xf32> to vector<8x1xf32>
    %18 = vector.broadcast %17 : vector<8x1xf32> to vector<8x8xf32>
    %19 = arith.subf %15, %18 : vector<8x8xf32>
    %20 = math.exp %19 : vector<8x8xf32>
    %cst_17 = arith.constant dense<0.000000e+00> : vector<8xf32>
    %21 = vector.multi_reduction <add>, %20, %cst_17 [1] : vector<8x8xf32> to vector<8xf32>
    %22 = vector.shape_cast %21 : vector<8xf32> to vector<8x1xf32>
    %23 = tpu.reciprocal %22 {approx = true} : vector<8x1xf32> -> vector<8x1xf32>
    %24 = vector.broadcast %23 : vector<8x1xf32> to vector<8x8xf32>
    %25 = arith.mulf %20, %24 : vector<8x8xf32>
    %26 = arith.truncf %25 : vector<8x8xf32> to vector<8x8xbf16>
    %cst_18 = arith.constant dense<0.000000e+00> : vector<8x8xf32>
    %27 = tpu.matmul %26, %12, %cst_18 {dimension_numbers = #tpu.dot_dimension_numbers<[1], [0], [0], [1], [0, 0, 1, 1], [], []>} : vector<8x8xbf16>, vector<8x8xbf16>, vector<8x8xf32> -> vector<8x8xf32>
    %28 = arith.truncf %27 : vector<8x8xf32> to vector<8x8xbf16>
    %c0_19 = arith.constant 0 : index
    %c0_20 = arith.constant 0 : index
    %29 = vector.load %arg7[%c0_19, %c0_20] : memref<32x32xbf16, #tpu.memory_space<vmem>>, vector<8x32xbf16>
    %cst_21 = arith.constant dense<0.000000e+00> : vector<8x32xf32>
    %30 = tpu.matmul %28, %29, %cst_21 {dimension_numbers = #tpu.dot_dimension_numbers<[1], [0], [0], [1], [0, 0, 1, 1], [], []>} : vector<8x8xbf16>, vector<8x32xbf16>, vector<8x32xf32> -> vector<8x32xf32>
    %31 = arith.addf %6, %30 : vector<8x32xf32>
    %c0_22 = arith.constant 0 : index
    %c0_23 = arith.constant 0 : index
    %c8 = arith.constant 8 : index
    %32 = vector.load %arg4[%c0_22, %c0_23, %c8] : memref<1x8x32xbf16, #tpu.memory_space<vmem>>, vector<1x8x8xbf16>
    %33 = vector.shape_cast %32 : vector<1x8x8xbf16> to vector<8x8xbf16>
    %c0_24 = arith.constant 0 : index
    %c0_25 = arith.constant 0 : index
    %c8_26 = arith.constant 8 : index
    %34 = vector.load %arg5[%c0_24, %c0_25, %c8_26] : memref<1x8x32xbf16, #tpu.memory_space<vmem>>, vector<1x8x8xbf16>
    %35 = vector.shape_cast %34 : vector<1x8x8xbf16> to vector<8x8xbf16>
    %c0_27 = arith.constant 0 : index
    %c0_28 = arith.constant 0 : index
    %c8_29 = arith.constant 8 : index
    %36 = vector.load %arg6[%c0_27, %c0_28, %c8_29] : memref<1x8x32xbf16, #tpu.memory_space<vmem>>, vector<1x8x8xbf16>
    %37 = vector.shape_cast %36 : vector<1x8x8xbf16> to vector<8x8xbf16>
    %cst_30 = arith.constant dense<0.000000e+00> : vector<8x8xf32>
    %38 = tpu.matmul %33, %35, %cst_30 {dimension_numbers = #tpu.dot_dimension_numbers<[1], [1], [0], [0], [0, 0, 1, 0], [], []>} : vector<8x8xbf16>, vector<8x8xbf16>, vector<8x8xf32> -> vector<8x8xf32>
    %39 = vector.broadcast %1 : vector<1x8xf32> to vector<8x8xf32>
    %40 = arith.addf %38, %39 : vector<8x8xf32>
    %cst_31 = arith.constant dense<0xFF800000> : vector<8xf32>
    %41 = vector.multi_reduction <maximumf>, %40, %cst_31 [1] : vector<8x8xf32> to vector<8xf32>
    %42 = vector.shape_cast %41 : vector<8xf32> to vector<8x1xf32>
    %43 = vector.broadcast %42 : vector<8x1xf32> to vector<8x8xf32>
    %44 = arith.subf %40, %43 : vector<8x8xf32>
    %45 = math.exp %44 : vector<8x8xf32>
    %cst_32 = arith.constant dense<0.000000e+00> : vector<8xf32>
    %46 = vector.multi_reduction <add>, %45, %cst_32 [1] : vector<8x8xf32> to vector<8xf32>
    %47 = vector.shape_cast %46 : vector<8xf32> to vector<8x1xf32>
    %48 = tpu.reciprocal %47 {approx = true} : vector<8x1xf32> -> vector<8x1xf32>
    %49 = vector.broadcast %48 : vector<8x1xf32> to vector<8x8xf32>
    %50 = arith.mulf %45, %49 : vector<8x8xf32>
    %51 = arith.truncf %50 : vector<8x8xf32> to vector<8x8xbf16>
    %cst_33 = arith.constant dense<0.000000e+00> : vector<8x8xf32>
    %52 = tpu.matmul %51, %37, %cst_33 {dimension_numbers = #tpu.dot_dimension_numbers<[1], [0], [0], [1], [0, 0, 1, 1], [], []>} : vector<8x8xbf16>, vector<8x8xbf16>, vector<8x8xf32> -> vector<8x8xf32>
    %53 = arith.truncf %52 : vector<8x8xf32> to vector<8x8xbf16>
    %c8_34 = arith.constant 8 : index
    %c0_35 = arith.constant 0 : index
    %54 = vector.load %arg7[%c8_34, %c0_35] : memref<32x32xbf16, #tpu.memory_space<vmem>>, vector<8x32xbf16>
    %cst_36 = arith.constant dense<0.000000e+00> : vector<8x32xf32>
    %55 = tpu.matmul %53, %54, %cst_36 {dimension_numbers = #tpu.dot_dimension_numbers<[1], [0], [0], [1], [0, 0, 1, 1], [], []>} : vector<8x8xbf16>, vector<8x32xbf16>, vector<8x32xf32> -> vector<8x32xf32>
    %56 = arith.addf %31, %55 : vector<8x32xf32>
    %c0_37 = arith.constant 0 : index
    %c0_38 = arith.constant 0 : index
    %c16 = arith.constant 16 : index
    %57 = vector.load %arg4[%c0_37, %c0_38, %c16] : memref<1x8x32xbf16, #tpu.memory_space<vmem>>, vector<1x8x8xbf16>
    %58 = vector.shape_cast %57 : vector<1x8x8xbf16> to vector<8x8xbf16>
    %c0_39 = arith.constant 0 : index
    %c0_40 = arith.constant 0 : index
    %c16_41 = arith.constant 16 : index
    %59 = vector.load %arg5[%c0_39, %c0_40, %c16_41] : memref<1x8x32xbf16, #tpu.memory_space<vmem>>, vector<1x8x8xbf16>
    %60 = vector.shape_cast %59 : vector<1x8x8xbf16> to vector<8x8xbf16>
    %c0_42 = arith.constant 0 : index
    %c0_43 = arith.constant 0 : index
    %c16_44 = arith.constant 16 : index
    %61 = vector.load %arg6[%c0_42, %c0_43, %c16_44] : memref<1x8x32xbf16, #tpu.memory_space<vmem>>, vector<1x8x8xbf16>
    %62 = vector.shape_cast %61 : vector<1x8x8xbf16> to vector<8x8xbf16>
    %cst_45 = arith.constant dense<0.000000e+00> : vector<8x8xf32>
    %63 = tpu.matmul %58, %60, %cst_45 {dimension_numbers = #tpu.dot_dimension_numbers<[1], [1], [0], [0], [0, 0, 1, 0], [], []>} : vector<8x8xbf16>, vector<8x8xbf16>, vector<8x8xf32> -> vector<8x8xf32>
    %64 = vector.broadcast %1 : vector<1x8xf32> to vector<8x8xf32>
    %65 = arith.addf %63, %64 : vector<8x8xf32>
    %cst_46 = arith.constant dense<0xFF800000> : vector<8xf32>
    %66 = vector.multi_reduction <maximumf>, %65, %cst_46 [1] : vector<8x8xf32> to vector<8xf32>
    %67 = vector.shape_cast %66 : vector<8xf32> to vector<8x1xf32>
    %68 = vector.broadcast %67 : vector<8x1xf32> to vector<8x8xf32>
    %69 = arith.subf %65, %68 : vector<8x8xf32>
    %70 = math.exp %69 : vector<8x8xf32>
    %cst_47 = arith.constant dense<0.000000e+00> : vector<8xf32>
    %71 = vector.multi_reduction <add>, %70, %cst_47 [1] : vector<8x8xf32> to vector<8xf32>
    %72 = vector.shape_cast %71 : vector<8xf32> to vector<8x1xf32>
    %73 = tpu.reciprocal %72 {approx = true} : vector<8x1xf32> -> vector<8x1xf32>
    %74 = vector.broadcast %73 : vector<8x1xf32> to vector<8x8xf32>
    %75 = arith.mulf %70, %74 : vector<8x8xf32>
    %76 = arith.truncf %75 : vector<8x8xf32> to vector<8x8xbf16>
    %cst_48 = arith.constant dense<0.000000e+00> : vector<8x8xf32>
    %77 = tpu.matmul %76, %62, %cst_48 {dimension_numbers = #tpu.dot_dimension_numbers<[1], [0], [0], [1], [0, 0, 1, 1], [], []>} : vector<8x8xbf16>, vector<8x8xbf16>, vector<8x8xf32> -> vector<8x8xf32>
    %78 = arith.truncf %77 : vector<8x8xf32> to vector<8x8xbf16>
    %c16_49 = arith.constant 16 : index
    %c0_50 = arith.constant 0 : index
    %79 = vector.load %arg7[%c16_49, %c0_50] : memref<32x32xbf16, #tpu.memory_space<vmem>>, vector<8x32xbf16>
    %cst_51 = arith.constant dense<0.000000e+00> : vector<8x32xf32>
    %80 = tpu.matmul %78, %79, %cst_51 {dimension_numbers = #tpu.dot_dimension_numbers<[1], [0], [0], [1], [0, 0, 1, 1], [], []>} : vector<8x8xbf16>, vector<8x32xbf16>, vector<8x32xf32> -> vector<8x32xf32>
    %81 = arith.addf %56, %80 : vector<8x32xf32>
    %c0_52 = arith.constant 0 : index
    %c0_53 = arith.constant 0 : index
    %c24 = arith.constant 24 : index
    %82 = vector.load %arg4[%c0_52, %c0_53, %c24] : memref<1x8x32xbf16, #tpu.memory_space<vmem>>, vector<1x8x8xbf16>
    %83 = vector.shape_cast %82 : vector<1x8x8xbf16> to vector<8x8xbf16>
    %c0_54 = arith.constant 0 : index
    %c0_55 = arith.constant 0 : index
    %c24_56 = arith.constant 24 : index
    %84 = vector.load %arg5[%c0_54, %c0_55, %c24_56] : memref<1x8x32xbf16, #tpu.memory_space<vmem>>, vector<1x8x8xbf16>
    %85 = vector.shape_cast %84 : vector<1x8x8xbf16> to vector<8x8xbf16>
    %c0_57 = arith.constant 0 : index
    %c0_58 = arith.constant 0 : index
    %c24_59 = arith.constant 24 : index
    %86 = vector.load %arg6[%c0_57, %c0_58, %c24_59] : memref<1x8x32xbf16, #tpu.memory_space<vmem>>, vector<1x8x8xbf16>
    %87 = vector.shape_cast %86 : vector<1x8x8xbf16> to vector<8x8xbf16>
    %cst_60 = arith.constant dense<0.000000e+00> : vector<8x8xf32>
    %88 = tpu.matmul %83, %85, %cst_60 {dimension_numbers = #tpu.dot_dimension_numbers<[1], [1], [0], [0], [0, 0, 1, 0], [], []>} : vector<8x8xbf16>, vector<8x8xbf16>, vector<8x8xf32> -> vector<8x8xf32>
    %89 = vector.broadcast %1 : vector<1x8xf32> to vector<8x8xf32>
    %90 = arith.addf %88, %89 : vector<8x8xf32>
    %cst_61 = arith.constant dense<0xFF800000> : vector<8xf32>
    %91 = vector.multi_reduction <maximumf>, %90, %cst_61 [1] : vector<8x8xf32> to vector<8xf32>
    %92 = vector.shape_cast %91 : vector<8xf32> to vector<8x1xf32>
    %93 = vector.broadcast %92 : vector<8x1xf32> to vector<8x8xf32>
    %94 = arith.subf %90, %93 : vector<8x8xf32>
    %95 = math.exp %94 : vector<8x8xf32>
    %cst_62 = arith.constant dense<0.000000e+00> : vector<8xf32>
    %96 = vector.multi_reduction <add>, %95, %cst_62 [1] : vector<8x8xf32> to vector<8xf32>
    %97 = vector.shape_cast %96 : vector<8xf32> to vector<8x1xf32>
    %98 = tpu.reciprocal %97 {approx = true} : vector<8x1xf32> -> vector<8x1xf32>
    %99 = vector.broadcast %98 : vector<8x1xf32> to vector<8x8xf32>
    %100 = arith.mulf %95, %99 : vector<8x8xf32>
    %101 = arith.truncf %100 : vector<8x8xf32> to vector<8x8xbf16>
    %cst_63 = arith.constant dense<0.000000e+00> : vector<8x8xf32>
    %102 = tpu.matmul %101, %87, %cst_63 {dimension_numbers = #tpu.dot_dimension_numbers<[1], [0], [0], [1], [0, 0, 1, 1], [], []>} : vector<8x8xbf16>, vector<8x8xbf16>, vector<8x8xf32> -> vector<8x8xf32>
    %103 = arith.truncf %102 : vector<8x8xf32> to vector<8x8xbf16>
    %c24_64 = arith.constant 24 : index
    %c0_65 = arith.constant 0 : index
    %104 = vector.load %arg7[%c24_64, %c0_65] : memref<32x32xbf16, #tpu.memory_space<vmem>>, vector<8x32xbf16>
    %cst_66 = arith.constant dense<0.000000e+00> : vector<8x32xf32>
    %105 = tpu.matmul %103, %104, %cst_66 {dimension_numbers = #tpu.dot_dimension_numbers<[1], [0], [0], [1], [0, 0, 1, 1], [], []>} : vector<8x8xbf16>, vector<8x32xbf16>, vector<8x32xf32> -> vector<8x32xf32>
    %106 = arith.addf %81, %105 : vector<8x32xf32>
    %c0_67 = arith.constant 0 : index
    %c0_68 = arith.constant 0 : index
    %c0_69 = arith.constant 0 : index
    %107 = vector.load %arg9[%c0_67, %c0_68, %c0_69] : memref<1x8x32xf32, #tpu.memory_space<vmem>>, vector<1x8x32xf32>
    %108 = vector.shape_cast %107 : vector<1x8x32xf32> to vector<8x32xf32>
    %109 = vector.shape_cast %106 : vector<8x32xf32> to vector<1x8x32xf32>
    tpu.vector_store %arg9[%c0_67, %c0_68, %c0_69], %109 {strides = array<i32>} : memref<1x8x32xf32, #tpu.memory_space<vmem>>, vector<1x8x32xf32>,
    return
  }
  func.func @transform_0(%arg0: i32, %arg1: i32) -> (i32, i32, i32) {
    %c0_i32 = arith.constant 0 : i32
    %c0_i32_0 = arith.constant 0 : i32
    return %arg0, %arg1, %c0_i32 : i32, i32, i32
  }
  func.func @transform_1(%arg0: i32, %arg1: i32) -> (i32, i32, i32) {
    %c0_i32 = arith.constant 0 : i32
    %c0_i32_0 = arith.constant 0 : i32
    %c0_i32_1 = arith.constant 0 : i32
    return %arg0, %c0_i32, %c0_i32_0 : i32, i32, i32
  }
  func.func @transform_2(%arg0: i32, %arg1: i32) -> (i32, i32, i32) {
    %c0_i32 = arith.constant 0 : i32
    %c0_i32_0 = arith.constant 0 : i32
    return %arg0, %arg1, %c0_i32 : i32, i32, i32
  }
  func.func @transform_3(%arg0: i32, %arg1: i32) -> (i32, i32, i32) {
    %c0_i32 = arith.constant 0 : i32
    %c0_i32_0 = arith.constant 0 : i32
    %c0_i32_1 = arith.constant 0 : i32
    return %arg0, %c0_i32, %c0_i32_0 : i32, i32, i32
  }
  func.func @transform_4(%arg0: i32, %arg1: i32) -> (i32, i32, i32) {
    %c0_i32 = arith.constant 0 : i32
    %c0_i32_0 = arith.constant 0 : i32
    %c0_i32_1 = arith.constant 0 : i32
    return %arg0, %c0_i32, %c0_i32_0 : i32, i32, i32
  }
  func.func @transform_5(%arg0: i32, %arg1: i32) -> (i32, i32) {
    %c0_i32 = arith.constant 0 : i32
    %c0_i32_0 = arith.constant 0 : i32
    %c0_i32_1 = arith.constant 0 : i32
    return %c0_i32, %c0_i32_0 : i32, i32
  }
  func.func @transform_6(%arg0: i32, %arg1: i32) -> (i32, i32) {
    %c0_i32 = arith.constant 0 : i32
    %c0_i32_0 = arith.constant 0 : i32
    %c0_i32_1 = arith.constant 0 : i32
    return %c0_i32, %c0_i32_0 : i32, i32
  }
  func.func @transform_7(%arg0: i32, %arg1: i32) -> (i32, i32, i32) {
    %c0_i32 = arith.constant 0 : i32
    %c0_i32_0 = arith.constant 0 : i32
    return %arg0, %arg1, %c0_i32 : i32, i32, i32
  }
}

module attributes {stable_mosaic.version = 11 : i64} {
  func.func @qkv_proj_kernel(%arg0: i32, %arg1: memref<16x32xf32, #tpu.memory_space<vmem>>, %arg2: memref<1x32xf32, #tpu.memory_space<vmem>>, %arg3: memref<1x32xf32, #tpu.memory_space<vmem>>, %arg4: memref<32x96xbf16, #tpu.memory_space<vmem>>, %arg5: memref<1x96xf32, #tpu.memory_space<vmem>>, %arg6: memref<16x32xbf16, #tpu.memory_space<vmem>>, %arg7: memref<16x32xbf16, #tpu.memory_space<vmem>>, %arg8: memref<16x32xbf16, #tpu.memory_space<vmem>>) attributes {dimension_semantics = [#tpu.dimension_semantics<parallel>], iteration_bounds = array<i64: 1>, scalar_prefetch = 0 : i64, scratch_operands = 0 : i64, tpu.core_type = #tpu.core_type<tc>, window_params = [{transform_indices = @transform_0, window_bounds = array<i64: 16, 32>}, {pipeline_mode = #tpu.pipeline_mode<synchronous>, transform_indices = @transform_1, window_bounds = array<i64: 1, 32>}, {pipeline_mode = #tpu.pipeline_mode<synchronous>, transform_indices = @transform_2, window_bounds = array<i64: 1, 32>}, {pipeline_mode = #tpu.pipeline_mode<synchronous>, transform_indices = @transform_3, window_bounds = array<i64: 32, 96>}, {pipeline_mode = #tpu.pipeline_mode<synchronous>, transform_indices = @transform_4, window_bounds = array<i64: 1, 96>}, {transform_indices = @transform_5, window_bounds = array<i64: 16, 32>}, {transform_indices = @transform_6, window_bounds = array<i64: 16, 32>}, {transform_indices = @transform_7, window_bounds = array<i64: 16, 32>}]} {
    %c0 = arith.constant 0 : index
    %c0_0 = arith.constant 0 : index
    %0 = vector.load %arg1[%c0, %c0_0] : memref<16x32xf32, #tpu.memory_space<vmem>>, vector<16x32xf32>
    %c0_1 = arith.constant 0 : index
    %c0_2 = arith.constant 0 : index
    %1 = vector.load %arg2[%c0_1, %c0_2] : memref<1x32xf32, #tpu.memory_space<vmem>>, vector<1x32xf32>
    %c0_3 = arith.constant 0 : index
    %c0_4 = arith.constant 0 : index
    %2 = vector.load %arg3[%c0_3, %c0_4] : memref<1x32xf32, #tpu.memory_space<vmem>>, vector<1x32xf32>
    %cst = arith.constant dense<0.000000e+00> : vector<16xf32>
    %3 = vector.multi_reduction <add>, %0, %cst [1] : vector<16x32xf32> to vector<16xf32>
    %4 = vector.shape_cast %3 : vector<16xf32> to vector<16x1xf32>
    %cst_5 = arith.constant 3.200000e+01 : f32
    %5 = vector.broadcast %cst_5 : f32 to vector<16x1xf32>
    %6 = arith.divf %4, %5 : vector<16x1xf32>
    %7 = vector.broadcast %6 : vector<16x1xf32> to vector<16x32xf32>
    %8 = arith.subf %0, %7 : vector<16x32xf32>
    %9 = arith.mulf %8, %8 : vector<16x32xf32>
    %cst_6 = arith.constant dense<0.000000e+00> : vector<16xf32>
    %10 = vector.multi_reduction <add>, %9, %cst_6 [1] : vector<16x32xf32> to vector<16xf32>
    %11 = vector.shape_cast %10 : vector<16xf32> to vector<16x1xf32>
    %cst_7 = arith.constant 3.100000e+01 : f32
    %12 = vector.broadcast %cst_7 : f32 to vector<16x1xf32>
    %13 = arith.divf %11, %12 : vector<16x1xf32>
    %14 = vector.broadcast %1 : vector<1x32xf32> to vector<16x32xf32>
    %15 = arith.mulf %14, %8 : vector<16x32xf32>
    %16 = math.sqrt %13 : vector<16x1xf32>
    %cst_8 = arith.constant 9.99999997E-7 : f32
    %17 = vector.broadcast %cst_8 : f32 to vector<16x1xf32>
    %18 = arith.addf %16, %17 : vector<16x1xf32>
    %19 = vector.broadcast %18 : vector<16x1xf32> to vector<16x32xf32>
    %20 = arith.divf %15, %19 : vector<16x32xf32>
    %21 = vector.broadcast %2 : vector<1x32xf32> to vector<16x32xf32>
    %22 = arith.addf %20, %21 : vector<16x32xf32>
    %23 = arith.truncf %22 : vector<16x32xf32> to vector<16x32xbf16>
    %c0_9 = arith.constant 0 : index
    %c0_10 = arith.constant 0 : index
    %24 = vector.load %arg4[%c0_9, %c0_10] : memref<32x96xbf16, #tpu.memory_space<vmem>>, vector<32x96xbf16>
    %cst_11 = arith.constant dense<0.000000e+00> : vector<16x96xf32>
    %25 = tpu.matmul %23, %24, %cst_11 {dimension_numbers = #tpu.dot_dimension_numbers<[1], [0], [0], [1], [0, 0, 1, 1], [], []>} : vector<16x32xbf16>, vector<32x96xbf16>, vector<16x96xf32> -> vector<16x96xf32>
    %c0_12 = arith.constant 0 : index
    %c0_13 = arith.constant 0 : index
    %26 = vector.load %arg5[%c0_12, %c0_13] : memref<1x96xf32, #tpu.memory_space<vmem>>, vector<1x96xf32>
    %27 = vector.broadcast %26 : vector<1x96xf32> to vector<16x96xf32>
    %28 = arith.addf %25, %27 : vector<16x96xf32>
    %29 = vector.extract_strided_slice %28 {offsets = [0, 0], sizes = [16, 32], strides = [1, 1]} : vector<16x96xf32> to vector<16x32xf32>
    %30 = arith.truncf %29 : vector<16x32xf32> to vector<16x32xbf16>
    %c0_14 = arith.constant 0 : index
    %c0_15 = arith.constant 0 : index
    %31 = vector.load %arg6[%c0_14, %c0_15] : memref<16x32xbf16, #tpu.memory_space<vmem>>, vector<16x32xbf16>
    tpu.vector_store %arg6[%c0_14, %c0_15], %30 {strides = array<i32>} : memref<16x32xbf16, #tpu.memory_space<vmem>>, vector<16x32xbf16>,
    %32 = vector.extract_strided_slice %28 {offsets = [0, 32], sizes = [16, 32], strides = [1, 1]} : vector<16x96xf32> to vector<16x32xf32>
    %33 = arith.truncf %32 : vector<16x32xf32> to vector<16x32xbf16>
    %c0_16 = arith.constant 0 : index
    %c0_17 = arith.constant 0 : index
    %34 = vector.load %arg7[%c0_16, %c0_17] : memref<16x32xbf16, #tpu.memory_space<vmem>>, vector<16x32xbf16>
    tpu.vector_store %arg7[%c0_16, %c0_17], %33 {strides = array<i32>} : memref<16x32xbf16, #tpu.memory_space<vmem>>, vector<16x32xbf16>,
    %35 = vector.extract_strided_slice %28 {offsets = [0, 64], sizes = [16, 32], strides = [1, 1]} : vector<16x96xf32> to vector<16x32xf32>
    %36 = arith.truncf %35 : vector<16x32xf32> to vector<16x32xbf16>
    %c0_18 = arith.constant 0 : index
    %c0_19 = arith.constant 0 : index
    %37 = vector.load %arg8[%c0_18, %c0_19] : memref<16x32xbf16, #tpu.memory_space<vmem>>, vector<16x32xbf16>
    tpu.vector_store %arg8[%c0_18, %c0_19], %36 {strides = array<i32>} : memref<16x32xbf16, #tpu.memory_space<vmem>>, vector<16x32xbf16>,
    return
  }
  func.func @transform_0(%arg0: i32) -> (i32, i32) {
    %c0_i32 = arith.constant 0 : i32
    %c0_i32_0 = arith.constant 0 : i32
    return %arg0, %c0_i32 : i32, i32
  }
  func.func @transform_1(%arg0: i32) -> (i32, i32) {
    %c0_i32 = arith.constant 0 : i32
    %c0_i32_0 = arith.constant 0 : i32
    %c0_i32_1 = arith.constant 0 : i32
    return %c0_i32, %c0_i32_0 : i32, i32
  }
  func.func @transform_2(%arg0: i32) -> (i32, i32) {
    %c0_i32 = arith.constant 0 : i32
    %c0_i32_0 = arith.constant 0 : i32
    %c0_i32_1 = arith.constant 0 : i32
    return %c0_i32, %c0_i32_0 : i32, i32
  }
  func.func @transform_3(%arg0: i32) -> (i32, i32) {
    %c0_i32 = arith.constant 0 : i32
    %c0_i32_0 = arith.constant 0 : i32
    %c0_i32_1 = arith.constant 0 : i32
    return %c0_i32, %c0_i32_0 : i32, i32
  }
  func.func @transform_4(%arg0: i32) -> (i32, i32) {
    %c0_i32 = arith.constant 0 : i32
    %c0_i32_0 = arith.constant 0 : i32
    %c0_i32_1 = arith.constant 0 : i32
    return %c0_i32, %c0_i32_0 : i32, i32
  }
  func.func @transform_5(%arg0: i32) -> (i32, i32) {
    %c0_i32 = arith.constant 0 : i32
    %c0_i32_0 = arith.constant 0 : i32
    return %arg0, %c0_i32 : i32, i32
  }
  func.func @transform_6(%arg0: i32) -> (i32, i32) {
    %c0_i32 = arith.constant 0 : i32
    %c0_i32_0 = arith.constant 0 : i32
    return %arg0, %c0_i32 : i32, i32
  }
  func.func @transform_7(%arg0: i32) -> (i32, i32) {
    %c0_i32 = arith.constant 0 : i32
    %c0_i32_0 = arith.constant 0 : i32
    return %arg0, %c0_i32 : i32, i32
  }
}

module attributes {stable_mosaic.version = 11 : i64} {
  func.func @ffn_kernel(%arg0: i32, %arg1: i32, %arg2: memref<16x32xf32, #tpu.memory_space<vmem>>, %arg3: memref<1x32xf32, #tpu.memory_space<vmem>>, %arg4: memref<1x32xf32, #tpu.memory_space<vmem>>, %arg5: memref<32x64xbf16, #tpu.memory_space<vmem>>, %arg6: memref<1x64xf32, #tpu.memory_space<vmem>>, %arg7: memref<64x32xbf16, #tpu.memory_space<vmem>>, %arg8: memref<1x32xf32, #tpu.memory_space<vmem>>, %arg9: memref<1x32xf32, #tpu.memory_space<vmem>>, %arg10: memref<1x32xf32, #tpu.memory_space<vmem>>, %arg11: memref<16x32xf32, #tpu.memory_space<vmem>>, %arg12: memref<16x32xf32, #tpu.memory_space<vmem>>, %arg13: memref<16x32xbf16, #tpu.memory_space<vmem>>) attributes {dimension_semantics = [#tpu.dimension_semantics<parallel>, #tpu.dimension_semantics<arbitrary>], iteration_bounds = array<i64: 1, 1>, scalar_prefetch = 0 : i64, scratch_operands = 2 : i64, tpu.core_type = #tpu.core_type<tc>, window_params = [{transform_indices = @transform_0, window_bounds = array<i64: 16, 32>}, {pipeline_mode = #tpu.pipeline_mode<synchronous>, transform_indices = @transform_1, window_bounds = array<i64: 1, 32>}, {pipeline_mode = #tpu.pipeline_mode<synchronous>, transform_indices = @transform_2, window_bounds = array<i64: 1, 32>}, {transform_indices = @transform_3, window_bounds = array<i64: 32, 64>}, {transform_indices = @transform_4, window_bounds = array<i64: 1, 64>}, {transform_indices = @transform_5, window_bounds = array<i64: 64, 32>}, {pipeline_mode = #tpu.pipeline_mode<synchronous>, transform_indices = @transform_6, window_bounds = array<i64: 1, 32>}, {pipeline_mode = #tpu.pipeline_mode<synchronous>, transform_indices = @transform_7, window_bounds = array<i64: 1, 32>}, {pipeline_mode = #tpu.pipeline_mode<synchronous>, transform_indices = @transform_8, window_bounds = array<i64: 1, 32>}, {transform_indices = @transform_9, window_bounds = array<i64: 16, 32>}]} {
    %c0_i32 = arith.constant 0 : i32
    %0 = arith.cmpi eq, %arg1, %c0_i32 : i32
    %1 = arith.extui %0 : i1 to i32
    %c0_i32_0 = arith.constant 0 : i32
    %2 = arith.cmpi ne, %1, %c0_i32_0 : i32
    scf.if %2 {
      %c0_16 = arith.constant 0 : index
      %c0_17 = arith.constant 0 : index
      %20 = vector.load %arg2[%c0_16, %c0_17] : memref<16x32xf32, #tpu.memory_space<vmem>>, vector<16x32xf32>
      %c0_18 = arith.constant 0 : index
      %c0_19 = arith.constant 0 : index
      %21 = vector.load %arg3[%c0_18, %c0_19] : memref<1x32xf32, #tpu.memory_space<vmem>>, vector<1x32xf32>
      %c0_20 = arith.constant 0 : index
      %c0_21 = arith.constant 0 : index
      %22 = vector.load %arg4[%c0_20, %c0_21] : memref<1x32xf32, #tpu.memory_space<vmem>>, vector<1x32xf32>
      %cst_22 = arith.constant dense<0.000000e+00> : vector<16xf32>
      %23 = vector.multi_reduction <add>, %20, %cst_22 [1] : vector<16x32xf32> to vector<16xf32>
      %24 = vector.shape_cast %23 : vector<16xf32> to vector<16x1xf32>
      %cst_23 = arith.constant 3.200000e+01 : f32
      %25 = vector.broadcast %cst_23 : f32 to vector<16x1xf32>
      %26 = arith.divf %24, %25 : vector<16x1xf32>
      %27 = vector.broadcast %26 : vector<16x1xf32> to vector<16x32xf32>
      %28 = arith.subf %20, %27 : vector<16x32xf32>
      %29 = arith.mulf %28, %28 : vector<16x32xf32>
      %cst_24 = arith.constant dense<0.000000e+00> : vector<16xf32>
      %30 = vector.multi_reduction <add>, %29, %cst_24 [1] : vector<16x32xf32> to vector<16xf32>
      %31 = vector.shape_cast %30 : vector<16xf32> to vector<16x1xf32>
      %cst_25 = arith.constant 3.100000e+01 : f32
      %32 = vector.broadcast %cst_25 : f32 to vector<16x1xf32>
      %33 = arith.divf %31, %32 : vector<16x1xf32>
      %34 = vector.broadcast %21 : vector<1x32xf32> to vector<16x32xf32>
      %35 = arith.mulf %34, %28 : vector<16x32xf32>
      %36 = math.sqrt %33 : vector<16x1xf32>
      %cst_26 = arith.constant 9.99999997E-7 : f32
      %37 = vector.broadcast %cst_26 : f32 to vector<16x1xf32>
      %38 = arith.addf %36, %37 : vector<16x1xf32>
      %39 = vector.broadcast %38 : vector<16x1xf32> to vector<16x32xf32>
      %40 = arith.divf %35, %39 : vector<16x32xf32>
      %41 = vector.broadcast %22 : vector<1x32xf32> to vector<16x32xf32>
      %42 = arith.addf %40, %41 : vector<16x32xf32>
      %43 = arith.truncf %42 : vector<16x32xf32> to vector<16x32xbf16>
      %c0_27 = arith.constant 0 : index
      %c0_28 = arith.constant 0 : index
      %44 = vector.load %arg13[%c0_27, %c0_28] : memref<16x32xbf16, #tpu.memory_space<vmem>>, vector<16x32xbf16>
      tpu.vector_store %arg13[%c0_27, %c0_28], %43 {strides = array<i32>} : memref<16x32xbf16, #tpu.memory_space<vmem>>, vector<16x32xbf16>,
      %c0_29 = arith.constant 0 : index
      %c0_30 = arith.constant 0 : index
      %45 = vector.load %arg8[%c0_29, %c0_30] : memref<1x32xf32, #tpu.memory_space<vmem>>, vector<1x32xf32>
      %46 = vector.broadcast %45 : vector<1x32xf32> to vector<16x32xf32>
      %47 = arith.addf %20, %46 : vector<16x32xf32>
      %c0_31 = arith.constant 0 : index
      %c0_32 = arith.constant 0 : index
      %48 = vector.load %arg12[%c0_31, %c0_32] : memref<16x32xf32, #tpu.memory_space<vmem>>, vector<16x32xf32>
      tpu.vector_store %arg12[%c0_31, %c0_32], %47 {strides = array<i32>} : memref<16x32xf32, #tpu.memory_space<vmem>>, vector<16x32xf32>,
    } else {
    }
    %c0 = arith.constant 0 : index
    %c0_1 = arith.constant 0 : index
    %3 = vector.load %arg13[%c0, %c0_1] : memref<16x32xbf16, #tpu.memory_space<vmem>>, vector<16x32xbf16>
    %c0_2 = arith.constant 0 : index
    %c0_3 = arith.constant 0 : index
    %4 = vector.load %arg5[%c0_2, %c0_3] : memref<32x64xbf16, #tpu.memory_space<vmem>>, vector<32x64xbf16>
    %cst = arith.constant dense<0.000000e+00> : vector<16x64xf32>
    %5 = tpu.matmul %3, %4, %cst {dimension_numbers = #tpu.dot_dimension_numbers<[1], [0], [0], [1], [0, 0, 1, 1], [], []>} : vector<16x32xbf16>, vector<32x64xbf16>, vector<16x64xf32> -> vector<16x64xf32>
    %c0_4 = arith.constant 0 : index
    %c0_5 = arith.constant 0 : index
    %6 = vector.load %arg6[%c0_4, %c0_5] : memref<1x64xf32, #tpu.memory_space<vmem>>, vector<1x64xf32>
    %7 = vector.broadcast %6 : vector<1x64xf32> to vector<16x64xf32>
    %8 = arith.addf %5, %7 : vector<16x64xf32>
    %cst_6 = arith.constant 0.000000e+00 : f32
    %9 = vector.broadcast %cst_6 : f32 to vector<16x64xf32>
    %10 = arith.maximumf %8, %9 : vector<16x64xf32>
    %c0_7 = arith.constant 0 : index
    %c0_8 = arith.constant 0 : index
    %11 = vector.load %arg12[%c0_7, %c0_8] : memref<16x32xf32, #tpu.memory_space<vmem>>, vector<16x32xf32>
    %12 = arith.truncf %10 : vector<16x64xf32> to vector<16x64xbf16>
    %c0_9 = arith.constant 0 : index
    %c0_10 = arith.constant 0 : index
    %13 = vector.load %arg7[%c0_9, %c0_10] : memref<64x32xbf16, #tpu.memory_space<vmem>>, vector<64x32xbf16>
    %cst_11 = arith.constant dense<0.000000e+00> : vector<16x32xf32>
    %14 = tpu.matmul %12, %13, %cst_11 {dimension_numbers = #tpu.dot_dimension_numbers<[1], [0], [0], [1], [0, 0, 1, 1], [], []>} : vector<16x64xbf16>, vector<64x32xbf16>, vector<16x32xf32> -> vector<16x32xf32>
    %15 = arith.addf %11, %14 : vector<16x32xf32>
    %c0_12 = arith.constant 0 : index
    %c0_13 = arith.constant 0 : index
    %16 = vector.load %arg12[%c0_12, %c0_13] : memref<16x32xf32, #tpu.memory_space<vmem>>, vector<16x32xf32>
    tpu.vector_store %arg12[%c0_12, %c0_13], %15 {strides = array<i32>} : memref<16x32xf32, #tpu.memory_space<vmem>>, vector<16x32xf32>,
    %c0_i32_14 = arith.constant 0 : i32
    %17 = arith.cmpi eq, %arg1, %c0_i32_14 : i32
    %18 = arith.extui %17 : i1 to i32
    %c0_i32_15 = arith.constant 0 : i32
    %19 = arith.cmpi ne, %18, %c0_i32_15 : i32
    scf.if %19 {
      %c0_16 = arith.constant 0 : index
      %c0_17 = arith.constant 0 : index
      %20 = vector.load %arg12[%c0_16, %c0_17] : memref<16x32xf32, #tpu.memory_space<vmem>>, vector<16x32xf32>
      %c0_18 = arith.constant 0 : index
      %c0_19 = arith.constant 0 : index
      %21 = vector.load %arg11[%c0_18, %c0_19] : memref<16x32xf32, #tpu.memory_space<vmem>>, vector<16x32xf32>
      tpu.vector_store %arg11[%c0_18, %c0_19], %20 {strides = array<i32>} : memref<16x32xf32, #tpu.memory_space<vmem>>, vector<16x32xf32>,
    } else {
    }
    return
  }
  func.func @transform_0(%arg0: i32, %arg1: i32) -> (i32, i32) {
    %c0_i32 = arith.constant 0 : i32
    %c0_i32_0 = arith.constant 0 : i32
    return %arg0, %c0_i32 : i32, i32
  }
  func.func @transform_1(%arg0: i32, %arg1: i32) -> (i32, i32) {
    %c0_i32 = arith.constant 0 : i32
    %c0_i32_0 = arith.constant 0 : i32
    %c0_i32_1 = arith.constant 0 : i32
    return %c0_i32, %c0_i32_0 : i32, i32
  }
  func.func @transform_2(%arg0: i32, %arg1: i32) -> (i32, i32) {
    %c0_i32 = arith.constant 0 : i32
    %c0_i32_0 = arith.constant 0 : i32
    %c0_i32_1 = arith.constant 0 : i32
    return %c0_i32, %c0_i32_0 : i32, i32
  }
  func.func @transform_3(%arg0: i32, %arg1: i32) -> (i32, i32) {
    %c0_i32 = arith.constant 0 : i32
    %c0_i32_0 = arith.constant 0 : i32
    return %c0_i32, %arg1 : i32, i32
  }
  func.func @transform_4(%arg0: i32, %arg1: i32) -> (i32, i32) {
    %c0_i32 = arith.constant 0 : i32
    %c0_i32_0 = arith.constant 0 : i32
    return %c0_i32, %arg1 : i32, i32
  }
  func.func @transform_5(%arg0: i32, %arg1: i32) -> (i32, i32) {
    %c0_i32 = arith.constant 0 : i32
    %c0_i32_0 = arith.constant 0 : i32
    return %arg1, %c0_i32 : i32, i32
  }
  func.func @transform_6(%arg0: i32, %arg1: i32) -> (i32, i32) {
    %c0_i32 = arith.constant 0 : i32
    %c0_i32_0 = arith.constant 0 : i32
    %c0_i32_1 = arith.constant 0 : i32
    return %c0_i32, %c0_i32_0 : i32, i32
  }
  func.func @transform_7(%arg0: i32, %arg1: i32) -> (i32, i32) {
    %c0_i32 = arith.constant 0 : i32
    %c0_i32_0 = arith.constant 0 : i32
    %c0_i32_1 = arith.constant 0 : i32
    return %c0_i32, %c0_i32_0 : i32, i32
  }
  func.func @transform_8(%arg0: i32, %arg1: i32) -> (i32, i32) {
    %c0_i32 = arith.constant 0 : i32
    %c0_i32_0 = arith.constant 0 : i32
    %c0_i32_1 = arith.constant 0 : i32
    return %c0_i32, %c0_i32_0 : i32, i32
  }
  func.func @transform_9(%arg0: i32, %arg1: i32) -> (i32, i32) {
    %c0_i32 = arith.constant 0 : i32
    %c0_i32_0 = arith.constant 0 : i32
    return %arg0, %c0_i32 : i32, i32
  }
}

module attributes {stable_mosaic.version = 11 : i64} {
  func.func @ffn_kernel(%arg0: i32, %arg1: i32, %arg2: memref<16x32xf32, #tpu.memory_space<vmem>>, %arg3: memref<1x32xf32, #tpu.memory_space<vmem>>, %arg4: memref<1x32xf32, #tpu.memory_space<vmem>>, %arg5: memref<32x64xbf16, #tpu.memory_space<vmem>>, %arg6: memref<1x64xf32, #tpu.memory_space<vmem>>, %arg7: memref<64x32xbf16, #tpu.memory_space<vmem>>, %arg8: memref<1x32xf32, #tpu.memory_space<vmem>>, %arg9: memref<1x32xf32, #tpu.memory_space<vmem>>, %arg10: memref<1x32xf32, #tpu.memory_space<vmem>>, %arg11: memref<16x32xf32, #tpu.memory_space<vmem>>, %arg12: memref<16x32xf32, #tpu.memory_space<vmem>>, %arg13: memref<16x32xbf16, #tpu.memory_space<vmem>>) attributes {dimension_semantics = [#tpu.dimension_semantics<parallel>, #tpu.dimension_semantics<arbitrary>], iteration_bounds = array<i64: 1, 1>, scalar_prefetch = 0 : i64, scratch_operands = 2 : i64, tpu.core_type = #tpu.core_type<tc>, window_params = [{transform_indices = @transform_0, window_bounds = array<i64: 16, 32>}, {pipeline_mode = #tpu.pipeline_mode<synchronous>, transform_indices = @transform_1, window_bounds = array<i64: 1, 32>}, {pipeline_mode = #tpu.pipeline_mode<synchronous>, transform_indices = @transform_2, window_bounds = array<i64: 1, 32>}, {transform_indices = @transform_3, window_bounds = array<i64: 32, 64>}, {transform_indices = @transform_4, window_bounds = array<i64: 1, 64>}, {transform_indices = @transform_5, window_bounds = array<i64: 64, 32>}, {pipeline_mode = #tpu.pipeline_mode<synchronous>, transform_indices = @transform_6, window_bounds = array<i64: 1, 32>}, {pipeline_mode = #tpu.pipeline_mode<synchronous>, transform_indices = @transform_7, window_bounds = array<i64: 1, 32>}, {pipeline_mode = #tpu.pipeline_mode<synchronous>, transform_indices = @transform_8, window_bounds = array<i64: 1, 32>}, {transform_indices = @transform_9, window_bounds = array<i64: 16, 32>}]} {
    %c0_i32 = arith.constant 0 : i32
    %0 = arith.cmpi eq, %arg1, %c0_i32 : i32
    %1 = arith.extui %0 : i1 to i32
    %c0_i32_0 = arith.constant 0 : i32
    %2 = arith.cmpi ne, %1, %c0_i32_0 : i32
    scf.if %2 {
      %c0_16 = arith.constant 0 : index
      %c0_17 = arith.constant 0 : index
      %20 = vector.load %arg2[%c0_16, %c0_17] : memref<16x32xf32, #tpu.memory_space<vmem>>, vector<16x32xf32>
      %c0_18 = arith.constant 0 : index
      %c0_19 = arith.constant 0 : index
      %21 = vector.load %arg3[%c0_18, %c0_19] : memref<1x32xf32, #tpu.memory_space<vmem>>, vector<1x32xf32>
      %c0_20 = arith.constant 0 : index
      %c0_21 = arith.constant 0 : index
      %22 = vector.load %arg4[%c0_20, %c0_21] : memref<1x32xf32, #tpu.memory_space<vmem>>, vector<1x32xf32>
      %cst_22 = arith.constant dense<0.000000e+00> : vector<16xf32>
      %23 = vector.multi_reduction <add>, %20, %cst_22 [1] : vector<16x32xf32> to vector<16xf32>
      %24 = vector.shape_cast %23 : vector<16xf32> to vector<16x1xf32>
      %cst_23 = arith.constant 3.200000e+01 : f32
      %25 = vector.broadcast %cst_23 : f32 to vector<16x1xf32>
      %26 = arith.divf %24, %25 : vector<16x1xf32>
      %27 = vector.broadcast %26 : vector<16x1xf32> to vector<16x32xf32>
      %28 = arith.subf %20, %27 : vector<16x32xf32>
      %29 = arith.mulf %28, %28 : vector<16x32xf32>
      %cst_24 = arith.constant dense<0.000000e+00> : vector<16xf32>
      %30 = vector.multi_reduction <add>, %29, %cst_24 [1] : vector<16x32xf32> to vector<16xf32>
      %31 = vector.shape_cast %30 : vector<16xf32> to vector<16x1xf32>
      %cst_25 = arith.constant 3.100000e+01 : f32
      %32 = vector.broadcast %cst_25 : f32 to vector<16x1xf32>
      %33 = arith.divf %31, %32 : vector<16x1xf32>
      %34 = vector.broadcast %21 : vector<1x32xf32> to vector<16x32xf32>
      %35 = arith.mulf %34, %28 : vector<16x32xf32>
      %36 = math.sqrt %33 : vector<16x1xf32>
      %cst_26 = arith.constant 9.99999997E-7 : f32
      %37 = vector.broadcast %cst_26 : f32 to vector<16x1xf32>
      %38 = arith.addf %36, %37 : vector<16x1xf32>
      %39 = vector.broadcast %38 : vector<16x1xf32> to vector<16x32xf32>
      %40 = arith.divf %35, %39 : vector<16x32xf32>
      %41 = vector.broadcast %22 : vector<1x32xf32> to vector<16x32xf32>
      %42 = arith.addf %40, %41 : vector<16x32xf32>
      %43 = arith.truncf %42 : vector<16x32xf32> to vector<16x32xbf16>
      %c0_27 = arith.constant 0 : index
      %c0_28 = arith.constant 0 : index
      %44 = vector.load %arg13[%c0_27, %c0_28] : memref<16x32xbf16, #tpu.memory_space<vmem>>, vector<16x32xbf16>
      tpu.vector_store %arg13[%c0_27, %c0_28], %43 {strides = array<i32>} : memref<16x32xbf16, #tpu.memory_space<vmem>>, vector<16x32xbf16>,
      %c0_29 = arith.constant 0 : index
      %c0_30 = arith.constant 0 : index
      %45 = vector.load %arg8[%c0_29, %c0_30] : memref<1x32xf32, #tpu.memory_space<vmem>>, vector<1x32xf32>
      %46 = vector.broadcast %45 : vector<1x32xf32> to vector<16x32xf32>
      %47 = arith.addf %20, %46 : vector<16x32xf32>
      %c0_31 = arith.constant 0 : index
      %c0_32 = arith.constant 0 : index
      %48 = vector.load %arg12[%c0_31, %c0_32] : memref<16x32xf32, #tpu.memory_space<vmem>>, vector<16x32xf32>
      tpu.vector_store %arg12[%c0_31, %c0_32], %47 {strides = array<i32>} : memref<16x32xf32, #tpu.memory_space<vmem>>, vector<16x32xf32>,
    } else {
    }
    %c0 = arith.constant 0 : index
    %c0_1 = arith.constant 0 : index
    %3 = vector.load %arg13[%c0, %c0_1] : memref<16x32xbf16, #tpu.memory_space<vmem>>, vector<16x32xbf16>
    %c0_2 = arith.constant 0 : index
    %c0_3 = arith.constant 0 : index
    %4 = vector.load %arg5[%c0_2, %c0_3] : memref<32x64xbf16, #tpu.memory_space<vmem>>, vector<32x64xbf16>
    %cst = arith.constant dense<0.000000e+00> : vector<16x64xf32>
    %5 = tpu.matmul %3, %4, %cst {dimension_numbers = #tpu.dot_dimension_numbers<[1], [0], [0], [1], [0, 0, 1, 1], [], []>} : vector<16x32xbf16>, vector<32x64xbf16>, vector<16x64xf32> -> vector<16x64xf32>
    %c0_4 = arith.constant 0 : index
    %c0_5 = arith.constant 0 : index
    %6 = vector.load %arg6[%c0_4, %c0_5] : memref<1x64xf32, #tpu.memory_space<vmem>>, vector<1x64xf32>
    %7 = vector.broadcast %6 : vector<1x64xf32> to vector<16x64xf32>
    %8 = arith.addf %5, %7 : vector<16x64xf32>
    %cst_6 = arith.constant 0.000000e+00 : f32
    %9 = vector.broadcast %cst_6 : f32 to vector<16x64xf32>
    %10 = arith.maximumf %8, %9 : vector<16x64xf32>
    %c0_7 = arith.constant 0 : index
    %c0_8 = arith.constant 0 : index
    %11 = vector.load %arg12[%c0_7, %c0_8] : memref<16x32xf32, #tpu.memory_space<vmem>>, vector<16x32xf32>
    %12 = arith.truncf %10 : vector<16x64xf32> to vector<16x64xbf16>
    %c0_9 = arith.constant 0 : index
    %c0_10 = arith.constant 0 : index
    %13 = vector.load %arg7[%c0_9, %c0_10] : memref<64x32xbf16, #tpu.memory_space<vmem>>, vector<64x32xbf16>
    %cst_11 = arith.constant dense<0.000000e+00> : vector<16x32xf32>
    %14 = tpu.matmul %12, %13, %cst_11 {dimension_numbers = #tpu.dot_dimension_numbers<[1], [0], [0], [1], [0, 0, 1, 1], [], []>} : vector<16x64xbf16>, vector<64x32xbf16>, vector<16x32xf32> -> vector<16x32xf32>
    %15 = arith.addf %11, %14 : vector<16x32xf32>
    %c0_12 = arith.constant 0 : index
    %c0_13 = arith.constant 0 : index
    %16 = vector.load %arg12[%c0_12, %c0_13] : memref<16x32xf32, #tpu.memory_space<vmem>>, vector<16x32xf32>
    tpu.vector_store %arg12[%c0_12, %c0_13], %15 {strides = array<i32>} : memref<16x32xf32, #tpu.memory_space<vmem>>, vector<16x32xf32>,
    %c0_i32_14 = arith.constant 0 : i32
    %17 = arith.cmpi eq, %arg1, %c0_i32_14 : i32
    %18 = arith.extui %17 : i1 to i32
    %c0_i32_15 = arith.constant 0 : i32
    %19 = arith.cmpi ne, %18, %c0_i32_15 : i32
    scf.if %19 {
      %c0_16 = arith.constant 0 : index
      %c0_17 = arith.constant 0 : index
      %20 = vector.load %arg12[%c0_16, %c0_17] : memref<16x32xf32, #tpu.memory_space<vmem>>, vector<16x32xf32>
      %c0_18 = arith.constant 0 : index
      %c0_19 = arith.constant 0 : index
      %21 = vector.load %arg9[%c0_18, %c0_19] : memref<1x32xf32, #tpu.memory_space<vmem>>, vector<1x32xf32>
      %c0_20 = arith.constant 0 : index
      %c0_21 = arith.constant 0 : index
      %22 = vector.load %arg10[%c0_20, %c0_21] : memref<1x32xf32, #tpu.memory_space<vmem>>, vector<1x32xf32>
      %cst_22 = arith.constant dense<0.000000e+00> : vector<16xf32>
      %23 = vector.multi_reduction <add>, %20, %cst_22 [1] : vector<16x32xf32> to vector<16xf32>
      %24 = vector.shape_cast %23 : vector<16xf32> to vector<16x1xf32>
      %cst_23 = arith.constant 3.200000e+01 : f32
      %25 = vector.broadcast %cst_23 : f32 to vector<16x1xf32>
      %26 = arith.divf %24, %25 : vector<16x1xf32>
      %27 = vector.broadcast %26 : vector<16x1xf32> to vector<16x32xf32>
      %28 = arith.subf %20, %27 : vector<16x32xf32>
      %29 = arith.mulf %28, %28 : vector<16x32xf32>
      %cst_24 = arith.constant dense<0.000000e+00> : vector<16xf32>
      %30 = vector.multi_reduction <add>, %29, %cst_24 [1] : vector<16x32xf32> to vector<16xf32>
      %31 = vector.shape_cast %30 : vector<16xf32> to vector<16x1xf32>
      %cst_25 = arith.constant 3.100000e+01 : f32
      %32 = vector.broadcast %cst_25 : f32 to vector<16x1xf32>
      %33 = arith.divf %31, %32 : vector<16x1xf32>
      %34 = vector.broadcast %21 : vector<1x32xf32> to vector<16x32xf32>
      %35 = arith.mulf %34, %28 : vector<16x32xf32>
      %36 = math.sqrt %33 : vector<16x1xf32>
      %cst_26 = arith.constant 9.99999997E-7 : f32
      %37 = vector.broadcast %cst_26 : f32 to vector<16x1xf32>
      %38 = arith.addf %36, %37 : vector<16x1xf32>
      %39 = vector.broadcast %38 : vector<16x1xf32> to vector<16x32xf32>
      %40 = arith.divf %35, %39 : vector<16x32xf32>
      %41 = vector.broadcast %22 : vector<1x32xf32> to vector<16x32xf32>
      %42 = arith.addf %40, %41 : vector<16x32xf32>
      %c0_27 = arith.constant 0 : index
      %c0_28 = arith.constant 0 : index
      %43 = vector.load %arg11[%c0_27, %c0_28] : memref<16x32xf32, #tpu.memory_space<vmem>>, vector<16x32xf32>
      tpu.vector_store %arg11[%c0_27, %c0_28], %42 {strides = array<i32>} : memref<16x32xf32, #tpu.memory_space<vmem>>, vector<16x32xf32>,
    } else {
    }
    return
  }
  func.func @transform_0(%arg0: i32, %arg1: i32) -> (i32, i32) {
    %c0_i32 = arith.constant 0 : i32
    %c0_i32_0 = arith.constant 0 : i32
    return %arg0, %c0_i32 : i32, i32
  }
  func.func @transform_1(%arg0: i32, %arg1: i32) -> (i32, i32) {
    %c0_i32 = arith.constant 0 : i32
    %c0_i32_0 = arith.constant 0 : i32
    %c0_i32_1 = arith.constant 0 : i32
    return %c0_i32, %c0_i32_0 : i32, i32
  }
  func.func @transform_2(%arg0: i32, %arg1: i32) -> (i32, i32) {
    %c0_i32 = arith.constant 0 : i32
    %c0_i32_0 = arith.constant 0 : i32
    %c0_i32_1 = arith.constant 0 : i32
    return %c0_i32, %c0_i32_0 : i32, i32
  }
  func.func @transform_3(%arg0: i32, %arg1: i32) -> (i32, i32) {
    %c0_i32 = arith.constant 0 : i32
    %c0_i32_0 = arith.constant 0 : i32
    return %c0_i32, %arg1 : i32, i32
  }
  func.func @transform_4(%arg0: i32, %arg1: i32) -> (i32, i32) {
    %c0_i32 = arith.constant 0 : i32
    %c0_i32_0 = arith.constant 0 : i32
    return %c0_i32, %arg1 : i32, i32
  }
  func.func @transform_5(%arg0: i32, %arg1: i32) -> (i32, i32) {
    %c0_i32 = arith.constant 0 : i32
    %c0_i32_0 = arith.constant 0 : i32
    return %arg1, %c0_i32 : i32, i32
  }
  func.func @transform_6(%arg0: i32, %arg1: i32) -> (i32, i32) {
    %c0_i32 = arith.constant 0 : i32
    %c0_i32_0 = arith.constant 0 : i32
    %c0_i32_1 = arith.constant 0 : i32
    return %c0_i32, %c0_i32_0 : i32, i32
  }
  func.func @transform_7(%arg0: i32, %arg1: i32) -> (i32, i32) {
    %c0_i32 = arith.constant 0 : i32
    %c0_i32_0 = arith.constant 0 : i32
    %c0_i32_1 = arith.constant 0 : i32
    return %c0_i32, %c0_i32_0 : i32, i32
  }
  func.func @transform_8(%arg0: i32, %arg1: i32) -> (i32, i32) {
    %c0_i32 = arith.constant 0 : i32
    %c0_i32_0 = arith.constant 0 : i32
    %c0_i32_1 = arith.constant 0 : i32
    return %c0_i32, %c0_i32_0 : i32, i32
  }
  func.func @transform_9(%arg0: i32, %arg1: i32) -> (i32, i32) {
    %c0_i32 = arith.constant 0 : i32
    %c0_i32_0 = arith.constant 0 : i32
    return %arg0, %c0_i32 : i32, i32
  }
}

</mosaic_0001>

<llo_original>
// kernel: encoder_forward.6
$region0: #{encoder_forward.6}
  #allocation0 [shape = 'u32[]', space=smem, size = 0x4, offset = 0x4, fixed_abs, tag = 'smem constant byte address 0x4 - core index']
  #allocation1 [shape = 'u32[144,128]{1,0:T(1,128)}', space=vmem, size = 0x12000, scoped, tag = 'internal scratch']
  %s0 = inlined_call_operand.vmem [shape: f32[16,32], index: 0, kind: input, shape index: {}]
  %s1 = inlined_call_operand.vmem [shape: f32[1,32], index: 1, kind: input, shape index: {}]
  %s2 = inlined_call_operand.vmem [shape: f32[1,32], index: 2, kind: input, shape index: {}]
  %s3 = inlined_call_operand.vmem [shape: bf16[32,96], index: 3, kind: input, shape index: {}]
  %s4 = inlined_call_operand.hbm [shape: f32[1,96], index: 4, kind: input, shape index: {}]
  %s5 = inlined_call_operand.vmem [shape: bf16[16,32], index: 5, kind: output, shape index: {0}]
  %s6 = inlined_call_operand.vmem [shape: bf16[16,32], index: 6, kind: output, shape index: {1}]
  %s7 = inlined_call_operand.vmem [shape: bf16[16,32], index: 7, kind: output, shape index: {2}]
  %8 = xla_tuple %s5, %s6, %s7
  %s9 = sld [smem:[#allocation0]]
  $region50: #{encoder_forward.6} parent=0
    _
  %s11 = ssub.s32 1, %s9
  %s12 = scalar_select 0, %s11, %s9
  $region1: #{encoder_forward.6} parent=0
    #allocation2 [shape = 'u8[512]{0}', space=vmem, size = 0x400, scoped, tag = 'input window, operand 4, single buffered']
    #allocation3 [shape = 's32[1]{0}', space=sflag, size = 0x4, scoped, tag = 'scoped memory for encoder_forward.6']
    %13 = vsyncpa [#allocation3], 0
    // Predicated region
    $region2: #{encoder_forward.6} parent=1 // pred_check
      _
    $region3: #{encoder_forward.6} parent=1 // pred_check_branch
      %15 = sbr.rel (0) target = $region5
    $region4: #{encoder_forward.6} parent=1 // pred_region
      _
    $region5: #{encoder_forward.6} parent=1 // pred_fallthru
      _
    // Predicated region
    $region6: #{encoder_forward.6} parent=1 // pred_check
      _
    $region7: #{encoder_forward.6} parent=1 // pred_check_branch
      %17 = sbr.rel (0) target = $region9
    $region8: #{encoder_forward.6} parent=1 // pred_region
      _
    $region9: #{encoder_forward.6} parent=1 // pred_fallthru
      _
    // Predicated region
    $region10: #{encoder_forward.6} parent=1 // pred_check
      _
    $region11: #{encoder_forward.6} parent=1 // pred_check_branch
      %19 = sbr.rel (0) target = $region13
    $region12: #{encoder_forward.6} parent=1 // pred_region
      _
    $region13: #{encoder_forward.6} parent=1 // pred_fallthru
      _
    // Predicated region
    $region14: #{encoder_forward.6} parent=1 // pred_check
      _
    $region15: #{encoder_forward.6} parent=1 // pred_check_branch
      %21 = sbr.rel (0) target = $region17
    $region16: #{encoder_forward.6} parent=1 // pred_region
      _
    $region17: #{encoder_forward.6} parent=1 // pred_fallthru
      _
    // Predicated region
    $region18: #{encoder_forward.6} parent=1 // pred_check
      _
    $region19: #{encoder_forward.6} parent=1 // pred_check_branch
      %23 = sbr.rel (0) target = $region21
    $region20: #{encoder_forward.6} parent=1 // pred_region
      %s25 = ssub.s32 16, 16
      %26 = vsyncadd [#allocation3], %s25
      %s28 = sshll.u32 [#allocation2], 4
      %s29 = int_to_ptr.vmem [resolvable:$true] %s28
      %31 = dma.hbm_to_vmem [thread:$0]  %s4, 16, %s29, [#allocation3]
    $region21: #{encoder_forward.6} parent=1 // pred_fallthru
      _
    // Predicated region
    $region22: #{encoder_forward.6} parent=1 // pred_check
      _
    $region23: #{encoder_forward.6} parent=1 // pred_check_branch
      %33 = sbr.rel (0) target = $region25
    $region24: #{encoder_forward.6} parent=1 // pred_region
      %34 = dma.done [#allocation3], 16
    $region25: #{encoder_forward.6} parent=1 // pred_fallthru
      _
    %v36 = vld [vmem:[%s0] sm:$0xff]
    %v37 = vld [vmem:[%s0 + $0x8] sm:$0xff]
    %v38 = vld [vmem:[%s1] sm:$0x1]
    %v39 = vld [vmem:[%s2] sm:$0x1]
    %vm40 = vcmask 261120
    %v41 = vsel %vm40, %v36, 0.0
    %42 = vadd.xlane.f32.xlu0 %v41
    %v43 = vpop.xlane.xlu0 %42
    %v44 = vsel %vm40, %v37, 0.0
    %45 = vadd.xlane.f32.xlu0 %v44
    %v46 = vpop.xlane.xlu0 %45
    %v47 = vrcp.pop 32.0
    %v48 = vmul.f32 %v43, %v47
    %v49 = vmul.f32 %v46, %v47
    %v50 = vsub.f32 %v36, %v48
    %v51 = vsub.f32 %v37, %v49
    %v52 = vmul.f32 %v50, %v50
    %v53 = vmul.f32 %v51, %v51
    %v54 = vsel %vm40, %v52, 0.0
    %55 = vadd.xlane.f32.xlu0 %v54
    %v56 = vpop.xlane.xlu0 %55
    %v57 = vsel %vm40, %v53, 0.0
    %58 = vadd.xlane.f32.xlu0 %v57
    %v59 = vpop.xlane.xlu0 %58
    %v60 = vrcp.pop 31.0
    %v61 = vmul.f32 %v56, %v60
    %v62 = vmul.f32 %v59, %v60
    %v64 = vlaneseq
    %v65 = vshrl.u32 %v64, 7
    %v66 = vsub.s32 0, %v65
    %v67 = vrot.slane %v38, %v66
    %v69 = vmul.f32 %v67, %v50
    %v70 = vmul.f32 %v67, %v51
    %v71 = vrsqrt.pop %v61
    %v72 = vmul.f32 %v61, %v71
    %vm73 = vcmp.eq.f32.partialorder %v61, inf
    %v74 = vsel %vm73, %v61, %v72
    %vm75 = vcmp.eq.f32.partialorder %v61, 0.0
    %v76 = vand.u32 %v61, 2147483648
    %v77 = vsel %vm75, %v76, %v74
    %v78 = vrsqrt.pop %v62
    %v79 = vmul.f32 %v62, %v78
    %vm80 = vcmp.eq.f32.partialorder %v62, inf
    %v81 = vsel %vm80, %v62, %v79
    %vm82 = vcmp.eq.f32.partialorder %v62, 0.0
    %v83 = vand.u32 %v62, 2147483648
    %v84 = vsel %vm82, %v83, %v81
    %v85 = vadd.f32 %v77, 1e-06
    %v86 = vadd.f32 %v84, 1e-06
    %v87 = vrcp.pop %v85
    %v88 = vmul.f32 %v69, %v87
    %v89 = vrcp.pop %v86
    %v90 = vmul.f32 %v70, %v89
    %v92 = vlaneseq
    %v93 = vshrl.u32 %v92, 7
    %v94 = vsub.s32 0, %v93
    %v95 = vrot.slane %v39, %v94
    %v97 = vadd.f32 %v88, %v95
    %v98 = vadd.f32 %v90, %v95
    %v99 = vpack.c.bf16 %v98, %v97
    %v100 = vld [vmem:[%s3] sm:$0xf]
    %v101 = vld [vmem:[%s3 + $0x4] sm:$0xf]
    %v102 = vld [vmem:[%s3 + $0x8] sm:$0xf]
    %v103 = vld [vmem:[%s3 + $0xc] sm:$0xf]
    %v104 = vld [vmem:[#allocation2] sm:$0x1]
    %v106 = vlaneseq
    %v107 = vshrl.u32 %v106, 7
    %v108 = vsub.s32 0, %v107
    %v109 = vrot.slane %v104, %v108
    %v115 = vunpack.c.l.b16 %v100
    %v116 = vunpack.c.l.b16 %v101
    %v117 = vunpack.c.l.b16 %v102
    %v118 = vunpack.c.l.b16 %v103
    %v119 = vpack.c.b16 %v116, %v115
    %v120 = vpack.c.b16 %v118, %v117
    %v124 = vsel %vm40, %v99, 0
    %126 = vmatprep.subr.bf16.mxu0 0
    %127 = vmatpush1.bf16.msra.mxu0 %v119
    %128 = vmatprep.subr.bf16.mxu0 0
    %129 = vmatpush1.bf16.msra.mxu0 %v120
    %130 = vmatprep.subr.bf16.mxu0 0
    %131 = vmatpush1.bf16.msra.mxu0 0
    %132 = vmatprep.subr.bf16.mxu0 0
    %133 = vmatpush1.bf16.msra.mxu0 0
    %134 = vmatprep.subr.bf16.mxu0 0
    %135 = vmatpush1.bf16.msra.mxu0 0
    %136 = vmatprep.subr.bf16.mxu0 0
    %137 = vmatpush1.bf16.msra.mxu0 0
    %138 = vmatprep.subr.bf16.mxu0 0
    %139 = vmatpush1.bf16.msra.mxu0 0
    %140 = vmatprep.subr.bf16.mxu0 0
    %141 = vmatpush1.bf16.msra.mxu0 0
    %142 = vmatprep.subr.bf16.mxu0 0
    %143 = vmatpush1.bf16.msra.mxu0 0
    %144 = vmatprep.subr.bf16.mxu0 0
    %145 = vmatpush1.bf16.msra.mxu0 0
    %146 = vmatprep.subr.bf16.mxu0 0
    %147 = vmatpush1.bf16.msra.mxu0 0
    %148 = vmatprep.subr.bf16.mxu0 0
    %149 = vmatpush1.bf16.msra.mxu0 0
    %150 = vmatprep.subr.bf16.mxu0 0
    %151 = vmatpush1.bf16.msra.mxu0 0
    %152 = vmatprep.subr.bf16.mxu0 0
    %153 = vmatpush1.bf16.msra.mxu0 0
    %154 = vmatprep.subr.bf16.mxu0 0
    %155 = vmatpush1.bf16.msra.mxu0 0
    %156 = vmatprep.subr.bf16.mxu0 0
    %157 = vmatpush1.bf16.msra.mxu0 0
    %158 = vmatprep.mubr.bf16.mxu0 0
    %159 = vmatmul.mubr.bf16.gmra.mrb[0].mxu0 %v124
    %v160 = vpop.f32.mrb[0].mxu0
    %v161 = vadd.f32 %v109, %v160
    %v162 = vpop.f32.mrb[0].mxu0
    %v163 = vpop.f32.mrb[0].mxu0
    %v164 = vadd.f32 %v109, %v163
    %v165 = vpop.f32.mrb[0].mxu0
    %166 = vdwg.mxu0
    %v167 = vpack.c.bf16 %v164, %v161
    %v169 = vunpack.c.l.b16 %v167
    %v170 = vunpack.c.h.b16 %v167
    %v171 = vpack.c.b16 %v169, %v169
    %v172 = vpack.c.b16 %v170, %v170
    %vm175 = vcmask 257024
    %176 = vst.msk [vmem:[%s5] sm:$0xf] %vm175, %v171
    %177 = vst.msk [vmem:[%s5 + $0x4] sm:$0xf] %vm175, %v172
    %178 = vrot.lane.b32.xlu0 %v171, 96
    %v179 = vpop.permute.xlu0 %178
    %180 = vrot.lane.b32.xlu0 %v172, 96
    %v181 = vpop.permute.xlu0 %180
    %184 = vst.msk [vmem:[%s6] sm:$0xf] %vm175, %v179
    %185 = vst.msk [vmem:[%s6 + $0x4] sm:$0xf] %vm175, %v181
    %186 = vrot.lane.b32.xlu0 %v171, 64
    %v187 = vpop.permute.xlu0 %186
    %188 = vrot.lane.b32.xlu0 %v172, 64
    %v189 = vpop.permute.xlu0 %188
    %192 = vst.msk [vmem:[%s7] sm:$0xf] %vm175, %v187
    %193 = vst.msk [vmem:[%s7 + $0x4] sm:$0xf] %vm175, %v189
    // Predicated region
    $region26: #{encoder_forward.6} parent=1 // pred_check
      _
    $region27: #{encoder_forward.6} parent=1 // pred_check_branch
      %195 = sbr.rel (0) target = $region29
    $region28: #{encoder_forward.6} parent=1 // pred_region
      _
    $region29: #{encoder_forward.6} parent=1 // pred_fallthru
      _
    // Predicated region
    $region30: #{encoder_forward.6} parent=1 // pred_check
      _
    $region31: #{encoder_forward.6} parent=1 // pred_check_branch
      %197 = sbr.rel (0) target = $region33
    $region32: #{encoder_forward.6} parent=1 // pred_region
      _
    $region33: #{encoder_forward.6} parent=1 // pred_fallthru
      _
    // Predicated region
    $region34: #{encoder_forward.6} parent=1 // pred_check
      _
    $region35: #{encoder_forward.6} parent=1 // pred_check_branch
      %199 = sbr.rel (0) target = $region37
    $region36: #{encoder_forward.6} parent=1 // pred_region
      _
    $region37: #{encoder_forward.6} parent=1 // pred_fallthru
      _
    // Predicated region
    $region38: #{encoder_forward.6} parent=1 // pred_check
      _
    $region39: #{encoder_forward.6} parent=1 // pred_check_branch
      %201 = sbr.rel (0) target = $region41
    $region40: #{encoder_forward.6} parent=1 // pred_region
      _
    $region41: #{encoder_forward.6} parent=1 // pred_fallthru
      _
    // Predicated region
    $region42: #{encoder_forward.6} parent=1 // pred_check
      _
    $region43: #{encoder_forward.6} parent=1 // pred_check_branch
      %203 = sbr.rel (0) target = $region45
    $region44: #{encoder_forward.6} parent=1 // pred_region
      _
    $region45: #{encoder_forward.6} parent=1 // pred_fallthru
      _
    // Predicated region
    $region46: #{encoder_forward.6} parent=1 // pred_check
      _
    $region47: #{encoder_forward.6} parent=1 // pred_check_branch
      %205 = sbr.rel (0) target = $region49
    $region48: #{encoder_forward.6} parent=1 // pred_region
      _
    $region49: #{encoder_forward.6} parent=1 // pred_fallthru
      _
    %206 = vsyncpa [#allocation3], 1

// kernel: encoder_forward.9
$region0: #{encoder_forward.9}
  #allocation0 [shape = 'u32[]', space=smem, size = 0x4, offset = 0x4, fixed_abs, tag = 'smem constant byte address 0x4 - core index']
  #allocation1 [shape = 'u32[144,128]{1,0:T(1,128)}', space=vmem, size = 0x12000, scoped, tag = 'internal scratch']
  %s0 = inlined_call_operand.vmem [shape: f32[16,32], index: 0, kind: input, shape index: {}]
  %s1 = inlined_call_operand.vmem [shape: f32[1,32], index: 1, kind: input, shape index: {}]
  %s2 = inlined_call_operand.vmem [shape: f32[1,32], index: 2, kind: input, shape index: {}]
  %s3 = inlined_call_operand.vmem [shape: bf16[32,96], index: 3, kind: input, shape index: {}]
  %s4 = inlined_call_operand.vmem [shape: f32[1,96], index: 4, kind: input, shape index: {}]
  %s5 = inlined_call_operand.vmem [shape: bf16[16,32], index: 5, kind: output, shape index: {0}]
  %s6 = inlined_call_operand.vmem [shape: bf16[16,32], index: 6, kind: output, shape index: {1}]
  %s7 = inlined_call_operand.vmem [shape: bf16[16,32], index: 7, kind: output, shape index: {2}]
  %8 = xla_tuple %s5, %s6, %s7
  %s9 = sld [smem:[#allocation0]]
  $region46: #{encoder_forward.9} parent=0
    _
  %s11 = ssub.s32 1, %s9
  %s12 = scalar_select 0, %s11, %s9
  // Predicated region
  $region2: #{encoder_forward.9} parent=0 // pred_check
    _
  $region3: #{encoder_forward.9} parent=0 // pred_check_branch
    %14 = sbr.rel (0) target = $region5
  $region4: #{encoder_forward.9} parent=0 // pred_region
    _
  $region5: #{encoder_forward.9} parent=0 // pred_fallthru
    _
  // Predicated region
  $region6: #{encoder_forward.9} parent=0 // pred_check
    _
  $region7: #{encoder_forward.9} parent=0 // pred_check_branch
    %16 = sbr.rel (0) target = $region9
  $region8: #{encoder_forward.9} parent=0 // pred_region
    _
  $region9: #{encoder_forward.9} parent=0 // pred_fallthru
    _
  // Predicated region
  $region10: #{encoder_forward.9} parent=0 // pred_check
    _
  $region11: #{encoder_forward.9} parent=0 // pred_check_branch
    %18 = sbr.rel (0) target = $region13
  $region12: #{encoder_forward.9} parent=0 // pred_region
    _
  $region13: #{encoder_forward.9} parent=0 // pred_fallthru
    _
  // Predicated region
  $region14: #{encoder_forward.9} parent=0 // pred_check
    _
  $region15: #{encoder_forward.9} parent=0 // pred_check_branch
    %20 = sbr.rel (0) target = $region17
  $region16: #{encoder_forward.9} parent=0 // pred_region
    _
  $region17: #{encoder_forward.9} parent=0 // pred_fallthru
    _
  // Predicated region
  $region18: #{encoder_forward.9} parent=0 // pred_check
    _
  $region19: #{encoder_forward.9} parent=0 // pred_check_branch
    %22 = sbr.rel (0) target = $region21
  $region20: #{encoder_forward.9} parent=0 // pred_region
    _
  $region21: #{encoder_forward.9} parent=0 // pred_fallthru
    _
  %v24 = vld [vmem:[%s0] sm:$0xff]
  %v25 = vld [vmem:[%s0 + $0x8] sm:$0xff]
  %v26 = vld [vmem:[%s1] sm:$0x1]
  %v27 = vld [vmem:[%s2] sm:$0x1]
  %vm28 = vcmask 261120
  %v29 = vsel %vm28, %v24, 0.0
  %30 = vadd.xlane.f32.xlu0 %v29
  %v31 = vpop.xlane.xlu0 %30
  %v32 = vsel %vm28, %v25, 0.0
  %33 = vadd.xlane.f32.xlu0 %v32
  %v34 = vpop.xlane.xlu0 %33
  %v35 = vrcp.pop 32.0
  %v36 = vmul.f32 %v31, %v35
  %v37 = vmul.f32 %v34, %v35
  %v38 = vsub.f32 %v24, %v36
  %v39 = vsub.f32 %v25, %v37
  %v40 = vmul.f32 %v38, %v38
  %v41 = vmul.f32 %v39, %v39
  %v42 = vsel %vm28, %v40, 0.0
  %43 = vadd.xlane.f32.xlu0 %v42
  %v44 = vpop.xlane.xlu0 %43
  %v45 = vsel %vm28, %v41, 0.0
  %46 = vadd.xlane.f32.xlu0 %v45
  %v47 = vpop.xlane.xlu0 %46
  %v48 = vrcp.pop 31.0
  %v49 = vmul.f32 %v44, %v48
  %v50 = vmul.f32 %v47, %v48
  %v52 = vlaneseq
  %v53 = vshrl.u32 %v52, 7
  %v54 = vsub.s32 0, %v53
  %v55 = vrot.slane %v26, %v54
  %v57 = vmul.f32 %v55, %v38
  %v58 = vmul.f32 %v55, %v39
  %v59 = vrsqrt.pop %v49
  %v60 = vmul.f32 %v49, %v59
  %vm61 = vcmp.eq.f32.partialorder %v49, inf
  %v62 = vsel %vm61, %v49, %v60
  %vm63 = vcmp.eq.f32.partialorder %v49, 0.0
  %v64 = vand.u32 %v49, 2147483648
  %v65 = vsel %vm63, %v64, %v62
  %v66 = vrsqrt.pop %v50
  %v67 = vmul.f32 %v50, %v66
  %vm68 = vcmp.eq.f32.partialorder %v50, inf
  %v69 = vsel %vm68, %v50, %v67
  %vm70 = vcmp.eq.f32.partialorder %v50, 0.0
  %v71 = vand.u32 %v50, 2147483648
  %v72 = vsel %vm70, %v71, %v69
  %v73 = vadd.f32 %v65, 1e-06
  %v74 = vadd.f32 %v72, 1e-06
  %v75 = vrcp.pop %v73
  %v76 = vmul.f32 %v57, %v75
  %v77 = vrcp.pop %v74
  %v78 = vmul.f32 %v58, %v77
  %v80 = vlaneseq
  %v81 = vshrl.u32 %v80, 7
  %v82 = vsub.s32 0, %v81
  %v83 = vrot.slane %v27, %v82
  %v85 = vadd.f32 %v76, %v83
  %v86 = vadd.f32 %v78, %v83
  %v87 = vpack.c.bf16 %v86, %v85
  %v88 = vld [vmem:[%s3] sm:$0xf]
  %v89 = vld [vmem:[%s3 + $0x4] sm:$0xf]
  %v90 = vld [vmem:[%s3 + $0x8] sm:$0xf]
  %v91 = vld [vmem:[%s3 + $0xc] sm:$0xf]
  %v92 = vld [vmem:[%s4] sm:$0x1]
  %v94 = vlaneseq
  %v95 = vshrl.u32 %v94, 7
  %v96 = vsub.s32 0, %v95
  %v97 = vrot.slane %v92, %v96
  %v103 = vunpack.c.l.b16 %v88
  %v104 = vunpack.c.l.b16 %v89
  %v105 = vunpack.c.l.b16 %v90
  %v106 = vunpack.c.l.b16 %v91
  %v107 = vpack.c.b16 %v104, %v103
  %v108 = vpack.c.b16 %v106, %v105
  %v112 = vsel %vm28, %v87, 0
  %114 = vmatprep.subr.bf16.mxu0 0
  %115 = vmatpush1.bf16.msra.mxu0 %v107
  %116 = vmatprep.subr.bf16.mxu0 0
  %117 = vmatpush1.bf16.msra.mxu0 %v108
  %118 = vmatprep.subr.bf16.mxu0 0
  %119 = vmatpush1.bf16.msra.mxu0 0
  %120 = vmatprep.subr.bf16.mxu0 0
  %121 = vmatpush1.bf16.msra.mxu0 0
  %122 = vmatprep.subr.bf16.mxu0 0
  %123 = vmatpush1.bf16.msra.mxu0 0
  %124 = vmatprep.subr.bf16.mxu0 0
  %125 = vmatpush1.bf16.msra.mxu0 0
  %126 = vmatprep.subr.bf16.mxu0 0
  %127 = vmatpush1.bf16.msra.mxu0 0
  %128 = vmatprep.subr.bf16.mxu0 0
  %129 = vmatpush1.bf16.msra.mxu0 0
  %130 = vmatprep.subr.bf16.mxu0 0
  %131 = vmatpush1.bf16.msra.mxu0 0
  %132 = vmatprep.subr.bf16.mxu0 0
  %133 = vmatpush1.bf16.msra.mxu0 0
  %134 = vmatprep.subr.bf16.mxu0 0
  %135 = vmatpush1.bf16.msra.mxu0 0
  %136 = vmatprep.subr.bf16.mxu0 0
  %137 = vmatpush1.bf16.msra.mxu0 0
  %138 = vmatprep.subr.bf16.mxu0 0
  %139 = vmatpush1.bf16.msra.mxu0 0
  %140 = vmatprep.subr.bf16.mxu0 0
  %141 = vmatpush1.bf16.msra.mxu0 0
  %142 = vmatprep.subr.bf16.mxu0 0
  %143 = vmatpush1.bf16.msra.mxu0 0
  %144 = vmatprep.subr.bf16.mxu0 0
  %145 = vmatpush1.bf16.msra.mxu0 0
  %146 = vmatprep.mubr.bf16.mxu0 0
  %147 = vmatmul.mubr.bf16.gmra.mrb[0].mxu0 %v112
  %v148 = vpop.f32.mrb[0].mxu0
  %v149 = vadd.f32 %v97, %v148
  %v150 = vpop.f32.mrb[0].mxu0
  %v151 = vpop.f32.mrb[0].mxu0
  %v152 = vadd.f32 %v97, %v151
  %v153 = vpop.f32.mrb[0].mxu0
  %154 = vdwg.mxu0
  %v155 = vpack.c.bf16 %v152, %v149
  %v157 = vunpack.c.l.b16 %v155
  %v158 = vunpack.c.h.b16 %v155
  %v159 = vpack.c.b16 %v157, %v157
  %v160 = vpack.c.b16 %v158, %v158
  %vm163 = vcmask 257024
  %164 = vst.msk [vmem:[%s5] sm:$0xf] %vm163, %v159
  %165 = vst.msk [vmem:[%s5 + $0x4] sm:$0xf] %vm163, %v160
  %166 = vrot.lane.b32.xlu0 %v159, 96
  %v167 = vpop.permute.xlu0 %166
  %168 = vrot.lane.b32.xlu0 %v160, 96
  %v169 = vpop.permute.xlu0 %168
  %172 = vst.msk [vmem:[%s6] sm:$0xf] %vm163, %v167
  %173 = vst.msk [vmem:[%s6 + $0x4] sm:$0xf] %vm163, %v169
  %174 = vrot.lane.b32.xlu0 %v159, 64
  %v175 = vpop.permute.xlu0 %174
  %176 = vrot.lane.b32.xlu0 %v160, 64
  %v177 = vpop.permute.xlu0 %176
  %180 = vst.msk [vmem:[%s7] sm:$0xf] %vm163, %v175
  %181 = vst.msk [vmem:[%s7 + $0x4] sm:$0xf] %vm163, %v177
  // Predicated region
  $region22: #{encoder_forward.9} parent=0 // pred_check
    _
  $region23: #{encoder_forward.9} parent=0 // pred_check_branch
    %183 = sbr.rel (0) target = $region25
  $region24: #{encoder_forward.9} parent=0 // pred_region
    _
  $region25: #{encoder_forward.9} parent=0 // pred_fallthru
    _
  // Predicated region
  $region26: #{encoder_forward.9} parent=0 // pred_check
    _
  $region27: #{encoder_forward.9} parent=0 // pred_check_branch
    %185 = sbr.rel (0) target = $region29
  $region28: #{encoder_forward.9} parent=0 // pred_region
    _
  $region29: #{encoder_forward.9} parent=0 // pred_fallthru
    _
  // Predicated region
  $region30: #{encoder_forward.9} parent=0 // pred_check
    _
  $region31: #{encoder_forward.9} parent=0 // pred_check_branch
    %187 = sbr.rel (0) target = $region33
  $region32: #{encoder_forward.9} parent=0 // pred_region
    _
  $region33: #{encoder_forward.9} parent=0 // pred_fallthru
    _
  // Predicated region
  $region34: #{encoder_forward.9} parent=0 // pred_check
    _
  $region35: #{encoder_forward.9} parent=0 // pred_check_branch
    %189 = sbr.rel (0) target = $region37
  $region36: #{encoder_forward.9} parent=0 // pred_region
    _
  $region37: #{encoder_forward.9} parent=0 // pred_fallthru
    _
  // Predicated region
  $region38: #{encoder_forward.9} parent=0 // pred_check
    _
  $region39: #{encoder_forward.9} parent=0 // pred_check_branch
    %191 = sbr.rel (0) target = $region41
  $region40: #{encoder_forward.9} parent=0 // pred_region
    _
  $region41: #{encoder_forward.9} parent=0 // pred_fallthru
    _
  // Predicated region
  $region42: #{encoder_forward.9} parent=0 // pred_check
    _
  $region43: #{encoder_forward.9} parent=0 // pred_check_branch
    %193 = sbr.rel (0) target = $region45
  $region44: #{encoder_forward.9} parent=0 // pred_region
    _
  $region45: #{encoder_forward.9} parent=0 // pred_fallthru
    _

// kernel: encoder_forward.7
$region0: #{encoder_forward.7}
  #allocation0 [shape = 'u32[]', space=smem, size = 0x4, offset = 0x4, fixed_abs, tag = 'smem constant byte address 0x4 - core index']
  #allocation1 [shape = 'u32[144,128]{1,0:T(1,128)}', space=vmem, size = 0x12000, scoped, tag = 'internal scratch']
  %s0 = inlined_call_operand.vmem [shape: f32[2,8,32], index: 0, kind: input, shape index: {}]
  %s1 = inlined_call_operand.vmem [shape: f32[2,1,8], index: 1, kind: input, shape index: {}]
  %s2 = inlined_call_operand.vmem [shape: bf16[2,8,32], index: 2, kind: input, shape index: {}]
  %s3 = inlined_call_operand.vmem [shape: bf16[2,8,32], index: 3, kind: input, shape index: {}]
  %s4 = inlined_call_operand.vmem [shape: bf16[2,8,32], index: 4, kind: input, shape index: {}]
  %s5 = inlined_call_operand.vmem [shape: bf16[32,32], index: 5, kind: input, shape index: {}]
  %s6 = inlined_call_operand.vmem [shape: f32[1,32], index: 6, kind: input, shape index: {}]
  %s7 = inlined_call_operand.vmem [shape: f32[2,8,32], index: 7, kind: output, shape index: {}]
  %s8 = sld [smem:[#allocation0]]
  $region61: #{encoder_forward.7} parent=0
    _
  %s10 = ssub.s32 1, %s8
  %s11 = scalar_select 0, %s10, %s8
  loop: start=0, step=1, limit=4
  $region2: #{encoder_forward.7} parent=0 // loop_pre_header
    _
  $region3: #{encoder_forward.7} parent=0 // loop_header
    %s13 = sphi 0, %s17
    %p14 = scmp.ge.s32.totalorder %s13, 4
    %s20 = sphi 0, %s32
    %s21 = sphi 0, %s28
    %s22 = sphi 0, %s20
    %s23 = sphi 0, %s21
    %s24 = sphi 0, %s22
    %s25 = sphi 0, %s23
    %s37 = sphi 0, %s39
    %s40 = sphi 0, %s37
    %s41 = sphi 0, %s40
    %s57 = sphi 0, %s41
    %s63 = sphi 0, %s65
    %s66 = sphi 0, %s63
    %s67 = sphi 0, %s66
    %s83 = sphi 0, %s67
    %s91 = sphi 0, %s93
    %s94 = sphi 0, %s91
    %s95 = sphi 0, %s94
    %s111 = sphi 0, %s95
    %s117 = sphi 0, %s119
    %s120 = sphi 0, %s117
    %s121 = sphi 0, %s120
    %s137 = sphi 0, %s121
    %s143 = sphi 0, %s145
    %s146 = sphi 0, %s143
    %s147 = sphi 0, %s146
    %s163 = sphi 0, %s147
    %s167 = sphi 0, %s167
    %s169 = sphi 0, %s167
    %s170 = sphi 0, %s169
    %s184 = sphi 0, %s170
    %s188 = sphi 0, %s188
    %s190 = sphi 0, %s188
    %s191 = sphi 0, %s190
    %s205 = sphi 0, %s191
    %s213 = sphi 0, %s215
    %s216 = sphi 0, %s213
    %s217 = sphi 0, %s216
    %s233 = sphi 0, %s217
  $region4: #{encoder_forward.7} parent=0 // loop_header_branch
    %16 = sbr.rel (%p14) target = $region8
  $region5: #{encoder_forward.7} parent=0 // loop_body
    %s18 = ssub.s32 %s13, 1
    %s19 = ssub.s32 %s13, 2
    %s26 = sadd.s32 1, %s21
    %p27 = scmp.ge.s32.totalorder %s26, 1
    %s28 = scalar_select %p27, 0, %s26
    %s29 = sadd.s32 1, %s20
    %s30 = scalar_select %p27, %s29, %s20
    %p31 = scmp.ge.s32.totalorder %s30, 2
    %s32 = scalar_select %p31, 0, %s30
    %s33 = ssub.s32 %s20, %s32
    %s34 = ssub.s32 %s21, %s28
    %s35 = sor.u32 %s33, %s34
    %p36 = scmp.eq.s32.totalorder %s35, 0
    %s38 = sadd.s32 %s37, 1
    %s39 = scalar_select %p36, %s37, %s38
    %p42 = pneg %p36
    %p43 = scmp.eq.s32.totalorder %s13, 1
    %p44 = por %p42, %p43
    %p45 = scmp.ne.s32.totalorder %s37, %s40
    %p46 = scmp.eq.s32.totalorder %s13, 0
    %p47 = por %p45, %p46
    %p48 = scmp.ne.s32.totalorder %s37, %s40
    %p49 = scmp.eq.s32.totalorder %s18, 1
    %p50 = por %p48, %p49
    %p51 = scmp.ne.s32.totalorder %s40, %s41
    %p52 = scmp.eq.s32.totalorder %s18, 0
    %p53 = por %p51, %p52
    %p54 = scmp.ne.s32.totalorder %s40, %s41
    %p55 = scmp.eq.s32.totalorder %s19, 1
    %p56 = por %p54, %p55
    %p58 = scmp.ne.s32.totalorder %s41, %s57
    %p59 = scmp.eq.s32.totalorder %s19, 0
    %p60 = por %p58, %p59
    %s61 = ssub.s32 %s20, %s32
    %p62 = scmp.eq.s32.totalorder %s61, 0
    %s64 = sadd.s32 %s63, 1
    %s65 = scalar_select %p62, %s63, %s64
    %p68 = pneg %p62
    %p69 = scmp.eq.s32.totalorder %s13, 1
    %p70 = por %p68, %p69
    %p71 = scmp.ne.s32.totalorder %s63, %s66
    %p72 = scmp.eq.s32.totalorder %s13, 0
    %p73 = por %p71, %p72
    %p74 = scmp.ne.s32.totalorder %s63, %s66
    %p75 = scmp.eq.s32.totalorder %s18, 1
    %p76 = por %p74, %p75
    %p77 = scmp.ne.s32.totalorder %s66, %s67
    %p78 = scmp.eq.s32.totalorder %s18, 0
    %p79 = por %p77, %p78
    %p80 = scmp.ne.s32.totalorder %s66, %s67
    %p81 = scmp.eq.s32.totalorder %s19, 1
    %p82 = por %p80, %p81
    %p84 = scmp.ne.s32.totalorder %s67, %s83
    %p85 = scmp.eq.s32.totalorder %s19, 0
    %p86 = por %p84, %p85
    %s87 = ssub.s32 %s20, %s32
    %s88 = ssub.s32 %s21, %s28
    %s89 = sor.u32 %s87, %s88
    %p90 = scmp.eq.s32.totalorder %s89, 0
    %s92 = sadd.s32 %s91, 1
    %s93 = scalar_select %p90, %s91, %s92
    %p96 = pneg %p90
    %p97 = scmp.eq.s32.totalorder %s13, 1
    %p98 = por %p96, %p97
    %p99 = scmp.ne.s32.totalorder %s91, %s94
    %p100 = scmp.eq.s32.totalorder %s13, 0
    %p101 = por %p99, %p100
    %p102 = scmp.ne.s32.totalorder %s91, %s94
    %p103 = scmp.eq.s32.totalorder %s18, 1
    %p104 = por %p102, %p103
    %p105 = scmp.ne.s32.totalorder %s94, %s95
    %p106 = scmp.eq.s32.totalorder %s18, 0
    %p107 = por %p105, %p106
    %p108 = scmp.ne.s32.totalorder %s94, %s95
    %p109 = scmp.eq.s32.totalorder %s19, 1
    %p110 = por %p108, %p109
    %p112 = scmp.ne.s32.totalorder %s95, %s111
    %p113 = scmp.eq.s32.totalorder %s19, 0
    %p114 = por %p112, %p113
    %s115 = ssub.s32 %s20, %s32
    %p116 = scmp.eq.s32.totalorder %s115, 0
    %s118 = sadd.s32 %s117, 1
    %s119 = scalar_select %p116, %s117, %s118
    %p122 = pneg %p116
    %p123 = scmp.eq.s32.totalorder %s13, 1
    %p124 = por %p122, %p123
    %p125 = scmp.ne.s32.totalorder %s117, %s120
    %p126 = scmp.eq.s32.totalorder %s13, 0
    %p127 = por %p125, %p126
    %p128 = scmp.ne.s32.totalorder %s117, %s120
    %p129 = scmp.eq.s32.totalorder %s18, 1
    %p130 = por %p128, %p129
    %p131 = scmp.ne.s32.totalorder %s120, %s121
    %p132 = scmp.eq.s32.totalorder %s18, 0
    %p133 = por %p131, %p132
    %p134 = scmp.ne.s32.totalorder %s120, %s121
    %p135 = scmp.eq.s32.totalorder %s19, 1
    %p136 = por %p134, %p135
    %p138 = scmp.ne.s32.totalorder %s121, %s137
    %p139 = scmp.eq.s32.totalorder %s19, 0
    %p140 = por %p138, %p139
    %s141 = ssub.s32 %s20, %s32
    %p142 = scmp.eq.s32.totalorder %s141, 0
    %s144 = sadd.s32 %s143, 1
    %s145 = scalar_select %p142, %s143, %s144
    %p148 = pneg %p142
    %p149 = scmp.eq.s32.totalorder %s13, 1
    %p150 = por %p148, %p149
    %p151 = scmp.ne.s32.totalorder %s143, %s146
    %p152 = scmp.eq.s32.totalorder %s13, 0
    %p153 = por %p151, %p152
    %p154 = scmp.ne.s32.totalorder %s143, %s146
    %p155 = scmp.eq.s32.totalorder %s18, 1
    %p156 = por %p154, %p155
    %p157 = scmp.ne.s32.totalorder %s146, %s147
    %p158 = scmp.eq.s32.totalorder %s18, 0
    %p159 = por %p157, %p158
    %p160 = scmp.ne.s32.totalorder %s146, %s147
    %p161 = scmp.eq.s32.totalorder %s19, 1
    %p162 = por %p160, %p161
    %p164 = scmp.ne.s32.totalorder %s147, %s163
    %p165 = scmp.eq.s32.totalorder %s19, 0
    %p166 = por %p164, %p165
    %s168 = sadd.s32 %s167, 1
    %p171 = scmp.eq.s32.totalorder %s13, 1
    %p172 = scmp.ne.s32.totalorder %s167, %s169
    %p173 = scmp.eq.s32.totalorder %s13, 0
    %p174 = por %p172, %p173
    %p175 = scmp.ne.s32.totalorder %s167, %s169
    %p176 = scmp.eq.s32.totalorder %s18, 1
    %p177 = por %p175, %p176
    %p178 = scmp.ne.s32.totalorder %s169, %s170
    %p179 = scmp.eq.s32.totalorder %s18, 0
    %p180 = por %p178, %p179
    %p181 = scmp.ne.s32.totalorder %s169, %s170
    %p182 = scmp.eq.s32.totalorder %s19, 1
    %p183 = por %p181, %p182
    %p185 = scmp.ne.s32.totalorder %s170, %s184
    %p186 = scmp.eq.s32.totalorder %s19, 0
    %p187 = por %p185, %p186
    %s189 = sadd.s32 %s188, 1
    %p192 = scmp.eq.s32.totalorder %s13, 1
    %p193 = scmp.ne.s32.totalorder %s188, %s190
    %p194 = scmp.eq.s32.totalorder %s13, 0
    %p195 = por %p193, %p194
    %p196 = scmp.ne.s32.totalorder %s188, %s190
    %p197 = scmp.eq.s32.totalorder %s18, 1
    %p198 = por %p196, %p197
    %p199 = scmp.ne.s32.totalorder %s190, %s191
    %p200 = scmp.eq.s32.totalorder %s18, 0
    %p201 = por %p199, %p200
    %p202 = scmp.ne.s32.totalorder %s190, %s191
    %p203 = scmp.eq.s32.totalorder %s19, 1
    %p204 = por %p202, %p203
    %p206 = scmp.ne.s32.totalorder %s191, %s205
    %p207 = scmp.eq.s32.totalorder %s19, 0
    %p208 = por %p206, %p207
    %s209 = ssub.s32 %s20, %s32
    %s210 = ssub.s32 %s21, %s28
    %s211 = sor.u32 %s209, %s210
    %p212 = scmp.eq.s32.totalorder %s211, 0
    %s214 = sadd.s32 %s213, 1
    %s215 = scalar_select %p212, %s213, %s214
    %p218 = pneg %p212
    %p219 = scmp.eq.s32.totalorder %s13, 1
    %p220 = por %p218, %p219
    %p221 = scmp.ne.s32.totalorder %s213, %s216
    %p222 = scmp.eq.s32.totalorder %s13, 0
    %p223 = por %p221, %p222
    %p224 = scmp.ne.s32.totalorder %s213, %s216
    %p225 = scmp.eq.s32.totalorder %s18, 1
    %p226 = por %p224, %p225
    %p227 = scmp.ne.s32.totalorder %s216, %s217
    %p228 = scmp.eq.s32.totalorder %s18, 0
    %p229 = por %p227, %p228
    %p230 = scmp.ne.s32.totalorder %s216, %s217
    %p231 = scmp.eq.s32.totalorder %s19, 1
    %p232 = por %p230, %p231
    %p234 = scmp.ne.s32.totalorder %s217, %s233
    %p235 = scmp.eq.s32.totalorder %s19, 0
    %p236 = por %p234, %p235
    %p237 = scmp.le.s32.totalorder 1, %s13
    %p238 = scmp.lt.s32.totalorder %s13, 3
    %p239 = pnand %p237, %p238
    %p240 = pneg %p239
    // Predicated region
    $region9: #{encoder_forward.7} parent=5 // pred_check
      _
    $region10: #{encoder_forward.7} parent=5 // pred_check_branch
      %242 = sbr.rel (%p239) target = $region12
    $region11: #{encoder_forward.7} parent=5 // pred_region
      %s243 = ssub.s32 %s13, 1
      // Predicated region
      $region13: #{encoder_forward.7} parent=11 // pred_check
        %p244 = pneg %p180
      $region14: #{encoder_forward.7} parent=11 // pred_check_branch
        %246 = sbr.rel (%p244) target = $region16
      $region15: #{encoder_forward.7} parent=11 // pred_region
        _
      $region16: #{encoder_forward.7} parent=11 // pred_fallthru
        _
      // Predicated region
      $region17: #{encoder_forward.7} parent=11 // pred_check
        %p247 = pneg %p201
      $region18: #{encoder_forward.7} parent=11 // pred_check_branch
        %249 = sbr.rel (%p247) target = $region20
      $region19: #{encoder_forward.7} parent=11 // pred_region
        _
      $region20: #{encoder_forward.7} parent=11 // pred_fallthru
        _
    $region12: #{encoder_forward.7} parent=5 // pred_fallthru
      _
    %p250 = scmp.lt.s32.totalorder %s13, 2
    // Predicated region
    $region21: #{encoder_forward.7} parent=5 // pred_check
      %p251 = pneg %p250
    $region22: #{encoder_forward.7} parent=5 // pred_check_branch
      %253 = sbr.rel (%p251) target = $region24
    $region23: #{encoder_forward.7} parent=5 // pred_region
      // Predicated region
      $region25: #{encoder_forward.7} parent=23 // pred_check
        %p254 = pneg %p47
      $region26: #{encoder_forward.7} parent=23 // pred_check_branch
        %256 = sbr.rel (%p254) target = $region28
      $region27: #{encoder_forward.7} parent=23 // pred_region
        %p257 = scmp.lt.s32.totalorder %s20, 1
        %s258 = scalar_select %p257, %s20, 1
        %p259 = scmp.lt.s32.totalorder %s21, 0
        %s260 = scalar_select %p259, %s21, 0
        %s261 = sadd.s32 %s260, %s258
        %s262 = smul.addr %s261, 8
        %s263 = scalar_lea.vmem %s0, %s262
      $region28: #{encoder_forward.7} parent=23 // pred_fallthru
        _
      // Predicated region
      $region29: #{encoder_forward.7} parent=23 // pred_check
        %p264 = pneg %p73
      $region30: #{encoder_forward.7} parent=23 // pred_check_branch
        %266 = sbr.rel (%p264) target = $region32
      $region31: #{encoder_forward.7} parent=23 // pred_region
        %p267 = scmp.lt.s32.totalorder %s20, 1
        %s268 = scalar_select %p267, %s20, 1
        %s269 = scalar_lea.vmem %s1, %s268
      $region32: #{encoder_forward.7} parent=23 // pred_fallthru
        _
      // Predicated region
      $region33: #{encoder_forward.7} parent=23 // pred_check
        %p270 = pneg %p101
      $region34: #{encoder_forward.7} parent=23 // pred_check_branch
        %272 = sbr.rel (%p270) target = $region36
      $region35: #{encoder_forward.7} parent=23 // pred_region
        %p273 = scmp.lt.s32.totalorder %s20, 1
        %s274 = scalar_select %p273, %s20, 1
        %p275 = scmp.lt.s32.totalorder %s21, 0
        %s276 = scalar_select %p275, %s21, 0
        %s277 = sadd.s32 %s276, %s274
        %s278 = smul.addr %s277, 4
        %s279 = scalar_lea.vmem %s2, %s278
      $region36: #{encoder_forward.7} parent=23 // pred_fallthru
        _
      // Predicated region
      $region37: #{encoder_forward.7} parent=23 // pred_check
        %p280 = pneg %p127
      $region38: #{encoder_forward.7} parent=23 // pred_check_branch
        %282 = sbr.rel (%p280) target = $region40
      $region39: #{encoder_forward.7} parent=23 // pred_region
        %p283 = scmp.lt.s32.totalorder %s20, 1
        %s284 = scalar_select %p283, %s20, 1
        %s285 = smul.addr %s284, 4
        %s286 = scalar_lea.vmem %s3, %s285
      $region40: #{encoder_forward.7} parent=23 // pred_fallthru
        _
      // Predicated region
      $region41: #{encoder_forward.7} parent=23 // pred_check
        %p287 = pneg %p153
      $region42: #{encoder_forward.7} parent=23 // pred_check_branch
        %289 = sbr.rel (%p287) target = $region44
      $region43: #{encoder_forward.7} parent=23 // pred_region
        %p290 = scmp.lt.s32.totalorder %s20, 1
        %s291 = scalar_select %p290, %s20, 1
        %s292 = smul.addr %s291, 4
        %s293 = scalar_lea.vmem %s4, %s292
      $region44: #{encoder_forward.7} parent=23 // pred_fallthru
        _
    $region24: #{encoder_forward.7} parent=5 // pred_fallthru
      _
    %p294 = scmp.le.s32.totalorder 1, %s13
    %p295 = scmp.lt.s32.totalorder %s13, 3
    %p296 = pnand %p294, %p295
    %p297 = pneg %p296
    // Predicated region
    $region45: #{encoder_forward.7} parent=5 // pred_check
      _
    $region46: #{encoder_forward.7} parent=5 // pred_check_branch
      %299 = sbr.rel (%p296) target = $region48
    $region47: #{encoder_forward.7} parent=5 // pred_region
      %s300 = ssub.s32 %s13, 1
      %p301 = scmp.lt.s32.totalorder %s22, 1
      %s302 = scalar_select %p301, %s22, 1
      %p303 = scmp.lt.s32.totalorder %s23, 0
      %s304 = scalar_select %p303, %s23, 0
      %s305 = sadd.s32 %s304, %s302
      %s306 = smul.addr %s305, 8
      %s307 = scalar_lea.vmem %s0, %s306
      %p308 = pneg %p53
      %p309 = pneg %p50
      %p310 = scmp.lt.s32.totalorder %s22, 1
      %s311 = scalar_select %p310, %s22, 1
      %s312 = scalar_lea.vmem %s1, %s311
      %p313 = pneg %p79
      %p314 = pneg %p76
      %p315 = scmp.lt.s32.totalorder %s22, 1
      %s316 = scalar_select %p315, %s22, 1
      %p317 = scmp.lt.s32.totalorder %s23, 0
      %s318 = scalar_select %p317, %s23, 0
      %s319 = sadd.s32 %s318, %s316
      %s320 = smul.addr %s319, 4
      %s321 = scalar_lea.vmem %s2, %s320
      %p322 = pneg %p107
      %p323 = pneg %p104
      %p324 = scmp.lt.s32.totalorder %s22, 1
      %s325 = scalar_select %p324, %s22, 1
      %s326 = smul.addr %s325, 4
      %s327 = scalar_lea.vmem %s3, %s326
      %p328 = pneg %p133
      %p329 = pneg %p130
      %p330 = scmp.lt.s32.totalorder %s22, 1
      %s331 = scalar_select %p330, %s22, 1
      %s332 = smul.addr %s331, 4
      %s333 = scalar_lea.vmem %s4, %s332
      %p334 = pneg %p159
      %p335 = pneg %p156
      %p336 = pneg %p180
      %p337 = pneg %p177
      %p338 = pneg %p201
      %p339 = pneg %p198
      %p340 = pneg %p229
      %p341 = pneg %p226
      %p342 = scmp.lt.s32.totalorder %s22, 1
      %s343 = scalar_select %p342, %s22, 1
      %p344 = scmp.lt.s32.totalorder %s23, 0
      %s345 = scalar_select %p344, %s23, 0
      %s346 = sadd.s32 %s345, %s343
      %s347 = smul.addr %s346, 8
      %s348 = scalar_lea.vmem %s7, %s347
      %p349 = scmp.lt.s32.totalorder %s22, 1
      %s350 = scalar_select %p349, %s22, 1
      %p351 = scmp.lt.s32.totalorder %s23, 0
      %s352 = scalar_select %p351, %s23, 0
      %s353 = sadd.s32 %s352, %s350
      %s354 = smul.addr %s353, 8
      %s355 = scalar_lea.vmem %s0, %s354
      %p356 = scmp.lt.s32.totalorder %s22, 1
      %s357 = scalar_select %p356, %s22, 1
      %s358 = scalar_lea.vmem %s1, %s357
      %p359 = scmp.lt.s32.totalorder %s22, 1
      %s360 = scalar_select %p359, %s22, 1
      %p361 = scmp.lt.s32.totalorder %s23, 0
      %s362 = scalar_select %p361, %s23, 0
      %s363 = sadd.s32 %s362, %s360
      %s364 = smul.addr %s363, 4
      %s365 = scalar_lea.vmem %s2, %s364
      %p366 = scmp.lt.s32.totalorder %s22, 1
      %s367 = scalar_select %p366, %s22, 1
      %s368 = smul.addr %s367, 4
      %s369 = scalar_lea.vmem %s3, %s368
      %p370 = scmp.lt.s32.totalorder %s22, 1
      %s371 = scalar_select %p370, %s22, 1
      %s372 = smul.addr %s371, 4
      %s373 = scalar_lea.vmem %s4, %s372
      %p374 = scmp.lt.s32.totalorder %s22, 1
      %s375 = scalar_select %p374, %s22, 1
      %p376 = scmp.lt.s32.totalorder %s23, 0
      %s377 = scalar_select %p376, %s23, 0
      %s378 = sadd.s32 %s377, %s375
      %s379 = smul.addr %s378, 8
      %s380 = scalar_lea.vmem %s7, %s379
      %v382 = vld [vmem:[%s358] sm:$0x1]
      %v383 = vld [vmem:[%s355] sm:$0xff]
      %v384 = vld [vmem:[%s6] sm:$0x1]
      %v386 = vlaneseq
      %v387 = vshrl.u32 %v386, 7
      %v388 = vsub.s32 0, %v387
      %v389 = vrot.slane %v384, %v388
      %v391 = vadd.f32 %v383, %v389
      %v392 = vld [vmem:[%s365] sm:$0xf]
      %v393 = vld [vmem:[%s369] sm:$0xf]
      %v394 = vld [vmem:[%s373] sm:$0xf]
      %v396 = vlaneseq
      %v397 = vshrl.u32 %v396, 7
      %v398 = vsub.s32 0, %v397
      %v399 = vrot.slane %v382, %v398
      %vm401 = vcmask 64512
      %v403 = vsel %vm401, %v392, 0
      %v406 = vsel %vm401, %v393, 0
      %408 = vmatprep.subr.bf16.mxu0 0
      %409 = vmatpush1.bf16.xpose.msra.mxu0 %v406
      %410 = vmatprep.subr.bf16.mxu0 0
      %411 = vmatpush1.bf16.xpose.msra.mxu0 0
      %412 = vmatprep.subr.bf16.mxu0 0
      %413 = vmatpush1.bf16.xpose.msra.mxu0 0
      %414 = vmatprep.subr.bf16.mxu0 0
      %415 = vmatpush1.bf16.xpose.msra.mxu0 0
      %416 = vmatprep.subr.bf16.mxu0 0
      %417 = vmatpush1.bf16.xpose.msra.mxu0 0
      %418 = vmatprep.subr.bf16.mxu0 0
      %419 = vmatpush1.bf16.xpose.msra.mxu0 0
      %420 = vmatprep.subr.bf16.mxu0 0
      %421 = vmatpush1.bf16.xpose.msra.mxu0 0
      %422 = vmatprep.subr.bf16.mxu0 0
      %423 = vmatpush1.bf16.xpose.msra.mxu0 0
      %424 = vmatprep.subr.bf16.mxu0 0
      %425 = vmatpush1.bf16.xpose.msra.mxu0 0
      %426 = vmatprep.subr.bf16.mxu0 0
      %427 = vmatpush1.bf16.xpose.msra.mxu0 0
      %428 = vmatprep.subr.bf16.mxu0 0
      %429 = vmatpush1.bf16.xpose.msra.mxu0 0
      %430 = vmatprep.subr.bf16.mxu0 0
      %431 = vmatpush1.bf16.xpose.msra.mxu0 0
      %432 = vmatprep.subr.bf16.mxu0 0
      %433 = vmatpush1.bf16.xpose.msra.mxu0 0
      %434 = vmatprep.subr.bf16.mxu0 0
      %435 = vmatpush1.bf16.xpose.msra.mxu0 0
      %436 = vmatprep.subr.bf16.mxu0 0
      %437 = vmatpush1.bf16.xpose.msra.mxu0 0
      %438 = vmatprep.subr.bf16.mxu0 0
      %439 = vmatpush1.bf16.xpose.msra.mxu0 0
      %440 = vmatprep.mubr.bf16.mxu0 0
      %441 = vmatmul.mubr.bf16.gmra.mrb[0].mxu0 %v403
      %v442 = vpop.f32.mrb[0].mxu0
      %v443 = vadd.f32 %v399, %v442
      %v444 = vpop.f32.mrb[0].mxu0
      %v445 = vpop.f32.mrb[0].mxu0
      %v446 = vpop.f32.mrb[0].mxu0
      %447 = vdwg.mxu0
      %v448 = vsel %vm401, %v443, -inf
      %449 = vmax.xlane.f32.xlu0 %v448
      %v450 = vpop.xlane.xlu0 %449
      %v451 = vsub.f32 %v443, %v450
      %v452 = vmul.f32 %v451, 1.442695
      %v453 = vpow.pop %v452
      %v454 = vsel %vm401, %v453, 0.0
      %455 = vadd.xlane.f32.xlu0 %v454
      %v456 = vpop.xlane.xlu0 %455
      %v457 = vrcp.pop %v456
      %v458 = vmul.f32 %v453, %v457
      %v459 = vpack.c.bf16 %v458, %v458
      %v461 = vsel %vm401, %v459, 0
      %vm463 = vcmask 1043456
      %v465 = vsel %vm463, %v394, 0
      %467 = vmatprep.subr.bf16.mxu0 0
      %468 = vmatpush1.bf16.msra.mxu0 %v465
      %469 = vmatprep.subr.bf16.mxu0 0
      %470 = vmatpush1.bf16.msra.mxu0 0
      %471 = vmatprep.subr.bf16.mxu0 0
      %472 = vmatpush1.bf16.msra.mxu0 0
      %473 = vmatprep.subr.bf16.mxu0 0
      %474 = vmatpush1.bf16.msra.mxu0 0
      %475 = vmatprep.subr.bf16.mxu0 0
      %476 = vmatpush1.bf16.msra.mxu0 0
      %477 = vmatprep.subr.bf16.mxu0 0
      %478 = vmatpush1.bf16.msra.mxu0 0
      %479 = vmatprep.subr.bf16.mxu0 0
      %480 = vmatpush1.bf16.msra.mxu0 0
      %481 = vmatprep.subr.bf16.mxu0 0
      %482 = vmatpush1.bf16.msra.mxu0 0
      %483 = vmatprep.subr.bf16.mxu0 0
      %484 = vmatpush1.bf16.msra.mxu0 0
      %485 = vmatprep.subr.bf16.mxu0 0
      %486 = vmatpush1.bf16.msra.mxu0 0
      %487 = vmatprep.subr.bf16.mxu0 0
      %488 = vmatpush1.bf16.msra.mxu0 0
      %489 = vmatprep.subr.bf16.mxu0 0
      %490 = vmatpush1.bf16.msra.mxu0 0
      %491 = vmatprep.subr.bf16.mxu0 0
      %492 = vmatpush1.bf16.msra.mxu0 0
      %493 = vmatprep.subr.bf16.mxu0 0
      %494 = vmatpush1.bf16.msra.mxu0 0
      %495 = vmatprep.subr.bf16.mxu0 0
      %496 = vmatpush1.bf16.msra.mxu0 0
      %497 = vmatprep.subr.bf16.mxu0 0
      %498 = vmatpush1.bf16.msra.mxu0 0
      %499 = vmatprep.mubr.bf16.mxu0 0
      %500 = vmatmul.mubr.bf16.gmra.mrb[0].mxu0 %v461
      %v501 = vpop.f32.mrb[0].mxu0
      %v502 = vadd.f32 0.0, %v501
      %v503 = vpop.f32.mrb[0].mxu0
      %v504 = vpop.f32.mrb[0].mxu0
      %v505 = vpop.f32.mrb[0].mxu0
      %506 = vdwg.mxu0
      %v507 = vpack.c.bf16 %v502, %v502
      %v508 = vld [vmem:[%s5] sm:$0xf]
      %v510 = vsel %vm401, %v507, 0
      %v513 = vsel %vm463, %v508, 0
      %515 = vmatprep.subr.bf16.mxu0 0
      %516 = vmatpush1.bf16.msra.mxu0 %v513
      %517 = vmatprep.subr.bf16.mxu0 0
      %518 = vmatpush1.bf16.msra.mxu0 0
      %519 = vmatprep.subr.bf16.mxu0 0
      %520 = vmatpush1.bf16.msra.mxu0 0
      %521 = vmatprep.subr.bf16.mxu0 0
      %522 = vmatpush1.bf16.msra.mxu0 0
      %523 = vmatprep.subr.bf16.mxu0 0
      %524 = vmatpush1.bf16.msra.mxu0 0
      %525 = vmatprep.subr.bf16.mxu0 0
      %526 = vmatpush1.bf16.msra.mxu0 0
      %527 = vmatprep.subr.bf16.mxu0 0
      %528 = vmatpush1.bf16.msra.mxu0 0
      %529 = vmatprep.subr.bf16.mxu0 0
      %530 = vmatpush1.bf16.msra.mxu0 0
      %531 = vmatprep.subr.bf16.mxu0 0
      %532 = vmatpush1.bf16.msra.mxu0 0
      %533 = vmatprep.subr.bf16.mxu0 0
      %534 = vmatpush1.bf16.msra.mxu0 0
      %535 = vmatprep.subr.bf16.mxu0 0
      %536 = vmatpush1.bf16.msra.mxu0 0
      %537 = vmatprep.subr.bf16.mxu0 0
      %538 = vmatpush1.bf16.msra.mxu0 0
      %539 = vmatprep.subr.bf16.mxu0 0
      %540 = vmatpush1.bf16.msra.mxu0 0
      %541 = vmatprep.subr.bf16.mxu0 0
      %542 = vmatpush1.bf16.msra.mxu0 0
      %543 = vmatprep.subr.bf16.mxu0 0
      %544 = vmatpush1.bf16.msra.mxu0 0
      %545 = vmatprep.subr.bf16.mxu0 0
      %546 = vmatpush1.bf16.msra.mxu0 0
      %547 = vmatprep.mubr.bf16.mxu0 0
      %548 = vmatmul.mubr.bf16.gmra.mrb[0].mxu0 %v510
      %v549 = vpop.f32.mrb[0].mxu0
      %v550 = vadd.f32 0.0, %v549
      %v551 = vpop.f32.mrb[0].mxu0
      %v552 = vpop.f32.mrb[0].mxu0
      %v553 = vpop.f32.mrb[0].mxu0
      %554 = vdwg.mxu0
      %v555 = vadd.f32 %v391, %v550
      %v557 = vunpack.c.l.b16 %v392
      %v558 = vpack.c.b16 %v557, %v557
      %559 = vrot.lane.b32.xlu0 %v558, 120
      %v560 = vpop.permute.xlu0 %559
      %v562 = vunpack.c.l.b16 %v393
      %v563 = vpack.c.b16 %v562, %v562
      %564 = vrot.lane.b32.xlu0 %v563, 120
      %v565 = vpop.permute.xlu0 %564
      %v567 = vsel %vm401, %v560, 0
      %v570 = vsel %vm401, %v565, 0
      %572 = vmatprep.subr.bf16.mxu0 0
      %573 = vmatpush1.bf16.xpose.msra.mxu0 %v570
      %574 = vmatprep.subr.bf16.mxu0 0
      %575 = vmatpush1.bf16.xpose.msra.mxu0 0
      %576 = vmatprep.subr.bf16.mxu0 0
      %577 = vmatpush1.bf16.xpose.msra.mxu0 0
      %578 = vmatprep.subr.bf16.mxu0 0
      %579 = vmatpush1.bf16.xpose.msra.mxu0 0
      %580 = vmatprep.subr.bf16.mxu0 0
      %581 = vmatpush1.bf16.xpose.msra.mxu0 0
      %582 = vmatprep.subr.bf16.mxu0 0
      %583 = vmatpush1.bf16.xpose.msra.mxu0 0
      %584 = vmatprep.subr.bf16.mxu0 0
      %585 = vmatpush1.bf16.xpose.msra.mxu0 0
      %586 = vmatprep.subr.bf16.mxu0 0
      %587 = vmatpush1.bf16.xpose.msra.mxu0 0
      %588 = vmatprep.subr.bf16.mxu0 0
      %589 = vmatpush1.bf16.xpose.msra.mxu0 0
      %590 = vmatprep.subr.bf16.mxu0 0
      %591 = vmatpush1.bf16.xpose.msra.mxu0 0
      %592 = vmatprep.subr.bf16.mxu0 0
      %593 = vmatpush1.bf16.xpose.msra.mxu0 0
      %594 = vmatprep.subr.bf16.mxu0 0
      %595 = vmatpush1.bf16.xpose.msra.mxu0 0
      %596 = vmatprep.subr.bf16.mxu0 0
      %597 = vmatpush1.bf16.xpose.msra.mxu0 0
      %598 = vmatprep.subr.bf16.mxu0 0
      %599 = vmatpush1.bf16.xpose.msra.mxu0 0
      %600 = vmatprep.subr.bf16.mxu0 0
      %601 = vmatpush1.bf16.xpose.msra.mxu0 0
      %602 = vmatprep.subr.bf16.mxu0 0
      %603 = vmatpush1.bf16.xpose.msra.mxu0 0
      %604 = vmatprep.mubr.bf16.mxu0 0
      %605 = vmatmul.mubr.bf16.gmra.mrb[0].mxu0 %v567
      %v606 = vpop.f32.mrb[0].mxu0
      %v607 = vadd.f32 %v399, %v606
      %v608 = vpop.f32.mrb[0].mxu0
      %v609 = vpop.f32.mrb[0].mxu0
      %v610 = vpop.f32.mrb[0].mxu0
      %611 = vdwg.mxu0
      %v612 = vsel %vm401, %v607, -inf
      %613 = vmax.xlane.f32.xlu0 %v612
      %v614 = vpop.xlane.xlu0 %613
      %v615 = vsub.f32 %v607, %v614
      %v616 = vmul.f32 %v615, 1.442695
      %v617 = vpow.pop %v616
      %v618 = vsel %vm401, %v617, 0.0
      %619 = vadd.xlane.f32.xlu0 %v618
      %v620 = vpop.xlane.xlu0 %619
      %v621 = vrcp.pop %v620
      %v622 = vmul.f32 %v617, %v621
      %v623 = vpack.c.bf16 %v622, %v622
      %v625 = vunpack.c.l.b16 %v394
      %v626 = vpack.c.b16 %v625, %v625
      %627 = vrot.lane.b32.xlu0 %v626, 120
      %v628 = vpop.permute.xlu0 %627
      %v630 = vsel %vm401, %v623, 0
      %v633 = vsel %vm463, %v628, 0
      %635 = vmatprep.subr.bf16.mxu0 0
      %636 = vmatpush1.bf16.msra.mxu0 %v633
      %637 = vmatprep.subr.bf16.mxu0 0
      %638 = vmatpush1.bf16.msra.mxu0 0
      %639 = vmatprep.subr.bf16.mxu0 0
      %640 = vmatpush1.bf16.msra.mxu0 0
      %641 = vmatprep.subr.bf16.mxu0 0
      %642 = vmatpush1.bf16.msra.mxu0 0
      %643 = vmatprep.subr.bf16.mxu0 0
      %644 = vmatpush1.bf16.msra.mxu0 0
      %645 = vmatprep.subr.bf16.mxu0 0
      %646 = vmatpush1.bf16.msra.mxu0 0
      %647 = vmatprep.subr.bf16.mxu0 0
      %648 = vmatpush1.bf16.msra.mxu0 0
      %649 = vmatprep.subr.bf16.mxu0 0
      %650 = vmatpush1.bf16.msra.mxu0 0
      %651 = vmatprep.subr.bf16.mxu0 0
      %652 = vmatpush1.bf16.msra.mxu0 0
      %653 = vmatprep.subr.bf16.mxu0 0
      %654 = vmatpush1.bf16.msra.mxu0 0
      %655 = vmatprep.subr.bf16.mxu0 0
      %656 = vmatpush1.bf16.msra.mxu0 0
      %657 = vmatprep.subr.bf16.mxu0 0
      %658 = vmatpush1.bf16.msra.mxu0 0
      %659 = vmatprep.subr.bf16.mxu0 0
      %660 = vmatpush1.bf16.msra.mxu0 0
      %661 = vmatprep.subr.bf16.mxu0 0
      %662 = vmatpush1.bf16.msra.mxu0 0
      %663 = vmatprep.subr.bf16.mxu0 0
      %664 = vmatpush1.bf16.msra.mxu0 0
      %665 = vmatprep.subr.bf16.mxu0 0
      %666 = vmatpush1.bf16.msra.mxu0 0
      %667 = vmatprep.mubr.bf16.mxu0 0
      %668 = vmatmul.mubr.bf16.gmra.mrb[0].mxu0 %v630
      %v669 = vpop.f32.mrb[0].mxu0
      %v670 = vadd.f32 0.0, %v669
      %v671 = vpop.f32.mrb[0].mxu0
      %v672 = vpop.f32.mrb[0].mxu0
      %v673 = vpop.f32.mrb[0].mxu0
      %674 = vdwg.mxu0
      %v675 = vpack.c.bf16 %v670, %v670
      %v676 = vld [vmem:[%s5 + $0x4] sm:$0xf]
      %v678 = vsel %vm401, %v675, 0
      %v681 = vsel %vm463, %v676, 0
      %683 = vmatprep.subr.bf16.mxu0 0
      %684 = vmatpush1.bf16.msra.mxu0 %v681
      %685 = vmatprep.subr.bf16.mxu0 0
      %686 = vmatpush1.bf16.msra.mxu0 0
      %687 = vmatprep.subr.bf16.mxu0 0
      %688 = vmatpush1.bf16.msra.mxu0 0
      %689 = vmatprep.subr.bf16.mxu0 0
      %690 = vmatpush1.bf16.msra.mxu0 0
      %691 = vmatprep.subr.bf16.mxu0 0
      %692 = vmatpush1.bf16.msra.mxu0 0
      %693 = vmatprep.subr.bf16.mxu0 0
      %694 = vmatpush1.bf16.msra.mxu0 0
      %695 = vmatprep.subr.bf16.mxu0 0
      %696 = vmatpush1.bf16.msra.mxu0 0
      %697 = vmatprep.subr.bf16.mxu0 0
      %698 = vmatpush1.bf16.msra.mxu0 0
      %699 = vmatprep.subr.bf16.mxu0 0
      %700 = vmatpush1.bf16.msra.mxu0 0
      %701 = vmatprep.subr.bf16.mxu0 0
      %702 = vmatpush1.bf16.msra.mxu0 0
      %703 = vmatprep.subr.bf16.mxu0 0
      %704 = vmatpush1.bf16.msra.mxu0 0
      %705 = vmatprep.subr.bf16.mxu0 0
      %706 = vmatpush1.bf16.msra.mxu0 0
      %707 = vmatprep.subr.bf16.mxu0 0
      %708 = vmatpush1.bf16.msra.mxu0 0
      %709 = vmatprep.subr.bf16.mxu0 0
      %710 = vmatpush1.bf16.msra.mxu0 0
      %711 = vmatprep.subr.bf16.mxu0 0
      %712 = vmatpush1.bf16.msra.mxu0 0
      %713 = vmatprep.subr.bf16.mxu0 0
      %714 = vmatpush1.bf16.msra.mxu0 0
      %715 = vmatprep.mubr.bf16.mxu0 0
      %716 = vmatmul.mubr.bf16.gmra.mrb[0].mxu0 %v678
      %v717 = vpop.f32.mrb[0].mxu0
      %v718 = vadd.f32 0.0, %v717
      %v719 = vpop.f32.mrb[0].mxu0
      %v720 = vpop.f32.mrb[0].mxu0
      %v721 = vpop.f32.mrb[0].mxu0
      %722 = vdwg.mxu0
      %v723 = vadd.f32 %v555, %v718
      %724 = vrot.lane.b32.xlu0 %v558, 112
      %v725 = vpop.permute.xlu0 %724
      %726 = vrot.lane.b32.xlu0 %v563, 112
      %v727 = vpop.permute.xlu0 %726
      %v729 = vsel %vm401, %v725, 0
      %v732 = vsel %vm401, %v727, 0
      %734 = vmatprep.subr.bf16.mxu0 0
      %735 = vmatpush1.bf16.xpose.msra.mxu0 %v732
      %736 = vmatprep.subr.bf16.mxu0 0
      %737 = vmatpush1.bf16.xpose.msra.mxu0 0
      %738 = vmatprep.subr.bf16.mxu0 0
      %739 = vmatpush1.bf16.xpose.msra.mxu0 0
      %740 = vmatprep.subr.bf16.mxu0 0
      %741 = vmatpush1.bf16.xpose.msra.mxu0 0
      %742 = vmatprep.subr.bf16.mxu0 0
      %743 = vmatpush1.bf16.xpose.msra.mxu0 0
      %744 = vmatprep.subr.bf16.mxu0 0
      %745 = vmatpush1.bf16.xpose.msra.mxu0 0
      %746 = vmatprep.subr.bf16.mxu0 0
      %747 = vmatpush1.bf16.xpose.msra.mxu0 0
      %748 = vmatprep.subr.bf16.mxu0 0
      %749 = vmatpush1.bf16.xpose.msra.mxu0 0
      %750 = vmatprep.subr.bf16.mxu0 0
      %751 = vmatpush1.bf16.xpose.msra.mxu0 0
      %752 = vmatprep.subr.bf16.mxu0 0
      %753 = vmatpush1.bf16.xpose.msra.mxu0 0
      %754 = vmatprep.subr.bf16.mxu0 0
      %755 = vmatpush1.bf16.xpose.msra.mxu0 0
      %756 = vmatprep.subr.bf16.mxu0 0
      %757 = vmatpush1.bf16.xpose.msra.mxu0 0
      %758 = vmatprep.subr.bf16.mxu0 0
      %759 = vmatpush1.bf16.xpose.msra.mxu0 0
      %760 = vmatprep.subr.bf16.mxu0 0
      %761 = vmatpush1.bf16.xpose.msra.mxu0 0
      %762 = vmatprep.subr.bf16.mxu0 0
      %763 = vmatpush1.bf16.xpose.msra.mxu0 0
      %764 = vmatprep.subr.bf16.mxu0 0
      %765 = vmatpush1.bf16.xpose.msra.mxu0 0
      %766 = vmatprep.mubr.bf16.mxu0 0
      %767 = vmatmul.mubr.bf16.gmra.mrb[0].mxu0 %v729
      %v768 = vpop.f32.mrb[0].mxu0
      %v769 = vadd.f32 %v399, %v768
      %v770 = vpop.f32.mrb[0].mxu0
      %v771 = vpop.f32.mrb[0].mxu0
      %v772 = vpop.f32.mrb[0].mxu0
      %773 = vdwg.mxu0
      %v774 = vsel %vm401, %v769, -inf
      %775 = vmax.xlane.f32.xlu0 %v774
      %v776 = vpop.xlane.xlu0 %775
      %v777 = vsub.f32 %v769, %v776
      %v778 = vmul.f32 %v777, 1.442695
      %v779 = vpow.pop %v778
      %v780 = vsel %vm401, %v779, 0.0
      %781 = vadd.xlane.f32.xlu0 %v780
      %v782 = vpop.xlane.xlu0 %781
      %v783 = vrcp.pop %v782
      %v784 = vmul.f32 %v779, %v783
      %v785 = vpack.c.bf16 %v784, %v784
      %786 = vrot.lane.b32.xlu0 %v626, 112
      %v787 = vpop.permute.xlu0 %786
      %v789 = vsel %vm401, %v785, 0
      %v792 = vsel %vm463, %v787, 0
      %794 = vmatprep.subr.bf16.mxu0 0
      %795 = vmatpush1.bf16.msra.mxu0 %v792
      %796 = vmatprep.subr.bf16.mxu0 0
      %797 = vmatpush1.bf16.msra.mxu0 0
      %798 = vmatprep.subr.bf16.mxu0 0
      %799 = vmatpush1.bf16.msra.mxu0 0
      %800 = vmatprep.subr.bf16.mxu0 0
      %801 = vmatpush1.bf16.msra.mxu0 0
      %802 = vmatprep.subr.bf16.mxu0 0
      %803 = vmatpush1.bf16.msra.mxu0 0
      %804 = vmatprep.subr.bf16.mxu0 0
      %805 = vmatpush1.bf16.msra.mxu0 0
      %806 = vmatprep.subr.bf16.mxu0 0
      %807 = vmatpush1.bf16.msra.mxu0 0
      %808 = vmatprep.subr.bf16.mxu0 0
      %809 = vmatpush1.bf16.msra.mxu0 0
      %810 = vmatprep.subr.bf16.mxu0 0
      %811 = vmatpush1.bf16.msra.mxu0 0
      %812 = vmatprep.subr.bf16.mxu0 0
      %813 = vmatpush1.bf16.msra.mxu0 0
      %814 = vmatprep.subr.bf16.mxu0 0
      %815 = vmatpush1.bf16.msra.mxu0 0
      %816 = vmatprep.subr.bf16.mxu0 0
      %817 = vmatpush1.bf16.msra.mxu0 0
      %818 = vmatprep.subr.bf16.mxu0 0
      %819 = vmatpush1.bf16.msra.mxu0 0
      %820 = vmatprep.subr.bf16.mxu0 0
      %821 = vmatpush1.bf16.msra.mxu0 0
      %822 = vmatprep.subr.bf16.mxu0 0
      %823 = vmatpush1.bf16.msra.mxu0 0
      %824 = vmatprep.subr.bf16.mxu0 0
      %825 = vmatpush1.bf16.msra.mxu0 0
      %826 = vmatprep.mubr.bf16.mxu0 0
      %827 = vmatmul.mubr.bf16.gmra.mrb[0].mxu0 %v789
      %v828 = vpop.f32.mrb[0].mxu0
      %v829 = vadd.f32 0.0, %v828
      %v830 = vpop.f32.mrb[0].mxu0
      %v831 = vpop.f32.mrb[0].mxu0
      %v832 = vpop.f32.mrb[0].mxu0
      %833 = vdwg.mxu0
      %v834 = vpack.c.bf16 %v829, %v829
      %v835 = vld [vmem:[%s5 + $0x8] sm:$0xf]
      %v837 = vsel %vm401, %v834, 0
      %v840 = vsel %vm463, %v835, 0
      %842 = vmatprep.subr.bf16.mxu0 0
      %843 = vmatpush1.bf16.msra.mxu0 %v840
      %844 = vmatprep.subr.bf16.mxu0 0
      %845 = vmatpush1.bf16.msra.mxu0 0
      %846 = vmatprep.subr.bf16.mxu0 0
      %847 = vmatpush1.bf16.msra.mxu0 0
      %848 = vmatprep.subr.bf16.mxu0 0
      %849 = vmatpush1.bf16.msra.mxu0 0
      %850 = vmatprep.subr.bf16.mxu0 0
      %851 = vmatpush1.bf16.msra.mxu0 0
      %852 = vmatprep.subr.bf16.mxu0 0
      %853 = vmatpush1.bf16.msra.mxu0 0
      %854 = vmatprep.subr.bf16.mxu0 0
      %855 = vmatpush1.bf16.msra.mxu0 0
      %856 = vmatprep.subr.bf16.mxu0 0
      %857 = vmatpush1.bf16.msra.mxu0 0
      %858 = vmatprep.subr.bf16.mxu0 0
      %859 = vmatpush1.bf16.msra.mxu0 0
      %860 = vmatprep.subr.bf16.mxu0 0
      %861 = vmatpush1.bf16.msra.mxu0 0
      %862 = vmatprep.subr.bf16.mxu0 0
      %863 = vmatpush1.bf16.msra.mxu0 0
      %864 = vmatprep.subr.bf16.mxu0 0
      %865 = vmatpush1.bf16.msra.mxu0 0
      %866 = vmatprep.subr.bf16.mxu0 0
      %867 = vmatpush1.bf16.msra.mxu0 0
      %868 = vmatprep.subr.bf16.mxu0 0
      %869 = vmatpush1.bf16.msra.mxu0 0
      %870 = vmatprep.subr.bf16.mxu0 0
      %871 = vmatpush1.bf16.msra.mxu0 0
      %872 = vmatprep.subr.bf16.mxu0 0
      %873 = vmatpush1.bf16.msra.mxu0 0
      %874 = vmatprep.mubr.bf16.mxu0 0
      %875 = vmatmul.mubr.bf16.gmra.mrb[0].mxu0 %v837
      %v876 = vpop.f32.mrb[0].mxu0
      %v877 = vadd.f32 0.0, %v876
      %v878 = vpop.f32.mrb[0].mxu0
      %v879 = vpop.f32.mrb[0].mxu0
      %v880 = vpop.f32.mrb[0].mxu0
      %881 = vdwg.mxu0
      %v882 = vadd.f32 %v723, %v877
      %883 = vrot.lane.b32.xlu0 %v558, 104
      %v884 = vpop.permute.xlu0 %883
      %885 = vrot.lane.b32.xlu0 %v563, 104
      %v886 = vpop.permute.xlu0 %885
      %v888 = vsel %vm401, %v884, 0
      %v891 = vsel %vm401, %v886, 0
      %893 = vmatprep.subr.bf16.mxu0 0
      %894 = vmatpush1.bf16.xpose.msra.mxu0 %v891
      %895 = vmatprep.subr.bf16.mxu0 0
      %896 = vmatpush1.bf16.xpose.msra.mxu0 0
      %897 = vmatprep.subr.bf16.mxu0 0
      %898 = vmatpush1.bf16.xpose.msra.mxu0 0
      %899 = vmatprep.subr.bf16.mxu0 0
      %900 = vmatpush1.bf16.xpose.msra.mxu0 0
      %901 = vmatprep.subr.bf16.mxu0 0
      %902 = vmatpush1.bf16.xpose.msra.mxu0 0
      %903 = vmatprep.subr.bf16.mxu0 0
      %904 = vmatpush1.bf16.xpose.msra.mxu0 0
      %905 = vmatprep.subr.bf16.mxu0 0
      %906 = vmatpush1.bf16.xpose.msra.mxu0 0
      %907 = vmatprep.subr.bf16.mxu0 0
      %908 = vmatpush1.bf16.xpose.msra.mxu0 0
      %909 = vmatprep.subr.bf16.mxu0 0
      %910 = vmatpush1.bf16.xpose.msra.mxu0 0
      %911 = vmatprep.subr.bf16.mxu0 0
      %912 = vmatpush1.bf16.xpose.msra.mxu0 0
      %913 = vmatprep.subr.bf16.mxu0 0
      %914 = vmatpush1.bf16.xpose.msra.mxu0 0
      %915 = vmatprep.subr.bf16.mxu0 0
      %916 = vmatpush1.bf16.xpose.msra.mxu0 0
      %917 = vmatprep.subr.bf16.mxu0 0
      %918 = vmatpush1.bf16.xpose.msra.mxu0 0
      %919 = vmatprep.subr.bf16.mxu0 0
      %920 = vmatpush1.bf16.xpose.msra.mxu0 0
      %921 = vmatprep.subr.bf16.mxu0 0
      %922 = vmatpush1.bf16.xpose.msra.mxu0 0
      %923 = vmatprep.subr.bf16.mxu0 0
      %924 = vmatpush1.bf16.xpose.msra.mxu0 0
      %925 = vmatprep.mubr.bf16.mxu0 0
      %926 = vmatmul.mubr.bf16.gmra.mrb[0].mxu0 %v888
      %v927 = vpop.f32.mrb[0].mxu0
      %v928 = vadd.f32 %v399, %v927
      %v929 = vpop.f32.mrb[0].mxu0
      %v930 = vpop.f32.mrb[0].mxu0
      %v931 = vpop.f32.mrb[0].mxu0
      %932 = vdwg.mxu0
      %v933 = vsel %vm401, %v928, -inf
      %934 = vmax.xlane.f32.xlu0 %v933
      %v935 = vpop.xlane.xlu0 %934
      %v936 = vsub.f32 %v928, %v935
      %v937 = vmul.f32 %v936, 1.442695
      %v938 = vpow.pop %v937
      %v939 = vsel %vm401, %v938, 0.0
      %940 = vadd.xlane.f32.xlu0 %v939
      %v941 = vpop.xlane.xlu0 %940
      %v942 = vrcp.pop %v941
      %v943 = vmul.f32 %v938, %v942
      %v944 = vpack.c.bf16 %v943, %v943
      %945 = vrot.lane.b32.xlu0 %v626, 104
      %v946 = vpop.permute.xlu0 %945
      %v948 = vsel %vm401, %v944, 0
      %v951 = vsel %vm463, %v946, 0
      %953 = vmatprep.subr.bf16.mxu0 0
      %954 = vmatpush1.bf16.msra.mxu0 %v951
      %955 = vmatprep.subr.bf16.mxu0 0
      %956 = vmatpush1.bf16.msra.mxu0 0
      %957 = vmatprep.subr.bf16.mxu0 0
      %958 = vmatpush1.bf16.msra.mxu0 0
      %959 = vmatprep.subr.bf16.mxu0 0
      %960 = vmatpush1.bf16.msra.mxu0 0
      %961 = vmatprep.subr.bf16.mxu0 0
      %962 = vmatpush1.bf16.msra.mxu0 0
      %963 = vmatprep.subr.bf16.mxu0 0
      %964 = vmatpush1.bf16.msra.mxu0 0
      %965 = vmatprep.subr.bf16.mxu0 0
      %966 = vmatpush1.bf16.msra.mxu0 0
      %967 = vmatprep.subr.bf16.mxu0 0
      %968 = vmatpush1.bf16.msra.mxu0 0
      %969 = vmatprep.subr.bf16.mxu0 0
      %970 = vmatpush1.bf16.msra.mxu0 0
      %971 = vmatprep.subr.bf16.mxu0 0
      %972 = vmatpush1.bf16.msra.mxu0 0
      %973 = vmatprep.subr.bf16.mxu0 0
      %974 = vmatpush1.bf16.msra.mxu0 0
      %975 = vmatprep.subr.bf16.mxu0 0
      %976 = vmatpush1.bf16.msra.mxu0 0
      %977 = vmatprep.subr.bf16.mxu0 0
      %978 = vmatpush1.bf16.msra.mxu0 0
      %979 = vmatprep.subr.bf16.mxu0 0
      %980 = vmatpush1.bf16.msra.mxu0 0
      %981 = vmatprep.subr.bf16.mxu0 0
      %982 = vmatpush1.bf16.msra.mxu0 0
      %983 = vmatprep.subr.bf16.mxu0 0
      %984 = vmatpush1.bf16.msra.mxu0 0
      %985 = vmatprep.mubr.bf16.mxu0 0
      %986 = vmatmul.mubr.bf16.gmra.mrb[0].mxu0 %v948
      %v987 = vpop.f32.mrb[0].mxu0
      %v988 = vadd.f32 0.0, %v987
      %v989 = vpop.f32.mrb[0].mxu0
      %v990 = vpop.f32.mrb[0].mxu0
      %v991 = vpop.f32.mrb[0].mxu0
      %992 = vdwg.mxu0
      %v993 = vpack.c.bf16 %v988, %v988
      %v994 = vld [vmem:[%s5 + $0xc] sm:$0xf]
      %v996 = vsel %vm401, %v993, 0
      %v999 = vsel %vm463, %v994, 0
      %1001 = vmatprep.subr.bf16.mxu0 0
      %1002 = vmatpush1.bf16.msra.mxu0 %v999
      %1003 = vmatprep.subr.bf16.mxu0 0
      %1004 = vmatpush1.bf16.msra.mxu0 0
      %1005 = vmatprep.subr.bf16.mxu0 0
      %1006 = vmatpush1.bf16.msra.mxu0 0
      %1007 = vmatprep.subr.bf16.mxu0 0
      %1008 = vmatpush1.bf16.msra.mxu0 0
      %1009 = vmatprep.subr.bf16.mxu0 0
      %1010 = vmatpush1.bf16.msra.mxu0 0
      %1011 = vmatprep.subr.bf16.mxu0 0
      %1012 = vmatpush1.bf16.msra.mxu0 0
      %1013 = vmatprep.subr.bf16.mxu0 0
      %1014 = vmatpush1.bf16.msra.mxu0 0
      %1015 = vmatprep.subr.bf16.mxu0 0
      %1016 = vmatpush1.bf16.msra.mxu0 0
      %1017 = vmatprep.subr.bf16.mxu0 0
      %1018 = vmatpush1.bf16.msra.mxu0 0
      %1019 = vmatprep.subr.bf16.mxu0 0
      %1020 = vmatpush1.bf16.msra.mxu0 0
      %1021 = vmatprep.subr.bf16.mxu0 0
      %1022 = vmatpush1.bf16.msra.mxu0 0
      %1023 = vmatprep.subr.bf16.mxu0 0
      %1024 = vmatpush1.bf16.msra.mxu0 0
      %1025 = vmatprep.subr.bf16.mxu0 0
      %1026 = vmatpush1.bf16.msra.mxu0 0
      %1027 = vmatprep.subr.bf16.mxu0 0
      %1028 = vmatpush1.bf16.msra.mxu0 0
      %1029 = vmatprep.subr.bf16.mxu0 0
      %1030 = vmatpush1.bf16.msra.mxu0 0
      %1031 = vmatprep.subr.bf16.mxu0 0
      %1032 = vmatpush1.bf16.msra.mxu0 0
      %1033 = vmatprep.mubr.bf16.mxu0 0
      %1034 = vmatmul.mubr.bf16.gmra.mrb[0].mxu0 %v996
      %v1035 = vpop.f32.mrb[0].mxu0
      %v1036 = vadd.f32 0.0, %v1035
      %v1037 = vpop.f32.mrb[0].mxu0
      %v1038 = vpop.f32.mrb[0].mxu0
      %v1039 = vpop.f32.mrb[0].mxu0
      %1040 = vdwg.mxu0
      %v1041 = vadd.f32 %v882, %v1036
      %vm1042 = vcmask 261120
      %1043 = vst.msk [vmem:[%s380] sm:$0xff] %vm1042, %v1041
      %p1044 = scmp.lt.s32.totalorder %s22, 1
      %s1045 = scalar_select %p1044, %s22, 1
      %p1046 = scmp.lt.s32.totalorder %s23, 0
      %s1047 = scalar_select %p1046, %s23, 0
      %s1048 = sadd.s32 %s1047, %s1045
      %s1049 = smul.addr %s1048, 8
      %s1050 = scalar_lea.vmem %s7, %s1049
      // Predicated region
      $region49: #{encoder_forward.7} parent=47 // pred_check
        %p1051 = pneg %p226
      $region50: #{encoder_forward.7} parent=47 // pred_check_branch
        %1053 = sbr.rel (%p1051) target = $region52
      $region51: #{encoder_forward.7} parent=47 // pred_region
        _
      $region52: #{encoder_forward.7} parent=47 // pred_fallthru
        _
    $region48: #{encoder_forward.7} parent=5 // pred_fallthru
      _
    %p1054 = scmp.le.s32.totalorder 2, %s13
    // Predicated region
    $region53: #{encoder_forward.7} parent=5 // pred_check
      %p1055 = pneg %p1054
    $region54: #{encoder_forward.7} parent=5 // pred_check_branch
      %1057 = sbr.rel (%p1055) target = $region56
    $region55: #{encoder_forward.7} parent=5 // pred_region
      %s1058 = ssub.s32 %s13, 2
      // Predicated region
      $region57: #{encoder_forward.7} parent=55 // pred_check
        %p1059 = pneg %p232
      $region58: #{encoder_forward.7} parent=55 // pred_check_branch
        %1061 = sbr.rel (%p1059) target = $region60
      $region59: #{encoder_forward.7} parent=55 // pred_region
        %p1062 = scmp.lt.s32.totalorder %s24, 1
        %s1063 = scalar_select %p1062, %s24, 1
        %p1064 = scmp.lt.s32.totalorder %s25, 0
        %s1065 = scalar_select %p1064, %s25, 0
        %s1066 = sadd.s32 %s1065, %s1063
        %s1067 = smul.addr %s1066, 8
        %s1068 = scalar_lea.vmem %s7, %s1067
      $region60: #{encoder_forward.7} parent=55 // pred_fallthru
        _
    $region56: #{encoder_forward.7} parent=5 // pred_fallthru
      _
  $region6: #{encoder_forward.7} parent=0 // loop_footer
    %s17 = sadd.s32 1, %s13
  $region7: #{encoder_forward.7} parent=0 // loop_footer_branch
    %12 = sbr.rel target = $region3
  $region8: #{encoder_forward.7} parent=0 // loop_exit
    _

// kernel: encoder_forward.8
$region0: #{encoder_forward.8}
  #allocation0 [shape = 'u32[]', space=smem, size = 0x4, offset = 0x4, fixed_abs, tag = 'smem constant byte address 0x4 - core index']
  #allocation1 [shape = 'u32[144,128]{1,0:T(1,128)}', space=vmem, size = 0x12000, scoped, tag = 'internal scratch']
  #allocation2 [shape = 'f32[16,32]{1,0:T(8,128)}', space=vmem, size = 0x2000, scoped, tag = 'scratch operand']
  #allocation3 [shape = 'bf16[16,32]{1,0:T(16,128)(2,1)}', space=vmem, size = 0x1000, scoped, tag = 'scratch operand']
  %s0 = inlined_call_operand.vmem [shape: f32[16,32], index: 0, kind: input, shape index: {}]
  %s1 = inlined_call_operand.vmem [shape: f32[1,32], index: 1, kind: input, shape index: {}]
  %s2 = inlined_call_operand.vmem [shape: f32[1,32], index: 2, kind: input, shape index: {}]
  %s3 = inlined_call_operand.vmem [shape: bf16[32,64], index: 3, kind: input, shape index: {}]
  %s4 = inlined_call_operand.vmem [shape: f32[1,64], index: 4, kind: input, shape index: {}]
  %s5 = inlined_call_operand.vmem [shape: bf16[64,32], index: 5, kind: input, shape index: {}]
  %s6 = inlined_call_operand.vmem [shape: f32[1,32], index: 6, kind: input, shape index: {}]
  %s7 = inlined_call_operand.vmem [shape: f32[1,32], index: 7, kind: input, shape index: {}]
  %s8 = inlined_call_operand.vmem [shape: f32[1,32], index: 8, kind: input, shape index: {}]
  %s9 = inlined_call_operand.vmem [shape: f32[16,32], index: 9, kind: output, shape index: {}]
  %s10 = sld [smem:[#allocation0]]
  $region54: #{encoder_forward.8} parent=0
    _
  %s12 = ssub.s32 1, %s10
  %s13 = scalar_select 0, %s12, %s10
  // Predicated region
  $region2: #{encoder_forward.8} parent=0 // pred_check
    _
  $region3: #{encoder_forward.8} parent=0 // pred_check_branch
    %15 = sbr.rel (0) target = $region5
  $region4: #{encoder_forward.8} parent=0 // pred_region
    _
  $region5: #{encoder_forward.8} parent=0 // pred_fallthru
    _
  // Predicated region
  $region6: #{encoder_forward.8} parent=0 // pred_check
    _
  $region7: #{encoder_forward.8} parent=0 // pred_check_branch
    %17 = sbr.rel (0) target = $region9
  $region8: #{encoder_forward.8} parent=0 // pred_region
    _
  $region9: #{encoder_forward.8} parent=0 // pred_fallthru
    _
  // Predicated region
  $region10: #{encoder_forward.8} parent=0 // pred_check
    _
  $region11: #{encoder_forward.8} parent=0 // pred_check_branch
    %19 = sbr.rel (0) target = $region13
  $region12: #{encoder_forward.8} parent=0 // pred_region
    _
  $region13: #{encoder_forward.8} parent=0 // pred_fallthru
    _
  // Predicated region
  $region14: #{encoder_forward.8} parent=0 // pred_check
    _
  $region15: #{encoder_forward.8} parent=0 // pred_check_branch
    %21 = sbr.rel (0) target = $region17
  $region16: #{encoder_forward.8} parent=0 // pred_region
    _
  $region17: #{encoder_forward.8} parent=0 // pred_fallthru
    _
  // Predicated region
  $region18: #{encoder_forward.8} parent=0 // pred_check
    _
  $region19: #{encoder_forward.8} parent=0 // pred_check_branch
    %23 = sbr.rel (0) target = $region21
  $region20: #{encoder_forward.8} parent=0 // pred_region
    _
  $region21: #{encoder_forward.8} parent=0 // pred_fallthru
    _
  // Predicated region
  $region22: #{encoder_forward.8} parent=0 // pred_check
    _
  $region23: #{encoder_forward.8} parent=0 // pred_check_branch
    %25 = sbr.rel (0) target = $region25
  $region24: #{encoder_forward.8} parent=0 // pred_region
    _
  $region25: #{encoder_forward.8} parent=0 // pred_fallthru
    _
  // Predicated region
  $region26: #{encoder_forward.8} parent=0 // pred_check
    _
  $region27: #{encoder_forward.8} parent=0 // pred_check_branch
    %27 = sbr.rel (0) target = $region29
  $region28: #{encoder_forward.8} parent=0 // pred_region
    _
  $region29: #{encoder_forward.8} parent=0 // pred_fallthru
    _
  // Predicated region
  $region30: #{encoder_forward.8} parent=0 // pred_check
    _
  $region31: #{encoder_forward.8} parent=0 // pred_check_branch
    %29 = sbr.rel (0) target = $region33
  $region32: #{encoder_forward.8} parent=0 // pred_region
    _
  $region33: #{encoder_forward.8} parent=0 // pred_fallthru
    _
  // Predicated region
  $region34: #{encoder_forward.8} parent=0 // pred_check
    _
  $region35: #{encoder_forward.8} parent=0 // pred_check_branch
    %31 = sbr.rel (0) target = $region37
  $region36: #{encoder_forward.8} parent=0 // pred_region
    _
  $region37: #{encoder_forward.8} parent=0 // pred_fallthru
    _
  %p33 = scmp.eq.s32.totalorder 0, 0
  // Predicated region
  $region38: #{encoder_forward.8} parent=0 // pred_check
    %p34 = pneg %p33
  $region39: #{encoder_forward.8} parent=0 // pred_check_branch
    %36 = sbr.rel (%p34) target = $region41
  $region40: #{encoder_forward.8} parent=0 // pred_region
    %v37 = vld [vmem:[%s0] sm:$0xff]
    %v38 = vld [vmem:[%s0 + $0x8] sm:$0xff]
    %v39 = vld [vmem:[%s1] sm:$0x1]
    %v40 = vld [vmem:[%s2] sm:$0x1]
    %vm41 = vcmask 261120
    %v42 = vsel %vm41, %v37, 0.0
    %43 = vadd.xlane.f32.xlu0 %v42
    %v44 = vpop.xlane.xlu0 %43
    %v45 = vsel %vm41, %v38, 0.0
    %46 = vadd.xlane.f32.xlu0 %v45
    %v47 = vpop.xlane.xlu0 %46
    %v48 = vrcp.pop 32.0
    %v49 = vmul.f32 %v44, %v48
    %v50 = vmul.f32 %v47, %v48
    %v51 = vsub.f32 %v37, %v49
    %v52 = vsub.f32 %v38, %v50
    %v53 = vmul.f32 %v51, %v51
    %v54 = vmul.f32 %v52, %v52
    %v55 = vsel %vm41, %v53, 0.0
    %56 = vadd.xlane.f32.xlu0 %v55
    %v57 = vpop.xlane.xlu0 %56
    %v58 = vsel %vm41, %v54, 0.0
    %59 = vadd.xlane.f32.xlu0 %v58
    %v60 = vpop.xlane.xlu0 %59
    %v61 = vrcp.pop 31.0
    %v62 = vmul.f32 %v57, %v61
    %v63 = vmul.f32 %v60, %v61
    %v65 = vlaneseq
    %v66 = vshrl.u32 %v65, 7
    %v67 = vsub.s32 0, %v66
    %v68 = vrot.slane %v39, %v67
    %v70 = vmul.f32 %v68, %v51
    %v71 = vmul.f32 %v68, %v52
    %v72 = vrsqrt.pop %v62
    %v73 = vmul.f32 %v62, %v72
    %vm74 = vcmp.eq.f32.partialorder %v62, inf
    %v75 = vsel %vm74, %v62, %v73
    %vm76 = vcmp.eq.f32.partialorder %v62, 0.0
    %v77 = vand.u32 %v62, 2147483648
    %v78 = vsel %vm76, %v77, %v75
    %v79 = vrsqrt.pop %v63
    %v80 = vmul.f32 %v63, %v79
    %vm81 = vcmp.eq.f32.partialorder %v63, inf
    %v82 = vsel %vm81, %v63, %v80
    %vm83 = vcmp.eq.f32.partialorder %v63, 0.0
    %v84 = vand.u32 %v63, 2147483648
    %v85 = vsel %vm83, %v84, %v82
    %v86 = vadd.f32 %v78, 1e-06
    %v87 = vadd.f32 %v85, 1e-06
    %v88 = vrcp.pop %v86
    %v89 = vmul.f32 %v70, %v88
    %v90 = vrcp.pop %v87
    %v91 = vmul.f32 %v71, %v90
    %v93 = vlaneseq
    %v94 = vshrl.u32 %v93, 7
    %v95 = vsub.s32 0, %v94
    %v96 = vrot.slane %v40, %v95
    %v98 = vadd.f32 %v89, %v96
    %v99 = vadd.f32 %v91, %v96
    %v100 = vpack.c.bf16 %v99, %v98
    %101 = vst.msk [vmem:[#allocation3] sm:$0xff] %vm41, %v100
    %v102 = vld [vmem:[%s6] sm:$0x1]
    %v104 = vlaneseq
    %v105 = vshrl.u32 %v104, 7
    %v106 = vsub.s32 0, %v105
    %v107 = vrot.slane %v102, %v106
    %v109 = vadd.f32 %v37, %v107
    %v110 = vadd.f32 %v38, %v107
    %111 = vst.msk [vmem:[#allocation2] sm:$0xff] %vm41, %v109
    %112 = vst.msk [vmem:[#allocation2 + $0x8] sm:$0xff] %vm41, %v110
  $region41: #{encoder_forward.8} parent=0 // pred_fallthru
    _
  %v113 = vld [vmem:[#allocation3] sm:$0xff]
  %v114 = vld [vmem:[%s3] sm:$0xf]
  %v115 = vld [vmem:[%s3 + $0x4] sm:$0xf]
  %v116 = vld [vmem:[%s3 + $0x8] sm:$0xf]
  %v117 = vld [vmem:[%s3 + $0xc] sm:$0xf]
  %v118 = vld [vmem:[%s4] sm:$0x1]
  %v120 = vlaneseq
  %v121 = vshrl.u32 %v120, 7
  %v122 = vsub.s32 0, %v121
  %v123 = vrot.slane %v118, %v122
  %v129 = vunpack.c.l.b16 %v114
  %v130 = vunpack.c.l.b16 %v115
  %v131 = vunpack.c.l.b16 %v116
  %v132 = vunpack.c.l.b16 %v117
  %v133 = vpack.c.b16 %v130, %v129
  %v134 = vpack.c.b16 %v132, %v131
  %vm137 = vcmask 261120
  %v139 = vsel %vm137, %v113, 0
  %141 = vmatprep.subr.bf16.mxu0 0
  %142 = vmatpush1.bf16.msra.mxu0 %v133
  %143 = vmatprep.subr.bf16.mxu0 0
  %144 = vmatpush1.bf16.msra.mxu0 %v134
  %145 = vmatprep.subr.bf16.mxu0 0
  %146 = vmatpush1.bf16.msra.mxu0 0
  %147 = vmatprep.subr.bf16.mxu0 0
  %148 = vmatpush1.bf16.msra.mxu0 0
  %149 = vmatprep.subr.bf16.mxu0 0
  %150 = vmatpush1.bf16.msra.mxu0 0
  %151 = vmatprep.subr.bf16.mxu0 0
  %152 = vmatpush1.bf16.msra.mxu0 0
  %153 = vmatprep.subr.bf16.mxu0 0
  %154 = vmatpush1.bf16.msra.mxu0 0
  %155 = vmatprep.subr.bf16.mxu0 0
  %156 = vmatpush1.bf16.msra.mxu0 0
  %157 = vmatprep.subr.bf16.mxu0 0
  %158 = vmatpush1.bf16.msra.mxu0 0
  %159 = vmatprep.subr.bf16.mxu0 0
  %160 = vmatpush1.bf16.msra.mxu0 0
  %161 = vmatprep.subr.bf16.mxu0 0
  %162 = vmatpush1.bf16.msra.mxu0 0
  %163 = vmatprep.subr.bf16.mxu0 0
  %164 = vmatpush1.bf16.msra.mxu0 0
  %165 = vmatprep.subr.bf16.mxu0 0
  %166 = vmatpush1.bf16.msra.mxu0 0
  %167 = vmatprep.subr.bf16.mxu0 0
  %168 = vmatpush1.bf16.msra.mxu0 0
  %169 = vmatprep.subr.bf16.mxu0 0
  %170 = vmatpush1.bf16.msra.mxu0 0
  %171 = vmatprep.subr.bf16.mxu0 0
  %172 = vmatpush1.bf16.msra.mxu0 0
  %173 = vmatprep.mubr.bf16.mxu0 0
  %174 = vmatmul.mubr.bf16.gmra.mrb[0].mxu0 %v139
  %v175 = vpop.f32.mrb[0].mxu0
  %v176 = vadd.f32 %v123, %v175
  %v177 = vpop.f32.mrb[0].mxu0
  %v178 = vpop.f32.mrb[0].mxu0
  %v179 = vadd.f32 %v123, %v178
  %v180 = vpop.f32.mrb[0].mxu0
  %181 = vdwg.mxu0
  %v182 = vmax.f32 %v176, 0.0
  %v183 = vmax.f32 %v179, 0.0
  %v184 = vld [vmem:[#allocation2] sm:$0xff]
  %v185 = vld [vmem:[#allocation2 + $0x8] sm:$0xff]
  %v186 = vpack.c.bf16 %v183, %v182
  %v187 = vld [vmem:[%s5] sm:$0xf]
  %v188 = vld [vmem:[%s5 + $0x4] sm:$0xf]
  %v189 = vld [vmem:[%s5 + $0x8] sm:$0xf]
  %v190 = vld [vmem:[%s5 + $0xc] sm:$0xf]
  %v191 = vld [vmem:[%s5 + $0x10] sm:$0xf]
  %v192 = vld [vmem:[%s5 + $0x14] sm:$0xf]
  %v193 = vld [vmem:[%s5 + $0x18] sm:$0xf]
  %v194 = vld [vmem:[%s5 + $0x1c] sm:$0xf]
  %v203 = vunpack.c.l.b16 %v187
  %v204 = vunpack.c.l.b16 %v188
  %v205 = vunpack.c.l.b16 %v189
  %v206 = vunpack.c.l.b16 %v190
  %v207 = vunpack.c.l.b16 %v191
  %v208 = vunpack.c.l.b16 %v192
  %v209 = vunpack.c.l.b16 %v193
  %v210 = vunpack.c.l.b16 %v194
  %v211 = vpack.c.b16 %v204, %v203
  %v212 = vpack.c.b16 %v206, %v205
  %v213 = vpack.c.b16 %v208, %v207
  %v214 = vpack.c.b16 %v210, %v209
  %vm219 = vcmask 523264
  %v221 = vsel %vm219, %v186, 0
  %223 = vmatprep.subr.bf16.mxu0 0
  %224 = vmatpush1.bf16.msra.mxu0 %v211
  %225 = vmatprep.subr.bf16.mxu0 0
  %226 = vmatpush1.bf16.msra.mxu0 %v212
  %227 = vmatprep.subr.bf16.mxu0 0
  %228 = vmatpush1.bf16.msra.mxu0 %v213
  %229 = vmatprep.subr.bf16.mxu0 0
  %230 = vmatpush1.bf16.msra.mxu0 %v214
  %231 = vmatprep.subr.bf16.mxu0 0
  %232 = vmatpush1.bf16.msra.mxu0 0
  %233 = vmatprep.subr.bf16.mxu0 0
  %234 = vmatpush1.bf16.msra.mxu0 0
  %235 = vmatprep.subr.bf16.mxu0 0
  %236 = vmatpush1.bf16.msra.mxu0 0
  %237 = vmatprep.subr.bf16.mxu0 0
  %238 = vmatpush1.bf16.msra.mxu0 0
  %239 = vmatprep.subr.bf16.mxu0 0
  %240 = vmatpush1.bf16.msra.mxu0 0
  %241 = vmatprep.subr.bf16.mxu0 0
  %242 = vmatpush1.bf16.msra.mxu0 0
  %243 = vmatprep.subr.bf16.mxu0 0
  %244 = vmatpush1.bf16.msra.mxu0 0
  %245 = vmatprep.subr.bf16.mxu0 0
  %246 = vmatpush1.bf16.msra.mxu0 0
  %247 = vmatprep.subr.bf16.mxu0 0
  %248 = vmatpush1.bf16.msra.mxu0 0
  %249 = vmatprep.subr.bf16.mxu0 0
  %250 = vmatpush1.bf16.msra.mxu0 0
  %251 = vmatprep.subr.bf16.mxu0 0
  %252 = vmatpush1.bf16.msra.mxu0 0
  %253 = vmatprep.subr.bf16.mxu0 0
  %254 = vmatpush1.bf16.msra.mxu0 0
  %255 = vmatprep.mubr.bf16.mxu0 0
  %256 = vmatmul.mubr.bf16.gmra.mrb[0].mxu0 %v221
  %v257 = vpop.f32.mrb[0].mxu0
  %v258 = vadd.f32 0.0, %v257
  %v259 = vpop.f32.mrb[0].mxu0
  %v260 = vpop.f32.mrb[0].mxu0
  %v261 = vadd.f32 0.0, %v260
  %v262 = vpop.f32.mrb[0].mxu0
  %263 = vdwg.mxu0
  %v264 = vadd.f32 %v184, %v258
  %v265 = vadd.f32 %v185, %v261
  %266 = vst.msk [vmem:[#allocation2] sm:$0xff] %vm137, %v264
  %267 = vst.msk [vmem:[#allocation2 + $0x8] sm:$0xff] %vm137, %v265
  // Predicated region
  $region42: #{encoder_forward.8} parent=0 // pred_check
    %p268 = pneg %p33
  $region43: #{encoder_forward.8} parent=0 // pred_check_branch
    %270 = sbr.rel (%p268) target = $region45
  $region44: #{encoder_forward.8} parent=0 // pred_region
    %v271 = vld [vmem:[#allocation2] sm:$0xff]
    %v272 = vld [vmem:[#allocation2 + $0x8] sm:$0xff]
    %273 = vst.msk [vmem:[%s9] sm:$0xff] %vm137, %v271
    %274 = vst.msk [vmem:[%s9 + $0x8] sm:$0xff] %vm137, %v272
  $region45: #{encoder_forward.8} parent=0 // pred_fallthru
    _
  // Predicated region
  $region46: #{encoder_forward.8} parent=0 // pred_check
    _
  $region47: #{encoder_forward.8} parent=0 // pred_check_branch
    %276 = sbr.rel (0) target = $region49
  $region48: #{encoder_forward.8} parent=0 // pred_region
    _
  $region49: #{encoder_forward.8} parent=0 // pred_fallthru
    _
  // Predicated region
  $region50: #{encoder_forward.8} parent=0 // pred_check
    _
  $region51: #{encoder_forward.8} parent=0 // pred_check_branch
    %278 = sbr.rel (0) target = $region53
  $region52: #{encoder_forward.8} parent=0 // pred_region
    _
  $region53: #{encoder_forward.8} parent=0 // pred_fallthru
    _

// kernel: encoder_forward.11
$region0: #{encoder_forward.11}
  #allocation0 [shape = 'u32[]', space=smem, size = 0x4, offset = 0x4, fixed_abs, tag = 'smem constant byte address 0x4 - core index']
  #allocation1 [shape = 'u32[144,128]{1,0:T(1,128)}', space=vmem, size = 0x12000, scoped, tag = 'internal scratch']
  #allocation2 [shape = 'f32[16,32]{1,0:T(8,128)}', space=vmem, size = 0x2000, scoped, tag = 'scratch operand']
  #allocation3 [shape = 'bf16[16,32]{1,0:T(16,128)(2,1)}', space=vmem, size = 0x1000, scoped, tag = 'scratch operand']
  %s0 = inlined_call_operand.vmem [shape: f32[16,32], index: 0, kind: input, shape index: {}]
  %s1 = inlined_call_operand.vmem [shape: f32[1,32], index: 1, kind: input, shape index: {}]
  %s2 = inlined_call_operand.vmem [shape: f32[1,32], index: 2, kind: input, shape index: {}]
  %s3 = inlined_call_operand.vmem [shape: bf16[32,64], index: 3, kind: input, shape index: {}]
  %s4 = inlined_call_operand.vmem [shape: f32[1,64], index: 4, kind: input, shape index: {}]
  %s5 = inlined_call_operand.vmem [shape: bf16[64,32], index: 5, kind: input, shape index: {}]
  %s6 = inlined_call_operand.vmem [shape: f32[1,32], index: 6, kind: input, shape index: {}]
  %s7 = inlined_call_operand.vmem [shape: f32[1,32], index: 7, kind: input, shape index: {}]
  %s8 = inlined_call_operand.vmem [shape: f32[1,32], index: 8, kind: input, shape index: {}]
  %s9 = inlined_call_operand.hbm [shape: f32[16,32], index: 9, kind: output, shape index: {}]
  %s10 = sld [smem:[#allocation0]]
  $region54: #{encoder_forward.11} parent=0
    _
  %s12 = ssub.s32 1, %s10
  %s13 = scalar_select 0, %s12, %s10
  $region1: #{encoder_forward.11} parent=0
    #allocation4 [shape = 'u8[8192]{0}', space=vmem, size = 0x2000, scoped, tag = 'output window, operand 0, single buffered']
    #allocation5 [shape = 's32[1]{0}', space=sflag, size = 0x4, scoped, tag = 'scoped memory for encoder_forward.11']
    %14 = vsyncpa [#allocation5], 0
    // Predicated region
    $region2: #{encoder_forward.11} parent=1 // pred_check
      _
    $region3: #{encoder_forward.11} parent=1 // pred_check_branch
      %16 = sbr.rel (0) target = $region5
    $region4: #{encoder_forward.11} parent=1 // pred_region
      _
    $region5: #{encoder_forward.11} parent=1 // pred_fallthru
      _
    // Predicated region
    $region6: #{encoder_forward.11} parent=1 // pred_check
      _
    $region7: #{encoder_forward.11} parent=1 // pred_check_branch
      %18 = sbr.rel (0) target = $region9
    $region8: #{encoder_forward.11} parent=1 // pred_region
      _
    $region9: #{encoder_forward.11} parent=1 // pred_fallthru
      _
    // Predicated region
    $region10: #{encoder_forward.11} parent=1 // pred_check
      _
    $region11: #{encoder_forward.11} parent=1 // pred_check_branch
      %20 = sbr.rel (0) target = $region13
    $region12: #{encoder_forward.11} parent=1 // pred_region
      _
    $region13: #{encoder_forward.11} parent=1 // pred_fallthru
      _
    // Predicated region
    $region14: #{encoder_forward.11} parent=1 // pred_check
      _
    $region15: #{encoder_forward.11} parent=1 // pred_check_branch
      %22 = sbr.rel (0) target = $region17
    $region16: #{encoder_forward.11} parent=1 // pred_region
      _
    $region17: #{encoder_forward.11} parent=1 // pred_fallthru
      _
    // Predicated region
    $region18: #{encoder_forward.11} parent=1 // pred_check
      _
    $region19: #{encoder_forward.11} parent=1 // pred_check_branch
      %24 = sbr.rel (0) target = $region21
    $region20: #{encoder_forward.11} parent=1 // pred_region
      _
    $region21: #{encoder_forward.11} parent=1 // pred_fallthru
      _
    // Predicated region
    $region22: #{encoder_forward.11} parent=1 // pred_check
      _
    $region23: #{encoder_forward.11} parent=1 // pred_check_branch
      %26 = sbr.rel (0) target = $region25
    $region24: #{encoder_forward.11} parent=1 // pred_region
      _
    $region25: #{encoder_forward.11} parent=1 // pred_fallthru
      _
    // Predicated region
    $region26: #{encoder_forward.11} parent=1 // pred_check
      _
    $region27: #{encoder_forward.11} parent=1 // pred_check_branch
      %28 = sbr.rel (0) target = $region29
    $region28: #{encoder_forward.11} parent=1 // pred_region
      _
    $region29: #{encoder_forward.11} parent=1 // pred_fallthru
      _
    // Predicated region
    $region30: #{encoder_forward.11} parent=1 // pred_check
      _
    $region31: #{encoder_forward.11} parent=1 // pred_check_branch
      %30 = sbr.rel (0) target = $region33
    $region32: #{encoder_forward.11} parent=1 // pred_region
      _
    $region33: #{encoder_forward.11} parent=1 // pred_fallthru
      _
    // Predicated region
    $region34: #{encoder_forward.11} parent=1 // pred_check
      _
    $region35: #{encoder_forward.11} parent=1 // pred_check_branch
      %32 = sbr.rel (0) target = $region37
    $region36: #{encoder_forward.11} parent=1 // pred_region
      _
    $region37: #{encoder_forward.11} parent=1 // pred_fallthru
      _
    %p34 = scmp.eq.s32.totalorder 0, 0
    // Predicated region
    $region38: #{encoder_forward.11} parent=1 // pred_check
      %p35 = pneg %p34
    $region39: #{encoder_forward.11} parent=1 // pred_check_branch
      %37 = sbr.rel (%p35) target = $region41
    $region40: #{encoder_forward.11} parent=1 // pred_region
      %v38 = vld [vmem:[%s0] sm:$0xff]
      %v39 = vld [vmem:[%s0 + $0x8] sm:$0xff]
      %v40 = vld [vmem:[%s1] sm:$0x1]
      %v41 = vld [vmem:[%s2] sm:$0x1]
      %vm42 = vcmask 261120
      %v43 = vsel %vm42, %v38, 0.0
      %44 = vadd.xlane.f32.xlu0 %v43
      %v45 = vpop.xlane.xlu0 %44
      %v46 = vsel %vm42, %v39, 0.0
      %47 = vadd.xlane.f32.xlu0 %v46
      %v48 = vpop.xlane.xlu0 %47
      %v49 = vrcp.pop 32.0
      %v50 = vmul.f32 %v45, %v49
      %v51 = vmul.f32 %v48, %v49
      %v52 = vsub.f32 %v38, %v50
      %v53 = vsub.f32 %v39, %v51
      %v54 = vmul.f32 %v52, %v52
      %v55 = vmul.f32 %v53, %v53
      %v56 = vsel %vm42, %v54, 0.0
      %57 = vadd.xlane.f32.xlu0 %v56
      %v58 = vpop.xlane.xlu0 %57
      %v59 = vsel %vm42, %v55, 0.0
      %60 = vadd.xlane.f32.xlu0 %v59
      %v61 = vpop.xlane.xlu0 %60
      %v62 = vrcp.pop 31.0
      %v63 = vmul.f32 %v58, %v62
      %v64 = vmul.f32 %v61, %v62
      %v66 = vlaneseq
      %v67 = vshrl.u32 %v66, 7
      %v68 = vsub.s32 0, %v67
      %v69 = vrot.slane %v40, %v68
      %v71 = vmul.f32 %v69, %v52
      %v72 = vmul.f32 %v69, %v53
      %v73 = vrsqrt.pop %v63
      %v74 = vmul.f32 %v63, %v73
      %vm75 = vcmp.eq.f32.partialorder %v63, inf
      %v76 = vsel %vm75, %v63, %v74
      %vm77 = vcmp.eq.f32.partialorder %v63, 0.0
      %v78 = vand.u32 %v63, 2147483648
      %v79 = vsel %vm77, %v78, %v76
      %v80 = vrsqrt.pop %v64
      %v81 = vmul.f32 %v64, %v80
      %vm82 = vcmp.eq.f32.partialorder %v64, inf
      %v83 = vsel %vm82, %v64, %v81
      %vm84 = vcmp.eq.f32.partialorder %v64, 0.0
      %v85 = vand.u32 %v64, 2147483648
      %v86 = vsel %vm84, %v85, %v83
      %v87 = vadd.f32 %v79, 1e-06
      %v88 = vadd.f32 %v86, 1e-06
      %v89 = vrcp.pop %v87
      %v90 = vmul.f32 %v71, %v89
      %v91 = vrcp.pop %v88
      %v92 = vmul.f32 %v72, %v91
      %v94 = vlaneseq
      %v95 = vshrl.u32 %v94, 7
      %v96 = vsub.s32 0, %v95
      %v97 = vrot.slane %v41, %v96
      %v99 = vadd.f32 %v90, %v97
      %v100 = vadd.f32 %v92, %v97
      %v101 = vpack.c.bf16 %v100, %v99
      %102 = vst.msk [vmem:[#allocation3] sm:$0xff] %vm42, %v101
      %v103 = vld [vmem:[%s6] sm:$0x1]
      %v105 = vlaneseq
      %v106 = vshrl.u32 %v105, 7
      %v107 = vsub.s32 0, %v106
      %v108 = vrot.slane %v103, %v107
      %v110 = vadd.f32 %v38, %v108
      %v111 = vadd.f32 %v39, %v108
      %112 = vst.msk [vmem:[#allocation2] sm:$0xff] %vm42, %v110
      %113 = vst.msk [vmem:[#allocation2 + $0x8] sm:$0xff] %vm42, %v111
    $region41: #{encoder_forward.11} parent=1 // pred_fallthru
      _
    %v114 = vld [vmem:[#allocation3] sm:$0xff]
    %v115 = vld [vmem:[%s3] sm:$0xf]
    %v116 = vld [vmem:[%s3 + $0x4] sm:$0xf]
    %v117 = vld [vmem:[%s3 + $0x8] sm:$0xf]
    %v118 = vld [vmem:[%s3 + $0xc] sm:$0xf]
    %v119 = vld [vmem:[%s4] sm:$0x1]
    %v121 = vlaneseq
    %v122 = vshrl.u32 %v121, 7
    %v123 = vsub.s32 0, %v122
    %v124 = vrot.slane %v119, %v123
    %v130 = vunpack.c.l.b16 %v115
    %v131 = vunpack.c.l.b16 %v116
    %v132 = vunpack.c.l.b16 %v117
    %v133 = vunpack.c.l.b16 %v118
    %v134 = vpack.c.b16 %v131, %v130
    %v135 = vpack.c.b16 %v133, %v132
    %vm138 = vcmask 261120
    %v140 = vsel %vm138, %v114, 0
    %142 = vmatprep.subr.bf16.mxu0 0
    %143 = vmatpush1.bf16.msra.mxu0 %v134
    %144 = vmatprep.subr.bf16.mxu0 0
    %145 = vmatpush1.bf16.msra.mxu0 %v135
    %146 = vmatprep.subr.bf16.mxu0 0
    %147 = vmatpush1.bf16.msra.mxu0 0
    %148 = vmatprep.subr.bf16.mxu0 0
    %149 = vmatpush1.bf16.msra.mxu0 0
    %150 = vmatprep.subr.bf16.mxu0 0
    %151 = vmatpush1.bf16.msra.mxu0 0
    %152 = vmatprep.subr.bf16.mxu0 0
    %153 = vmatpush1.bf16.msra.mxu0 0
    %154 = vmatprep.subr.bf16.mxu0 0
    %155 = vmatpush1.bf16.msra.mxu0 0
    %156 = vmatprep.subr.bf16.mxu0 0
    %157 = vmatpush1.bf16.msra.mxu0 0
    %158 = vmatprep.subr.bf16.mxu0 0
    %159 = vmatpush1.bf16.msra.mxu0 0
    %160 = vmatprep.subr.bf16.mxu0 0
    %161 = vmatpush1.bf16.msra.mxu0 0
    %162 = vmatprep.subr.bf16.mxu0 0
    %163 = vmatpush1.bf16.msra.mxu0 0
    %164 = vmatprep.subr.bf16.mxu0 0
    %165 = vmatpush1.bf16.msra.mxu0 0
    %166 = vmatprep.subr.bf16.mxu0 0
    %167 = vmatpush1.bf16.msra.mxu0 0
    %168 = vmatprep.subr.bf16.mxu0 0
    %169 = vmatpush1.bf16.msra.mxu0 0
    %170 = vmatprep.subr.bf16.mxu0 0
    %171 = vmatpush1.bf16.msra.mxu0 0
    %172 = vmatprep.subr.bf16.mxu0 0
    %173 = vmatpush1.bf16.msra.mxu0 0
    %174 = vmatprep.mubr.bf16.mxu0 0
    %175 = vmatmul.mubr.bf16.gmra.mrb[0].mxu0 %v140
    %v176 = vpop.f32.mrb[0].mxu0
    %v177 = vadd.f32 %v124, %v176
    %v178 = vpop.f32.mrb[0].mxu0
    %v179 = vpop.f32.mrb[0].mxu0
    %v180 = vadd.f32 %v124, %v179
    %v181 = vpop.f32.mrb[0].mxu0
    %182 = vdwg.mxu0
    %v183 = vmax.f32 %v177, 0.0
    %v184 = vmax.f32 %v180, 0.0
    %v185 = vld [vmem:[#allocation2] sm:$0xff]
    %v186 = vld [vmem:[#allocation2 + $0x8] sm:$0xff]
    %v187 = vpack.c.bf16 %v184, %v183
    %v188 = vld [vmem:[%s5] sm:$0xf]
    %v189 = vld [vmem:[%s5 + $0x4] sm:$0xf]
    %v190 = vld [vmem:[%s5 + $0x8] sm:$0xf]
    %v191 = vld [vmem:[%s5 + $0xc] sm:$0xf]
    %v192 = vld [vmem:[%s5 + $0x10] sm:$0xf]
    %v193 = vld [vmem:[%s5 + $0x14] sm:$0xf]
    %v194 = vld [vmem:[%s5 + $0x18] sm:$0xf]
    %v195 = vld [vmem:[%s5 + $0x1c] sm:$0xf]
    %v204 = vunpack.c.l.b16 %v188
    %v205 = vunpack.c.l.b16 %v189
    %v206 = vunpack.c.l.b16 %v190
    %v207 = vunpack.c.l.b16 %v191
    %v208 = vunpack.c.l.b16 %v192
    %v209 = vunpack.c.l.b16 %v193
    %v210 = vunpack.c.l.b16 %v194
    %v211 = vunpack.c.l.b16 %v195
    %v212 = vpack.c.b16 %v205, %v204
    %v213 = vpack.c.b16 %v207, %v206
    %v214 = vpack.c.b16 %v209, %v208
    %v215 = vpack.c.b16 %v211, %v210
    %vm220 = vcmask 523264
    %v222 = vsel %vm220, %v187, 0
    %224 = vmatprep.subr.bf16.mxu0 0
    %225 = vmatpush1.bf16.msra.mxu0 %v212
    %226 = vmatprep.subr.bf16.mxu0 0
    %227 = vmatpush1.bf16.msra.mxu0 %v213
    %228 = vmatprep.subr.bf16.mxu0 0
    %229 = vmatpush1.bf16.msra.mxu0 %v214
    %230 = vmatprep.subr.bf16.mxu0 0
    %231 = vmatpush1.bf16.msra.mxu0 %v215
    %232 = vmatprep.subr.bf16.mxu0 0
    %233 = vmatpush1.bf16.msra.mxu0 0
    %234 = vmatprep.subr.bf16.mxu0 0
    %235 = vmatpush1.bf16.msra.mxu0 0
    %236 = vmatprep.subr.bf16.mxu0 0
    %237 = vmatpush1.bf16.msra.mxu0 0
    %238 = vmatprep.subr.bf16.mxu0 0
    %239 = vmatpush1.bf16.msra.mxu0 0
    %240 = vmatprep.subr.bf16.mxu0 0
    %241 = vmatpush1.bf16.msra.mxu0 0
    %242 = vmatprep.subr.bf16.mxu0 0
    %243 = vmatpush1.bf16.msra.mxu0 0
    %244 = vmatprep.subr.bf16.mxu0 0
    %245 = vmatpush1.bf16.msra.mxu0 0
    %246 = vmatprep.subr.bf16.mxu0 0
    %247 = vmatpush1.bf16.msra.mxu0 0
    %248 = vmatprep.subr.bf16.mxu0 0
    %249 = vmatpush1.bf16.msra.mxu0 0
    %250 = vmatprep.subr.bf16.mxu0 0
    %251 = vmatpush1.bf16.msra.mxu0 0
    %252 = vmatprep.subr.bf16.mxu0 0
    %253 = vmatpush1.bf16.msra.mxu0 0
    %254 = vmatprep.subr.bf16.mxu0 0
    %255 = vmatpush1.bf16.msra.mxu0 0
    %256 = vmatprep.mubr.bf16.mxu0 0
    %257 = vmatmul.mubr.bf16.gmra.mrb[0].mxu0 %v222
    %v258 = vpop.f32.mrb[0].mxu0
    %v259 = vadd.f32 0.0, %v258
    %v260 = vpop.f32.mrb[0].mxu0
    %v261 = vpop.f32.mrb[0].mxu0
    %v262 = vadd.f32 0.0, %v261
    %v263 = vpop.f32.mrb[0].mxu0
    %264 = vdwg.mxu0
    %v265 = vadd.f32 %v185, %v259
    %v266 = vadd.f32 %v186, %v262
    %267 = vst.msk [vmem:[#allocation2] sm:$0xff] %vm138, %v265
    %268 = vst.msk [vmem:[#allocation2 + $0x8] sm:$0xff] %vm138, %v266
    // Predicated region
    $region42: #{encoder_forward.11} parent=1 // pred_check
      %p269 = pneg %p34
    $region43: #{encoder_forward.11} parent=1 // pred_check_branch
      %271 = sbr.rel (%p269) target = $region45
    $region44: #{encoder_forward.11} parent=1 // pred_region
      %v272 = vld [vmem:[#allocation2] sm:$0xff]
      %v273 = vld [vmem:[#allocation2 + $0x8] sm:$0xff]
      %v274 = vld [vmem:[%s7] sm:$0x1]
      %v275 = vld [vmem:[%s8] sm:$0x1]
      %v276 = vsel %vm138, %v272, 0.0
      %277 = vadd.xlane.f32.xlu0 %v276
      %v278 = vpop.xlane.xlu0 %277
      %v279 = vsel %vm138, %v273, 0.0
      %280 = vadd.xlane.f32.xlu0 %v279
      %v281 = vpop.xlane.xlu0 %280
      %v282 = vrcp.pop 32.0
      %v283 = vmul.f32 %v278, %v282
      %v284 = vmul.f32 %v281, %v282
      %v285 = vsub.f32 %v272, %v283
      %v286 = vsub.f32 %v273, %v284
      %v287 = vmul.f32 %v285, %v285
      %v288 = vmul.f32 %v286, %v286
      %v289 = vsel %vm138, %v287, 0.0
      %290 = vadd.xlane.f32.xlu0 %v289
      %v291 = vpop.xlane.xlu0 %290
      %v292 = vsel %vm138, %v288, 0.0
      %293 = vadd.xlane.f32.xlu0 %v292
      %v294 = vpop.xlane.xlu0 %293
      %v295 = vrcp.pop 31.0
      %v296 = vmul.f32 %v291, %v295
      %v297 = vmul.f32 %v294, %v295
      %v299 = vlaneseq
      %v300 = vshrl.u32 %v299, 7
      %v301 = vsub.s32 0, %v300
      %v302 = vrot.slane %v274, %v301
      %v304 = vmul.f32 %v302, %v285
      %v305 = vmul.f32 %v302, %v286
      %v306 = vrsqrt.pop %v296
      %v307 = vmul.f32 %v296, %v306
      %vm308 = vcmp.eq.f32.partialorder %v296, inf
      %v309 = vsel %vm308, %v296, %v307
      %vm310 = vcmp.eq.f32.partialorder %v296, 0.0
      %v311 = vand.u32 %v296, 2147483648
      %v312 = vsel %vm310, %v311, %v309
      %v313 = vrsqrt.pop %v297
      %v314 = vmul.f32 %v297, %v313
      %vm315 = vcmp.eq.f32.partialorder %v297, inf
      %v316 = vsel %vm315, %v297, %v314
      %vm317 = vcmp.eq.f32.partialorder %v297, 0.0
      %v318 = vand.u32 %v297, 2147483648
      %v319 = vsel %vm317, %v318, %v316
      %v320 = vadd.f32 %v312, 1e-06
      %v321 = vadd.f32 %v319, 1e-06
      %v322 = vrcp.pop %v320
      %v323 = vmul.f32 %v304, %v322
      %v324 = vrcp.pop %v321
      %v325 = vmul.f32 %v305, %v324
      %v327 = vlaneseq
      %v328 = vshrl.u32 %v327, 7
      %v329 = vsub.s32 0, %v328
      %v330 = vrot.slane %v275, %v329
      %v332 = vadd.f32 %v323, %v330
      %v333 = vadd.f32 %v325, %v330
      %334 = vst.msk [vmem:[#allocation4] sm:$0xff] %vm138, %v332
      %335 = vst.msk [vmem:[#allocation4 + $0x8] sm:$0xff] %vm138, %v333
    $region45: #{encoder_forward.11} parent=1 // pred_fallthru
      _
    // Predicated region
    $region46: #{encoder_forward.11} parent=1 // pred_check
      _
    $region47: #{encoder_forward.11} parent=1 // pred_check_branch
      %337 = sbr.rel (0) target = $region49
    $region48: #{encoder_forward.11} parent=1 // pred_region
      %s339 = ssub.s32 256, 256
      %340 = vsyncadd [#allocation5], %s339
      %s341 = sshll.u32 [#allocation4], 4
      %s342 = int_to_ptr.vmem [resolvable:$true] %s341
      %347 = dma.vmem_to_hbm [thread:$0]  %s342, 256, %s9, [#allocation5], 128, 128, 8
    $region49: #{encoder_forward.11} parent=1 // pred_fallthru
      _
    // Predicated region
    $region50: #{encoder_forward.11} parent=1 // pred_check
      _
    $region51: #{encoder_forward.11} parent=1 // pred_check_branch
      %349 = sbr.rel (0) target = $region53
    $region52: #{encoder_forward.11} parent=1 // pred_region
      %350 = dma.done [#allocation5], 256
    $region53: #{encoder_forward.11} parent=1 // pred_fallthru
      _
    %351 = vsyncpa [#allocation5], 1

</llo_original>
